<compile_context>
chip_gen: v6e
topology: v6e:2x2x1
jax: 0.10.0
libtpu: 0.0.40
codegen_flags: <defaults>
</compile_context>

<pallas_src>
import functools

import jax
import jax.numpy as jnp
import numpy as np
from jax.experimental import pallas as pl
from jax.experimental.pallas import tpu as pltpu

# sizes implied by ABIDINOModel.forward (backbone_out.reshape(N, 8, 32, E))
GRID_H, GRID_W = 8, 32
NUM_TOKENS = GRID_H * GRID_W          # 256
NUM_CLUSTERS = 26
PACK_W = 128                          # lane-dense packed epilogue width


# ---------------------------------------------------------------------------
# bilinear-interp matrices matching F.interpolate(mode='bilinear',
# align_corners=False); the full resize matrix is cached so it is built once
# (and becomes a baked constant under jit).
# ---------------------------------------------------------------------------
def _bilinear_matrix(out_size, in_size):
    scale = in_size / out_size
    i = np.arange(out_size, dtype=np.float64)
    src = np.maximum((i + 0.5) * scale - 0.5, 0.0)
    i0 = np.minimum(np.floor(src).astype(np.int64), in_size - 1)
    frac = src - i0
    i1 = np.minimum(i0 + 1, in_size - 1)
    m = np.zeros((out_size, in_size), dtype=np.float32)
    m[np.arange(out_size), i0] += (1.0 - frac).astype(np.float32)
    m[np.arange(out_size), i1] += frac.astype(np.float32)
    return m


@functools.lru_cache(maxsize=None)
def _resize_matrix_np(out_h, out_w, in_h, in_w):
    rh = _bilinear_matrix(out_h, in_h)
    rw = _bilinear_matrix(out_w, in_w)
    # (in_h*in_w, out_h*out_w) so that resized_flat = clusters_flat @ RT
    return np.kron(rh, rw).T.astype(np.float32)


# ---------------------------------------------------------------------------
# fused kernel: patch-embed + resize + normalize + bmm + head, per grid block
# ---------------------------------------------------------------------------
def _abidino_fused_kernel(tok_ref, cl_ref, rt_ref, pw_ref, pb_ref,
                          hw_ref, hb_ref, bo_ref, pk_ref):
    nb, T, C = tok_ref.shape
    K26 = cl_ref.shape[1]
    P = cl_ref.shape[2]
    E = pw_ref.shape[1]
    HD = hw_ref.shape[1]
    PW = pk_ref.shape[2]

    # --- synthetic backbone patch embed: K=C is tiny, keep it on the VPU as
    #     C unrolled broadcast FMAs instead of a padded-depth MXU matmul. ---
    t = tok_ref[...].reshape(nb * T, C)                       # (nb*T, C) f32
    w = pw_ref[...]                                           # (C, E)
    bo = t[:, 0:1] * w[0:1, :] + pb_ref[...]                  # (nb*T, E)
    for c in range(1, C):
        bo = bo + t[:, c:c + 1] * w[c:c + 1, :]
    bo_ref[...] = bo.reshape(nb, T, E)

    # --- bilinear resize of the cluster maps: ONE MXU matmul batched over all
    #     samples and clusters in this block (bf16 operands, f32 accumulate) ---
    c_flat = cl_ref[...].reshape(nb * K26, P).astype(jnp.bfloat16)
    resized = jnp.dot(c_flat, rt_ref[...],
                      preferred_element_type=jnp.float32)     # (nb*K26, T)
    sums = jnp.sum(resized, axis=-1, keepdims=True)           # (nb*K26, 1)
    # clusters & bilinear weights are non-negative, so sums == 0 iff the whole
    # row is zero; where(sums>0) reproduces torch's nan->0 without an extra
    # isnan/select pass and the reciprocal runs on the EUP slot.
    inv = jnp.where(sums > 0.0, pl.reciprocal(sums, approx=True), 0.0)
    normed = (resized * inv).astype(jnp.bfloat16).reshape(nb, K26, T)

    v = bo.astype(jnp.bfloat16).reshape(nb, T, E)

    # --- per-sample bmm as one batched MXU contraction over the block ---
    attn = jnp.einsum('bkt,bte->bke', normed, v,
                      preferred_element_type=jnp.float32)     # (nb, K26, E)

    # --- head linear: one matmul over all nb*K26 region vectors ---
    head = (jnp.dot(attn.reshape(nb * K26, E).astype(jnp.bfloat16),
                    hw_ref[...].astype(jnp.bfloat16),
                    preferred_element_type=jnp.float32)
            + hb_ref[...]).reshape(nb, K26, HD)               # (nb, K26, HD)

    # --- packed lane-dense epilogue: attn | head | sums | zero-pad ---
    pk_ref[:, :, 0:E] = attn
    pk_ref[:, :, E:E + HD] = head
    pk_ref[:, :, E + HD:E + HD + 1] = sums.reshape(nb, K26, 1)
    pk_ref[:, :, E + HD + 1:] = jnp.zeros((nb, K26, PW - (E + HD + 1)),
                                          jnp.float32)


def abidino_fused(tokens, clusters_flat, rt, patch_w, patch_b, head_w, head_b):
    N, T, C = tokens.shape
    _, K26, P = clusters_flat.shape
    E = patch_w.shape[1]
    HD = head_w.shape[1]
    assert E + HD + 1 <= PACK_W

    # split samples into 2 "parallel" blocks so a megacore part can use both TCs
    n_blocks = 2 if (N % 2 == 0 and N >= 2) else 1
    nb = N // n_blocks

    return pl.pallas_call(
        _abidino_fused_kernel,
        out_shape=(jax.ShapeDtypeStruct((N, T, E), jnp.float32),
                   jax.ShapeDtypeStruct((N, K26, PACK_W), jnp.float32)),
        grid_spec=pltpu.PrefetchScalarGridSpec(
            num_scalar_prefetch=0,
            grid=(n_blocks,),
            in_specs=[
                pl.BlockSpec((nb, T, C), lambda i: (i, 0, 0)),
                pl.BlockSpec((nb, K26, P), lambda i: (i, 0, 0)),
                pl.BlockSpec((P, T), lambda i: (0, 0)),
                pl.BlockSpec((C, E), lambda i: (0, 0)),
                pl.BlockSpec((1, E), lambda i: (0, 0)),
                pl.BlockSpec((E, HD), lambda i: (0, 0)),
                pl.BlockSpec((1, HD), lambda i: (0, 0)),
            ],
            out_specs=[
                pl.BlockSpec((nb, T, E), lambda i: (i, 0, 0)),
                pl.BlockSpec((nb, K26, PACK_W), lambda i: (i, 0, 0)),
            ]),
        compiler_params=pltpu.CompilerParams(
            dimension_semantics=("parallel",)),
    )(tokens, clusters_flat, rt, patch_w,
      patch_b.reshape(1, E), head_w, head_b.reshape(1, HD))


# ---------------------------------------------------------------------------
# params for the synthetic linear backbone + head
# ---------------------------------------------------------------------------
def init_params(key, in_ch, embed_dim, head_dim):
    k1, k2, k3 = jax.random.split(key, 3)
    return {
        "patch_w": 0.5 * jax.random.normal(k1, (in_ch, embed_dim), jnp.float32),
        "patch_b": jnp.zeros((embed_dim,), jnp.float32),
        "head_w": 0.5 * jax.random.normal(k2, (embed_dim, head_dim), jnp.float32),
        "head_b": 0.1 * jax.random.normal(k3, (head_dim,), jnp.float32),
    }


# ---------------------------------------------------------------------------
# forward (clusters is not None branch of ABIDINOModel.forward)
# ---------------------------------------------------------------------------
def abidino_forward(params, x, clusters, metrics=None, target_mask=None,
                    epoch=0):
    # TODO(synk): clusters=None branch (Segmentation head + host-side
    # label_cluster() / affine_grid / grid_sample) has no clean Pallas
    # equivalent; only the clusters-provided branch is implemented.
    x1, x2 = x[:, 1], x[:, 2]                           # (B, C, H, W), NCHW
    imgs = jnp.concatenate([x1, x2], axis=0)            # (N, C, H, W)
    N, C, Himg, Wimg = imgs.shape
    assert (Himg, Wimg) == (GRID_H, GRID_W)

    # NCHW -> token-major channels-last; the reference's
    # (N,E,8,32) <-> (N,256,E) permutes inside attention() cancel out.
    tokens = jnp.transpose(imgs, (0, 2, 3, 1)).reshape(N, NUM_TOKENS, C)

    _, K26, Hc, Wc = clusters.shape
    clusters_flat = clusters.reshape(N, K26, Hc * Wc)
    rt = jnp.asarray(_resize_matrix_np(GRID_H, GRID_W, Hc, Wc),
                     dtype=jnp.bfloat16)                # cached constant

    E = params["patch_w"].shape[1]
    HD = params["head_w"].shape[1]

    backbone_out, packed = abidino_fused(
        tokens, clusters_flat, rt, params["patch_w"], params["patch_b"],
        params["head_w"], params["head_b"])

    attn_vecs = packed[:, :, :E]                        # (N, 26, E)
    region_out = packed[:, :, E:E + HD]                 # (N, 26, HD)
    sums = packed[:, :, E + HD]                         # (N, 26)
    index = sums > 0

    length = jnp.clip(jnp.sum(index, axis=1), 3, NUM_CLUSTERS)[:, None][: N // 2]
    gridv = jnp.arange(0, NUM_CLUSTERS)[None, :]
    new_index = gridv <= length                         # (N//2, 26)

    # region_f = reshape(N,8,32,E).permute(0,3,1,2)
    region_f = jnp.transpose(backbone_out.reshape(N, GRID_H, GRID_W, E),
                             (0, 3, 1, 2))

    # TODO(synk): torch's boolean-mask gather region_attention_out[new_index]
    # has a data-dependent output length; the head is applied to all N*26
    # region vectors in-kernel and new_index is returned for selection.
    return {"instances_view": region_out, "feature": region_f,
            "index": new_index, "attn_vecs": attn_vecs}


# ---------------------------------------------------------------------------
if __name__ == "__main__":
    key = jax.random.PRNGKey(0)
    kp, kx, kc = jax.random.split(key, 3)

    B, V, C = 2, 3, 4                # batch, views (x[:,1], x[:,2] used), chans
    E, HEAD = 32, 16                 # embed dim, head output dim
    Hc, Wc = 16, 64                  # cluster map resolution (resized to 8x32)

    params = init_params(kp, C, E, HEAD)
    x = jax.random.normal(kx, (B, V, C, GRID_H, GRID_W), jnp.float32)
    clusters = jax.random.uniform(kc, (2 * B, NUM_CLUSTERS, Hc, Wc),
                                  jnp.float32)
    # zero out some cluster channels to exercise the sums==0 (nan -> 0) path
    clusters = clusters * (jnp.arange(NUM_CLUSTERS) < 22)[None, :, None, None]

    fwd = jax.jit(abidino_forward)
    out = fwd(params, x, clusters)
    jax.block_until_ready(out)

    # pure-JAX f32 reference of the same math (highest precision)
    N = 2 * B
    hp = jax.lax.Precision.HIGHEST
    imgs = jnp.concatenate([x[:, 1], x[:, 2]], axis=0)
    toks = jnp.transpose(imgs, (0, 2, 3, 1)).reshape(-1, C)
    bo_ref = (jnp.dot(toks, params["patch_w"], precision=hp)
              + params["patch_b"]).reshape(N, NUM_TOKENS, E)
    rh = jnp.asarray(_bilinear_matrix(GRID_H, Hc))
    rw = jnp.asarray(_bilinear_matrix(GRID_W, Wc))
    rz = jnp.einsum("nkyx,hy,wx->nkhw", clusters, rh, rw, precision=hp
                    ).reshape(N, NUM_CLUSTERS, -1)
    sums_ref = rz.sum(-1)
    nc = rz / sums_ref[..., None]
    nc = jnp.where(jnp.isnan(nc), 0.0, nc)
    attn_ref = jnp.einsum("nkp,npe->nke", nc, bo_ref, precision=hp)
    ro_ref = (jnp.dot(attn_ref.reshape(-1, E), params["head_w"], precision=hp)
              + params["head_b"]).reshape(N, NUM_CLUSTERS, HEAD)
    feat_ref = jnp.transpose(bo_ref.reshape(N, GRID_H, GRID_W, E),
                             (0, 3, 1, 2))

    np.testing.assert_allclose(np.asarray(out["feature"]),
                               np.asarray(feat_ref), rtol=1e-5, atol=1e-5)
    np.testing.assert_allclose(np.asarray(out["attn_vecs"]),
                               np.asarray(attn_ref), rtol=2e-2, atol=5e-3)
    np.testing.assert_allclose(np.asarray(out["instances_view"]),
                               np.asarray(ro_ref), rtol=2e-2, atol=5e-3)
    assert out["index"].shape == (N // 2, NUM_CLUSTERS)

    print("KERNEL_OK")
</pallas_src>

<mosaic_0001>
module attributes {stable_mosaic.version = 11 : i64} {
  func.func @_abidino_fused_kernel(%arg0: i32, %arg1: memref<2x256x4xf32, #tpu.memory_space<vmem>>, %arg2: memref<2x26x1024xf32, #tpu.memory_space<vmem>>, %arg3: memref<1024x256xbf16, #tpu.memory_space<vmem>>, %arg4: memref<4x32xf32, #tpu.memory_space<vmem>>, %arg5: memref<1x32xf32, #tpu.memory_space<vmem>>, %arg6: memref<32x16xf32, #tpu.memory_space<vmem>>, %arg7: memref<1x16xf32, #tpu.memory_space<vmem>>, %arg8: memref<2x256x32xf32, #tpu.memory_space<vmem>>, %arg9: memref<2x26x128xf32, #tpu.memory_space<vmem>>) attributes {dimension_semantics = [#tpu.dimension_semantics<parallel>], iteration_bounds = array<i64: 2>, scalar_prefetch = 0 : i64, scratch_operands = 0 : i64, tpu.core_type = #tpu.core_type<tc>, window_params = [{transform_indices = @transform_0, window_bounds = array<i64: 2, 256, 4>}, {transform_indices = @transform_1, window_bounds = array<i64: 2, 26, 1024>}, {pipeline_mode = #tpu.pipeline_mode<synchronous>, transform_indices = @transform_2, window_bounds = array<i64: 1024, 256>}, {pipeline_mode = #tpu.pipeline_mode<synchronous>, transform_indices = @transform_3, window_bounds = array<i64: 4, 32>}, {pipeline_mode = #tpu.pipeline_mode<synchronous>, transform_indices = @transform_4, window_bounds = array<i64: 1, 32>}, {pipeline_mode = #tpu.pipeline_mode<synchronous>, transform_indices = @transform_5, window_bounds = array<i64: 32, 16>}, {pipeline_mode = #tpu.pipeline_mode<synchronous>, transform_indices = @transform_6, window_bounds = array<i64: 1, 16>}, {transform_indices = @transform_7, window_bounds = array<i64: 2, 256, 32>}, {transform_indices = @transform_8, window_bounds = array<i64: 2, 26, 128>}]} {
    %c0 = arith.constant 0 : index
    %c0_0 = arith.constant 0 : index
    %c0_1 = arith.constant 0 : index
    %0 = vector.load %arg1[%c0, %c0_0, %c0_1] : memref<2x256x4xf32, #tpu.memory_space<vmem>>, vector<2x256x4xf32>
    %1 = vector.shape_cast %0 : vector<2x256x4xf32> to vector<512x4xf32>
    %c0_2 = arith.constant 0 : index
    %c0_3 = arith.constant 0 : index
    %2 = vector.load %arg4[%c0_2, %c0_3] : memref<4x32xf32, #tpu.memory_space<vmem>>, vector<4x32xf32>
    %3 = vector.extract_strided_slice %1 {offsets = [0, 0], sizes = [512, 1], strides = [1, 1]} : vector<512x4xf32> to vector<512x1xf32>
    %4 = vector.extract_strided_slice %2 {offsets = [0, 0], sizes = [1, 32], strides = [1, 1]} : vector<4x32xf32> to vector<1x32xf32>
    %5 = vector.broadcast %3 : vector<512x1xf32> to vector<512x32xf32>
    %6 = vector.broadcast %4 : vector<1x32xf32> to vector<512x32xf32>
    %7 = arith.mulf %5, %6 : vector<512x32xf32>
    %c0_4 = arith.constant 0 : index
    %c0_5 = arith.constant 0 : index
    %8 = vector.load %arg5[%c0_4, %c0_5] : memref<1x32xf32, #tpu.memory_space<vmem>>, vector<1x32xf32>
    %9 = vector.broadcast %8 : vector<1x32xf32> to vector<512x32xf32>
    %10 = arith.addf %7, %9 : vector<512x32xf32>
    %11 = vector.extract_strided_slice %1 {offsets = [0, 1], sizes = [512, 1], strides = [1, 1]} : vector<512x4xf32> to vector<512x1xf32>
    %12 = vector.extract_strided_slice %2 {offsets = [1, 0], sizes = [1, 32], strides = [1, 1]} : vector<4x32xf32> to vector<1x32xf32>
    %13 = vector.broadcast %11 : vector<512x1xf32> to vector<512x32xf32>
    %14 = vector.broadcast %12 : vector<1x32xf32> to vector<512x32xf32>
    %15 = arith.mulf %13, %14 : vector<512x32xf32>
    %16 = arith.addf %10, %15 : vector<512x32xf32>
    %17 = vector.extract_strided_slice %1 {offsets = [0, 2], sizes = [512, 1], strides = [1, 1]} : vector<512x4xf32> to vector<512x1xf32>
    %18 = vector.extract_strided_slice %2 {offsets = [2, 0], sizes = [1, 32], strides = [1, 1]} : vector<4x32xf32> to vector<1x32xf32>
    %19 = vector.broadcast %17 : vector<512x1xf32> to vector<512x32xf32>
    %20 = vector.broadcast %18 : vector<1x32xf32> to vector<512x32xf32>
    %21 = arith.mulf %19, %20 : vector<512x32xf32>
    %22 = arith.addf %16, %21 : vector<512x32xf32>
    %23 = vector.extract_strided_slice %1 {offsets = [0, 3], sizes = [512, 1], strides = [1, 1]} : vector<512x4xf32> to vector<512x1xf32>
    %24 = vector.extract_strided_slice %2 {offsets = [3, 0], sizes = [1, 32], strides = [1, 1]} : vector<4x32xf32> to vector<1x32xf32>
    %25 = vector.broadcast %23 : vector<512x1xf32> to vector<512x32xf32>
    %26 = vector.broadcast %24 : vector<1x32xf32> to vector<512x32xf32>
    %27 = arith.mulf %25, %26 : vector<512x32xf32>
    %28 = arith.addf %22, %27 : vector<512x32xf32>
    %29 = vector.shape_cast %28 : vector<512x32xf32> to vector<2x256x32xf32>
    %c0_6 = arith.constant 0 : index
    %c0_7 = arith.constant 0 : index
    %c0_8 = arith.constant 0 : index
    %30 = vector.load %arg8[%c0_6, %c0_7, %c0_8] : memref<2x256x32xf32, #tpu.memory_space<vmem>>, vector<2x256x32xf32>
    tpu.vector_store %arg8[%c0_6, %c0_7, %c0_8], %29 {strides = array<i32>} : memref<2x256x32xf32, #tpu.memory_space<vmem>>, vector<2x256x32xf32>,
    %c0_9 = arith.constant 0 : index
    %c0_10 = arith.constant 0 : index
    %c0_11 = arith.constant 0 : index
    %31 = vector.load %arg2[%c0_9, %c0_10, %c0_11] : memref<2x26x1024xf32, #tpu.memory_space<vmem>>, vector<2x26x1024xf32>
    %32 = vector.shape_cast %31 : vector<2x26x1024xf32> to vector<52x1024xf32>
    %33 = arith.truncf %32 : vector<52x1024xf32> to vector<52x1024xbf16>
    %c0_12 = arith.constant 0 : index
    %c0_13 = arith.constant 0 : index
    %34 = vector.load %arg3[%c0_12, %c0_13] : memref<1024x256xbf16, #tpu.memory_space<vmem>>, vector<1024x256xbf16>
    %cst = arith.constant dense<0.000000e+00> : vector<52x256xf32>
    %35 = tpu.matmul %33, %34, %cst {dimension_numbers = #tpu.dot_dimension_numbers<[1], [0], [0], [1], [0, 0, 1, 1], [], []>} : vector<52x1024xbf16>, vector<1024x256xbf16>, vector<52x256xf32> -> vector<52x256xf32>
    %cst_14 = arith.constant dense<0.000000e+00> : vector<52xf32>
    %36 = vector.multi_reduction <add>, %35, %cst_14 [1] : vector<52x256xf32> to vector<52xf32>
    %37 = vector.shape_cast %36 : vector<52xf32> to vector<52x1xf32>
    %cst_15 = arith.constant 0.000000e+00 : f32
    %38 = vector.broadcast %cst_15 : f32 to vector<52x1xf32>
    %39 = arith.cmpf ogt, %37, %38 : vector<52x1xf32>
    %40 = tpu.reciprocal %37 {approx = true} : vector<52x1xf32> -> vector<52x1xf32>
    %cst_16 = arith.constant 0.000000e+00 : f32
    %41 = vector.broadcast %cst_16 : f32 to vector<52x1xf32>
    %42 = arith.select %39, %40, %41 : vector<52x1xi1>, vector<52x1xf32>
    %43 = vector.broadcast %42 : vector<52x1xf32> to vector<52x256xf32>
    %44 = arith.mulf %35, %43 : vector<52x256xf32>
    %45 = arith.truncf %44 : vector<52x256xf32> to vector<52x256xbf16>
    %46 = vector.shape_cast %45 : vector<52x256xbf16> to vector<2x26x256xbf16>
    %47 = arith.truncf %28 : vector<512x32xf32> to vector<512x32xbf16>
    %48 = vector.shape_cast %47 : vector<512x32xbf16> to vector<2x256x32xbf16>
    "tpu.trace_start"() <{level = 10 : i32, message = "bkt,bte->bke"}> : () -> ()
    %cst_17 = arith.constant dense<0.000000e+00> : vector<2x26x32xf32>
    %49 = tpu.matmul %46, %48, %cst_17 {dimension_numbers = #tpu.dot_dimension_numbers<[2], [1], [1], [2], [0, 0, 0, 1, 1, 2], [0], [0]>} : vector<2x26x256xbf16>, vector<2x256x32xbf16>, vector<2x26x32xf32> -> vector<2x26x32xf32>
    "tpu.trace_stop"() : () -> ()
    %50 = vector.shape_cast %49 : vector<2x26x32xf32> to vector<52x32xf32>
    %51 = arith.truncf %50 : vector<52x32xf32> to vector<52x32xbf16>
    %c0_18 = arith.constant 0 : index
    %c0_19 = arith.constant 0 : index
    %52 = vector.load %arg6[%c0_18, %c0_19] : memref<32x16xf32, #tpu.memory_space<vmem>>, vector<32x16xf32>
    %53 = arith.truncf %52 : vector<32x16xf32> to vector<32x16xbf16>
    %cst_20 = arith.constant dense<0.000000e+00> : vector<52x16xf32>
    %54 = tpu.matmul %51, %53, %cst_20 {dimension_numbers = #tpu.dot_dimension_numbers<[1], [0], [0], [1], [0, 0, 1, 1], [], []>} : vector<52x32xbf16>, vector<32x16xbf16>, vector<52x16xf32> -> vector<52x16xf32>
    %c0_21 = arith.constant 0 : index
    %c0_22 = arith.constant 0 : index
    %55 = vector.load %arg7[%c0_21, %c0_22] : memref<1x16xf32, #tpu.memory_space<vmem>>, vector<1x16xf32>
    %56 = vector.broadcast %55 : vector<1x16xf32> to vector<52x16xf32>
    %57 = arith.addf %54, %56 : vector<52x16xf32>
    %58 = vector.shape_cast %57 : vector<52x16xf32> to vector<2x26x16xf32>
    %c0_23 = arith.constant 0 : index
    %c0_24 = arith.constant 0 : index
    %c0_25 = arith.constant 0 : index
    %59 = vector.load %arg9[%c0_23, %c0_24, %c0_25] : memref<2x26x128xf32, #tpu.memory_space<vmem>>, vector<2x26x32xf32>
    tpu.vector_store %arg9[%c0_23, %c0_24, %c0_25], %49 {strides = array<i32>} : memref<2x26x128xf32, #tpu.memory_space<vmem>>, vector<2x26x32xf32>,
    %c0_26 = arith.constant 0 : index
    %c0_27 = arith.constant 0 : index
    %c32 = arith.constant 32 : index
    %60 = vector.load %arg9[%c0_26, %c0_27, %c32] : memref<2x26x128xf32, #tpu.memory_space<vmem>>, vector<2x26x16xf32>
    tpu.vector_store %arg9[%c0_26, %c0_27, %c32], %58 {strides = array<i32>} : memref<2x26x128xf32, #tpu.memory_space<vmem>>, vector<2x26x16xf32>,
    %61 = vector.shape_cast %37 : vector<52x1xf32> to vector<2x26x1xf32>
    %c0_28 = arith.constant 0 : index
    %c0_29 = arith.constant 0 : index
    %c48 = arith.constant 48 : index
    %62 = vector.load %arg9[%c0_28, %c0_29, %c48] : memref<2x26x128xf32, #tpu.memory_space<vmem>>, vector<2x26x1xf32>
    tpu.vector_store %arg9[%c0_28, %c0_29, %c48], %61 {strides = array<i32>} : memref<2x26x128xf32, #tpu.memory_space<vmem>>, vector<2x26x1xf32>,
    %cst_30 = arith.constant 0.000000e+00 : f32
    %63 = vector.broadcast %cst_30 : f32 to vector<2x26x79xf32>
    %c0_31 = arith.constant 0 : index
    %c0_32 = arith.constant 0 : index
    %c49 = arith.constant 49 : index
    %64 = vector.load %arg9[%c0_31, %c0_32, %c49] : memref<2x26x128xf32, #tpu.memory_space<vmem>>, vector<2x26x79xf32>
    tpu.vector_store %arg9[%c0_31, %c0_32, %c49], %63 {strides = array<i32>} : memref<2x26x128xf32, #tpu.memory_space<vmem>>, vector<2x26x79xf32>,
    return
  }
  func.func @transform_0(%arg0: i32) -> (i32, i32, i32) {
    %c0_i32 = arith.constant 0 : i32
    %c0_i32_0 = arith.constant 0 : i32
    %c0_i32_1 = arith.constant 0 : i32
    return %arg0, %c0_i32, %c0_i32_0 : i32, i32, i32
  }
  func.func @transform_1(%arg0: i32) -> (i32, i32, i32) {
    %c0_i32 = arith.constant 0 : i32
    %c0_i32_0 = arith.constant 0 : i32
    %c0_i32_1 = arith.constant 0 : i32
    return %arg0, %c0_i32, %c0_i32_0 : i32, i32, i32
  }
  func.func @transform_2(%arg0: i32) -> (i32, i32) {
    %c0_i32 = arith.constant 0 : i32
    %c0_i32_0 = arith.constant 0 : i32
    %c0_i32_1 = arith.constant 0 : i32
    return %c0_i32, %c0_i32_0 : i32, i32
  }
  func.func @transform_3(%arg0: i32) -> (i32, i32) {
    %c0_i32 = arith.constant 0 : i32
    %c0_i32_0 = arith.constant 0 : i32
    %c0_i32_1 = arith.constant 0 : i32
    return %c0_i32, %c0_i32_0 : i32, i32
  }
  func.func @transform_4(%arg0: i32) -> (i32, i32) {
    %c0_i32 = arith.constant 0 : i32
    %c0_i32_0 = arith.constant 0 : i32
    %c0_i32_1 = arith.constant 0 : i32
    return %c0_i32, %c0_i32_0 : i32, i32
  }
  func.func @transform_5(%arg0: i32) -> (i32, i32) {
    %c0_i32 = arith.constant 0 : i32
    %c0_i32_0 = arith.constant 0 : i32
    %c0_i32_1 = arith.constant 0 : i32
    return %c0_i32, %c0_i32_0 : i32, i32
  }
  func.func @transform_6(%arg0: i32) -> (i32, i32) {
    %c0_i32 = arith.constant 0 : i32
    %c0_i32_0 = arith.constant 0 : i32
    %c0_i32_1 = arith.constant 0 : i32
    return %c0_i32, %c0_i32_0 : i32, i32
  }
  func.func @transform_7(%arg0: i32) -> (i32, i32, i32) {
    %c0_i32 = arith.constant 0 : i32
    %c0_i32_0 = arith.constant 0 : i32
    %c0_i32_1 = arith.constant 0 : i32
    return %arg0, %c0_i32, %c0_i32_0 : i32, i32, i32
  }
  func.func @transform_8(%arg0: i32) -> (i32, i32, i32) {
    %c0_i32 = arith.constant 0 : i32
    %c0_i32_0 = arith.constant 0 : i32
    %c0_i32_1 = arith.constant 0 : i32
    return %arg0, %c0_i32, %c0_i32_0 : i32, i32, i32
  }
}

</mosaic_0001>

<llo_original>
// kernel: abidino_forward.1
$region0: #{abidino_forward.1}
  #allocation0 [shape = 'u32[]', space=smem, size = 0x4, offset = 0x4, fixed_abs, tag = 'smem constant byte address 0x4 - core index']
  #allocation1 [shape = 'u32[144,128]{1,0:T(1,128)}', space=vmem, size = 0x12000, scoped, tag = 'internal scratch']
  %s0 = inlined_call_operand.vmem [shape: f32[4,256,4], index: 0, kind: input, shape index: {}]
  %s1 = inlined_call_operand.vmem [shape: f32[4,26,1024], index: 1, kind: input, shape index: {}]
  %s2 = inlined_call_operand.vmem [shape: bf16[1024,256], index: 2, kind: input, shape index: {}]
  %s3 = inlined_call_operand.vmem [shape: f32[4,32], index: 3, kind: input, shape index: {}]
  %s4 = inlined_call_operand.vmem [shape: f32[1,32], index: 4, kind: input, shape index: {}]
  %s5 = inlined_call_operand.vmem [shape: f32[32,16], index: 5, kind: input, shape index: {}]
  %s6 = inlined_call_operand.vmem [shape: f32[1,16], index: 6, kind: input, shape index: {}]
  %s7 = inlined_call_operand.vmem [shape: f32[4,256,32], index: 7, kind: output, shape index: {0}]
  %s8 = inlined_call_operand.vmem [shape: f32[4,26,128], index: 8, kind: output, shape index: {1}]
  %9 = xla_tuple %s7, %s8
  %s10 = sld [smem:[#allocation0]]
  $region69: #{abidino_forward.1} parent=0
    _
  %s12 = ssub.s32 1, %s10
  %s13 = scalar_select 0, %s12, %s10
  loop: start=0, step=1, limit=4
  $region2: #{abidino_forward.1} parent=0 // loop_pre_header
    _
  $region3: #{abidino_forward.1} parent=0 // loop_header
    %s15 = sphi 0, %s19
    %p16 = scmp.ge.s32.totalorder %s15, 4
    %s25 = sphi 0, %s27
    %s28 = sphi 0, %s25
    %s29 = sphi 0, %s28
    %s45 = sphi 0, %s29
    %s51 = sphi 0, %s53
    %s54 = sphi 0, %s51
    %s55 = sphi 0, %s54
    %s71 = sphi 0, %s55
    %s75 = sphi 0, %s75
    %s77 = sphi 0, %s75
    %s78 = sphi 0, %s77
    %s92 = sphi 0, %s78
    %s96 = sphi 0, %s96
    %s98 = sphi 0, %s96
    %s99 = sphi 0, %s98
    %s113 = sphi 0, %s99
    %s117 = sphi 0, %s117
    %s119 = sphi 0, %s117
    %s120 = sphi 0, %s119
    %s134 = sphi 0, %s120
    %s138 = sphi 0, %s138
    %s140 = sphi 0, %s138
    %s141 = sphi 0, %s140
    %s155 = sphi 0, %s141
    %s159 = sphi 0, %s159
    %s161 = sphi 0, %s159
    %s162 = sphi 0, %s161
    %s176 = sphi 0, %s162
    %s182 = sphi 0, %s184
    %s185 = sphi 0, %s182
    %s186 = sphi 0, %s185
    %s202 = sphi 0, %s186
    %s208 = sphi 0, %s210
    %s211 = sphi 0, %s208
    %s212 = sphi 0, %s211
    %s228 = sphi 0, %s212
  $region4: #{abidino_forward.1} parent=0 // loop_header_branch
    %18 = sbr.rel (%p16) target = $region8
  $region5: #{abidino_forward.1} parent=0 // loop_body
    %s20 = ssub.s32 %s15, 1
    %s21 = ssub.s32 %s15, 2
    %s22 = sadd.s32 %s15, 1
    %s23 = ssub.s32 %s15, %s22
    %p24 = scmp.eq.s32.totalorder %s23, 0
    %s26 = sadd.s32 %s25, 1
    %s27 = scalar_select %p24, %s25, %s26
    %p30 = pneg %p24
    %p31 = scmp.eq.s32.totalorder %s15, 1
    %p32 = por %p30, %p31
    %p33 = scmp.ne.s32.totalorder %s25, %s28
    %p34 = scmp.eq.s32.totalorder %s15, 0
    %p35 = por %p33, %p34
    %p36 = scmp.ne.s32.totalorder %s25, %s28
    %p37 = scmp.eq.s32.totalorder %s20, 1
    %p38 = por %p36, %p37
    %p39 = scmp.ne.s32.totalorder %s28, %s29
    %p40 = scmp.eq.s32.totalorder %s20, 0
    %p41 = por %p39, %p40
    %p42 = scmp.ne.s32.totalorder %s28, %s29
    %p43 = scmp.eq.s32.totalorder %s21, 1
    %p44 = por %p42, %p43
    %p46 = scmp.ne.s32.totalorder %s29, %s45
    %p47 = scmp.eq.s32.totalorder %s21, 0
    %p48 = por %p46, %p47
    %s49 = ssub.s32 %s15, %s22
    %p50 = scmp.eq.s32.totalorder %s49, 0
    %s52 = sadd.s32 %s51, 1
    %s53 = scalar_select %p50, %s51, %s52
    %p56 = pneg %p50
    %p57 = scmp.eq.s32.totalorder %s15, 1
    %p58 = por %p56, %p57
    %p59 = scmp.ne.s32.totalorder %s51, %s54
    %p60 = scmp.eq.s32.totalorder %s15, 0
    %p61 = por %p59, %p60
    %p62 = scmp.ne.s32.totalorder %s51, %s54
    %p63 = scmp.eq.s32.totalorder %s20, 1
    %p64 = por %p62, %p63
    %p65 = scmp.ne.s32.totalorder %s54, %s55
    %p66 = scmp.eq.s32.totalorder %s20, 0
    %p67 = por %p65, %p66
    %p68 = scmp.ne.s32.totalorder %s54, %s55
    %p69 = scmp.eq.s32.totalorder %s21, 1
    %p70 = por %p68, %p69
    %p72 = scmp.ne.s32.totalorder %s55, %s71
    %p73 = scmp.eq.s32.totalorder %s21, 0
    %p74 = por %p72, %p73
    %s76 = sadd.s32 %s75, 1
    %p79 = scmp.eq.s32.totalorder %s15, 1
    %p80 = scmp.ne.s32.totalorder %s75, %s77
    %p81 = scmp.eq.s32.totalorder %s15, 0
    %p82 = por %p80, %p81
    %p83 = scmp.ne.s32.totalorder %s75, %s77
    %p84 = scmp.eq.s32.totalorder %s20, 1
    %p85 = por %p83, %p84
    %p86 = scmp.ne.s32.totalorder %s77, %s78
    %p87 = scmp.eq.s32.totalorder %s20, 0
    %p88 = por %p86, %p87
    %p89 = scmp.ne.s32.totalorder %s77, %s78
    %p90 = scmp.eq.s32.totalorder %s21, 1
    %p91 = por %p89, %p90
    %p93 = scmp.ne.s32.totalorder %s78, %s92
    %p94 = scmp.eq.s32.totalorder %s21, 0
    %p95 = por %p93, %p94
    %s97 = sadd.s32 %s96, 1
    %p100 = scmp.eq.s32.totalorder %s15, 1
    %p101 = scmp.ne.s32.totalorder %s96, %s98
    %p102 = scmp.eq.s32.totalorder %s15, 0
    %p103 = por %p101, %p102
    %p104 = scmp.ne.s32.totalorder %s96, %s98
    %p105 = scmp.eq.s32.totalorder %s20, 1
    %p106 = por %p104, %p105
    %p107 = scmp.ne.s32.totalorder %s98, %s99
    %p108 = scmp.eq.s32.totalorder %s20, 0
    %p109 = por %p107, %p108
    %p110 = scmp.ne.s32.totalorder %s98, %s99
    %p111 = scmp.eq.s32.totalorder %s21, 1
    %p112 = por %p110, %p111
    %p114 = scmp.ne.s32.totalorder %s99, %s113
    %p115 = scmp.eq.s32.totalorder %s21, 0
    %p116 = por %p114, %p115
    %s118 = sadd.s32 %s117, 1
    %p121 = scmp.eq.s32.totalorder %s15, 1
    %p122 = scmp.ne.s32.totalorder %s117, %s119
    %p123 = scmp.eq.s32.totalorder %s15, 0
    %p124 = por %p122, %p123
    %p125 = scmp.ne.s32.totalorder %s117, %s119
    %p126 = scmp.eq.s32.totalorder %s20, 1
    %p127 = por %p125, %p126
    %p128 = scmp.ne.s32.totalorder %s119, %s120
    %p129 = scmp.eq.s32.totalorder %s20, 0
    %p130 = por %p128, %p129
    %p131 = scmp.ne.s32.totalorder %s119, %s120
    %p132 = scmp.eq.s32.totalorder %s21, 1
    %p133 = por %p131, %p132
    %p135 = scmp.ne.s32.totalorder %s120, %s134
    %p136 = scmp.eq.s32.totalorder %s21, 0
    %p137 = por %p135, %p136
    %s139 = sadd.s32 %s138, 1
    %p142 = scmp.eq.s32.totalorder %s15, 1
    %p143 = scmp.ne.s32.totalorder %s138, %s140
    %p144 = scmp.eq.s32.totalorder %s15, 0
    %p145 = por %p143, %p144
    %p146 = scmp.ne.s32.totalorder %s138, %s140
    %p147 = scmp.eq.s32.totalorder %s20, 1
    %p148 = por %p146, %p147
    %p149 = scmp.ne.s32.totalorder %s140, %s141
    %p150 = scmp.eq.s32.totalorder %s20, 0
    %p151 = por %p149, %p150
    %p152 = scmp.ne.s32.totalorder %s140, %s141
    %p153 = scmp.eq.s32.totalorder %s21, 1
    %p154 = por %p152, %p153
    %p156 = scmp.ne.s32.totalorder %s141, %s155
    %p157 = scmp.eq.s32.totalorder %s21, 0
    %p158 = por %p156, %p157
    %s160 = sadd.s32 %s159, 1
    %p163 = scmp.eq.s32.totalorder %s15, 1
    %p164 = scmp.ne.s32.totalorder %s159, %s161
    %p165 = scmp.eq.s32.totalorder %s15, 0
    %p166 = por %p164, %p165
    %p167 = scmp.ne.s32.totalorder %s159, %s161
    %p168 = scmp.eq.s32.totalorder %s20, 1
    %p169 = por %p167, %p168
    %p170 = scmp.ne.s32.totalorder %s161, %s162
    %p171 = scmp.eq.s32.totalorder %s20, 0
    %p172 = por %p170, %p171
    %p173 = scmp.ne.s32.totalorder %s161, %s162
    %p174 = scmp.eq.s32.totalorder %s21, 1
    %p175 = por %p173, %p174
    %p177 = scmp.ne.s32.totalorder %s162, %s176
    %p178 = scmp.eq.s32.totalorder %s21, 0
    %p179 = por %p177, %p178
    %s180 = ssub.s32 %s15, %s22
    %p181 = scmp.eq.s32.totalorder %s180, 0
    %s183 = sadd.s32 %s182, 1
    %s184 = scalar_select %p181, %s182, %s183
    %p187 = pneg %p181
    %p188 = scmp.eq.s32.totalorder %s15, 1
    %p189 = por %p187, %p188
    %p190 = scmp.ne.s32.totalorder %s182, %s185
    %p191 = scmp.eq.s32.totalorder %s15, 0
    %p192 = por %p190, %p191
    %p193 = scmp.ne.s32.totalorder %s182, %s185
    %p194 = scmp.eq.s32.totalorder %s20, 1
    %p195 = por %p193, %p194
    %p196 = scmp.ne.s32.totalorder %s185, %s186
    %p197 = scmp.eq.s32.totalorder %s20, 0
    %p198 = por %p196, %p197
    %p199 = scmp.ne.s32.totalorder %s185, %s186
    %p200 = scmp.eq.s32.totalorder %s21, 1
    %p201 = por %p199, %p200
    %p203 = scmp.ne.s32.totalorder %s186, %s202
    %p204 = scmp.eq.s32.totalorder %s21, 0
    %p205 = por %p203, %p204
    %s206 = ssub.s32 %s15, %s22
    %p207 = scmp.eq.s32.totalorder %s206, 0
    %s209 = sadd.s32 %s208, 1
    %s210 = scalar_select %p207, %s208, %s209
    %p213 = pneg %p207
    %p214 = scmp.eq.s32.totalorder %s15, 1
    %p215 = por %p213, %p214
    %p216 = scmp.ne.s32.totalorder %s208, %s211
    %p217 = scmp.eq.s32.totalorder %s15, 0
    %p218 = por %p216, %p217
    %p219 = scmp.ne.s32.totalorder %s208, %s211
    %p220 = scmp.eq.s32.totalorder %s20, 1
    %p221 = por %p219, %p220
    %p222 = scmp.ne.s32.totalorder %s211, %s212
    %p223 = scmp.eq.s32.totalorder %s20, 0
    %p224 = por %p222, %p223
    %p225 = scmp.ne.s32.totalorder %s211, %s212
    %p226 = scmp.eq.s32.totalorder %s21, 1
    %p227 = por %p225, %p226
    %p229 = scmp.ne.s32.totalorder %s212, %s228
    %p230 = scmp.eq.s32.totalorder %s21, 0
    %p231 = por %p229, %p230
    %p232 = scmp.le.s32.totalorder 1, %s15
    %p233 = scmp.lt.s32.totalorder %s15, 3
    %p234 = pnand %p232, %p233
    %p235 = pneg %p234
    // Predicated region
    $region9: #{abidino_forward.1} parent=5 // pred_check
      _
    $region10: #{abidino_forward.1} parent=5 // pred_check_branch
      %237 = sbr.rel (%p234) target = $region12
    $region11: #{abidino_forward.1} parent=5 // pred_region
      %s238 = ssub.s32 %s15, 1
      // Predicated region
      $region13: #{abidino_forward.1} parent=11 // pred_check
        %p239 = pneg %p88
      $region14: #{abidino_forward.1} parent=11 // pred_check_branch
        %241 = sbr.rel (%p239) target = $region16
      $region15: #{abidino_forward.1} parent=11 // pred_region
        _
      $region16: #{abidino_forward.1} parent=11 // pred_fallthru
        _
      // Predicated region
      $region17: #{abidino_forward.1} parent=11 // pred_check
        %p242 = pneg %p109
      $region18: #{abidino_forward.1} parent=11 // pred_check_branch
        %244 = sbr.rel (%p242) target = $region20
      $region19: #{abidino_forward.1} parent=11 // pred_region
        _
      $region20: #{abidino_forward.1} parent=11 // pred_fallthru
        _
      // Predicated region
      $region21: #{abidino_forward.1} parent=11 // pred_check
        %p245 = pneg %p130
      $region22: #{abidino_forward.1} parent=11 // pred_check_branch
        %247 = sbr.rel (%p245) target = $region24
      $region23: #{abidino_forward.1} parent=11 // pred_region
        _
      $region24: #{abidino_forward.1} parent=11 // pred_fallthru
        _
      // Predicated region
      $region25: #{abidino_forward.1} parent=11 // pred_check
        %p248 = pneg %p151
      $region26: #{abidino_forward.1} parent=11 // pred_check_branch
        %250 = sbr.rel (%p248) target = $region28
      $region27: #{abidino_forward.1} parent=11 // pred_region
        _
      $region28: #{abidino_forward.1} parent=11 // pred_fallthru
        _
      // Predicated region
      $region29: #{abidino_forward.1} parent=11 // pred_check
        %p251 = pneg %p172
      $region30: #{abidino_forward.1} parent=11 // pred_check_branch
        %253 = sbr.rel (%p251) target = $region32
      $region31: #{abidino_forward.1} parent=11 // pred_region
        _
      $region32: #{abidino_forward.1} parent=11 // pred_fallthru
        _
    $region12: #{abidino_forward.1} parent=5 // pred_fallthru
      _
    %p254 = scmp.lt.s32.totalorder %s15, 2
    // Predicated region
    $region33: #{abidino_forward.1} parent=5 // pred_check
      %p255 = pneg %p254
    $region34: #{abidino_forward.1} parent=5 // pred_check_branch
      %257 = sbr.rel (%p255) target = $region36
    $region35: #{abidino_forward.1} parent=5 // pred_region
      // Predicated region
      $region37: #{abidino_forward.1} parent=35 // pred_check
        %p258 = pneg %p35
      $region38: #{abidino_forward.1} parent=35 // pred_check_branch
        %260 = sbr.rel (%p258) target = $region40
      $region39: #{abidino_forward.1} parent=35 // pred_region
        %s261 = smul.u32 2, %s15
        %p262 = scmp.lt.s32.totalorder %s261, 3
        %s263 = scalar_select %p262, %s261, 3
        %s264 = smul.addr %s263, 32
        %s265 = smul.addr %s264, 8
        %s266 = scalar_lea.vmem %s0, %s265
        %s267 = smul.u32 2, %s15
      $region40: #{abidino_forward.1} parent=35 // pred_fallthru
        _
      // Predicated region
      $region41: #{abidino_forward.1} parent=35 // pred_check
        %p268 = pneg %p61
      $region42: #{abidino_forward.1} parent=35 // pred_check_branch
        %270 = sbr.rel (%p268) target = $region44
      $region43: #{abidino_forward.1} parent=35 // pred_region
        %s271 = smul.u32 2, %s15
        %p272 = scmp.lt.s32.totalorder %s271, 3
        %s273 = scalar_select %p272, %s271, 3
        %s274 = smul.addr %s273, 32
        %s275 = smul.addr %s274, 8
        %s276 = scalar_lea.vmem %s1, %s275
        %s277 = smul.u32 2, %s15
      $region44: #{abidino_forward.1} parent=35 // pred_fallthru
        _
    $region36: #{abidino_forward.1} parent=5 // pred_fallthru
      _
    %p278 = scmp.le.s32.totalorder 1, %s15
    %p279 = scmp.lt.s32.totalorder %s15, 3
    %p280 = pnand %p278, %p279
    %p281 = pneg %p280
    // Predicated region
    $region45: #{abidino_forward.1} parent=5 // pred_check
      _
    $region46: #{abidino_forward.1} parent=5 // pred_check_branch
      %283 = sbr.rel (%p280) target = $region48
    $region47: #{abidino_forward.1} parent=5 // pred_region
      %s284 = ssub.s32 %s15, 1
      %s285 = smul.u32 2, %s20
      %p286 = scmp.lt.s32.totalorder %s285, 3
      %s287 = scalar_select %p286, %s285, 3
      %s288 = smul.addr %s287, 32
      %s289 = smul.addr %s288, 8
      %s290 = scalar_lea.vmem %s0, %s289
      %p291 = pneg %p41
      %p292 = pneg %p38
      %s293 = smul.u32 2, %s20
      %p294 = scmp.lt.s32.totalorder %s293, 3
      %s295 = scalar_select %p294, %s293, 3
      %s296 = smul.addr %s295, 32
      %s297 = smul.addr %s296, 8
      %s298 = scalar_lea.vmem %s1, %s297
      %p299 = pneg %p67
      %p300 = pneg %p64
      %p301 = pneg %p88
      %p302 = pneg %p85
      %p303 = pneg %p109
      %p304 = pneg %p106
      %p305 = pneg %p130
      %p306 = pneg %p127
      %p307 = pneg %p151
      %p308 = pneg %p148
      %p309 = pneg %p172
      %p310 = pneg %p169
      %p311 = pneg %p198
      %p312 = pneg %p195
      %s313 = smul.u32 2, %s20
      %p314 = scmp.lt.s32.totalorder %s313, 3
      %s315 = scalar_select %p314, %s313, 3
      %s316 = smul.addr %s315, 32
      %s317 = smul.addr %s316, 8
      %s318 = scalar_lea.vmem %s7, %s317
      %p319 = pneg %p224
      %p320 = pneg %p221
      %s321 = smul.u32 2, %s20
      %p322 = scmp.lt.s32.totalorder %s321, 3
      %s323 = scalar_select %p322, %s321, 3
      %s324 = smul.addr %s323, 4
      %s325 = smul.addr %s324, 8
      %s326 = scalar_lea.vmem %s8, %s325
      %s327 = smul.u32 2, %s20
      %p328 = scmp.lt.s32.totalorder %s327, 3
      %s329 = scalar_select %p328, %s327, 3
      %s330 = smul.addr %s329, 32
      %s331 = smul.addr %s330, 8
      %s332 = scalar_lea.vmem %s0, %s331
      %s333 = smul.u32 2, %s20
      %s334 = smul.u32 2, %s20
      %p335 = scmp.lt.s32.totalorder %s334, 3
      %s336 = scalar_select %p335, %s334, 3
      %s337 = smul.addr %s336, 32
      %s338 = smul.addr %s337, 8
      %s339 = scalar_lea.vmem %s1, %s338
      %s340 = smul.u32 2, %s20
      %s341 = smul.u32 2, %s20
      %p342 = scmp.lt.s32.totalorder %s341, 3
      %s343 = scalar_select %p342, %s341, 3
      %s344 = smul.addr %s343, 32
      %s345 = smul.addr %s344, 8
      %s346 = scalar_lea.vmem %s7, %s345
      %s347 = smul.u32 2, %s20
      %s348 = smul.u32 2, %s20
      %p349 = scmp.lt.s32.totalorder %s348, 3
      %s350 = scalar_select %p349, %s348, 3
      %s351 = smul.addr %s350, 4
      %s352 = smul.addr %s351, 8
      %s353 = scalar_lea.vmem %s8, %s352
      %s354 = smul.u32 2, %s20
      %v356 = vld [vmem:[%s332] sm:$0xff]
      %v357 = vld [vmem:[%s332 + $0x8] sm:$0xff]
      %v358 = vld [vmem:[%s332 + $0x10] sm:$0xff]
      %v359 = vld [vmem:[%s332 + $0x18] sm:$0xff]
      %v360 = vld [vmem:[%s332 + $0x20] sm:$0xff]
      %v361 = vld [vmem:[%s332 + $0x28] sm:$0xff]
      %v362 = vld [vmem:[%s332 + $0x30] sm:$0xff]
      %v363 = vld [vmem:[%s332 + $0x38] sm:$0xff]
      %v364 = vld [vmem:[%s332 + $0x40] sm:$0xff]
      %v365 = vld [vmem:[%s332 + $0x48] sm:$0xff]
      %v366 = vld [vmem:[%s332 + $0x50] sm:$0xff]
      %v367 = vld [vmem:[%s332 + $0x58] sm:$0xff]
      %v368 = vld [vmem:[%s332 + $0x60] sm:$0xff]
      %v369 = vld [vmem:[%s332 + $0x68] sm:$0xff]
      %v370 = vld [vmem:[%s332 + $0x70] sm:$0xff]
      %v371 = vld [vmem:[%s332 + $0x78] sm:$0xff]
      %v372 = vld [vmem:[%s332 + $0x80] sm:$0xff]
      %v373 = vld [vmem:[%s332 + $0x88] sm:$0xff]
      %v374 = vld [vmem:[%s332 + $0x90] sm:$0xff]
      %v375 = vld [vmem:[%s332 + $0x98] sm:$0xff]
      %v376 = vld [vmem:[%s332 + $0xa0] sm:$0xff]
      %v377 = vld [vmem:[%s332 + $0xa8] sm:$0xff]
      %v378 = vld [vmem:[%s332 + $0xb0] sm:$0xff]
      %v379 = vld [vmem:[%s332 + $0xb8] sm:$0xff]
      %v380 = vld [vmem:[%s332 + $0xc0] sm:$0xff]
      %v381 = vld [vmem:[%s332 + $0xc8] sm:$0xff]
      %v382 = vld [vmem:[%s332 + $0xd0] sm:$0xff]
      %v383 = vld [vmem:[%s332 + $0xd8] sm:$0xff]
      %v384 = vld [vmem:[%s332 + $0xe0] sm:$0xff]
      %v385 = vld [vmem:[%s332 + $0xe8] sm:$0xff]
      %v386 = vld [vmem:[%s332 + $0xf0] sm:$0xff]
      %v387 = vld [vmem:[%s332 + $0xf8] sm:$0xff]
      %v388 = vld [vmem:[%s332 + $0x100] sm:$0xff]
      %v389 = vld [vmem:[%s332 + $0x108] sm:$0xff]
      %v390 = vld [vmem:[%s332 + $0x110] sm:$0xff]
      %v391 = vld [vmem:[%s332 + $0x118] sm:$0xff]
      %v392 = vld [vmem:[%s332 + $0x120] sm:$0xff]
      %v393 = vld [vmem:[%s332 + $0x128] sm:$0xff]
      %v394 = vld [vmem:[%s332 + $0x130] sm:$0xff]
      %v395 = vld [vmem:[%s332 + $0x138] sm:$0xff]
      %v396 = vld [vmem:[%s332 + $0x140] sm:$0xff]
      %v397 = vld [vmem:[%s332 + $0x148] sm:$0xff]
      %v398 = vld [vmem:[%s332 + $0x150] sm:$0xff]
      %v399 = vld [vmem:[%s332 + $0x158] sm:$0xff]
      %v400 = vld [vmem:[%s332 + $0x160] sm:$0xff]
      %v401 = vld [vmem:[%s332 + $0x168] sm:$0xff]
      %v402 = vld [vmem:[%s332 + $0x170] sm:$0xff]
      %v403 = vld [vmem:[%s332 + $0x178] sm:$0xff]
      %v404 = vld [vmem:[%s332 + $0x180] sm:$0xff]
      %v405 = vld [vmem:[%s332 + $0x188] sm:$0xff]
      %v406 = vld [vmem:[%s332 + $0x190] sm:$0xff]
      %v407 = vld [vmem:[%s332 + $0x198] sm:$0xff]
      %v408 = vld [vmem:[%s332 + $0x1a0] sm:$0xff]
      %v409 = vld [vmem:[%s332 + $0x1a8] sm:$0xff]
      %v410 = vld [vmem:[%s332 + $0x1b0] sm:$0xff]
      %v411 = vld [vmem:[%s332 + $0x1b8] sm:$0xff]
      %v412 = vld [vmem:[%s332 + $0x1c0] sm:$0xff]
      %v413 = vld [vmem:[%s332 + $0x1c8] sm:$0xff]
      %v414 = vld [vmem:[%s332 + $0x1d0] sm:$0xff]
      %v415 = vld [vmem:[%s332 + $0x1d8] sm:$0xff]
      %v416 = vld [vmem:[%s332 + $0x1e0] sm:$0xff]
      %v417 = vld [vmem:[%s332 + $0x1e8] sm:$0xff]
      %v418 = vld [vmem:[%s332 + $0x1f0] sm:$0xff]
      %v419 = vld [vmem:[%s332 + $0x1f8] sm:$0xff]
      %v420 = vld [vmem:[%s3] sm:$0xf]
      %422 = vset.pattern.permute.xlu0 0
      %423 = vperm.xlu0 %422, %v356
      %v424 = vpop.permute.xlu0 %423
      %427 = vset.pattern.permute.xlu0 0
      %428 = vperm.xlu0 %427, %v357
      %v429 = vpop.permute.xlu0 %428
      %432 = vset.pattern.permute.xlu0 0
      %433 = vperm.xlu0 %432, %v358
      %v434 = vpop.permute.xlu0 %433
      %437 = vset.pattern.permute.xlu0 0
      %438 = vperm.xlu0 %437, %v359
      %v439 = vpop.permute.xlu0 %438
      %442 = vset.pattern.permute.xlu0 0
      %443 = vperm.xlu0 %442, %v360
      %v444 = vpop.permute.xlu0 %443
      %447 = vset.pattern.permute.xlu0 0
      %448 = vperm.xlu0 %447, %v361
      %v449 = vpop.permute.xlu0 %448
      %452 = vset.pattern.permute.xlu0 0
      %453 = vperm.xlu0 %452, %v362
      %v454 = vpop.permute.xlu0 %453
      %457 = vset.pattern.permute.xlu0 0
      %458 = vperm.xlu0 %457, %v363
      %v459 = vpop.permute.xlu0 %458
      %462 = vset.pattern.permute.xlu0 0
      %463 = vperm.xlu0 %462, %v364
      %v464 = vpop.permute.xlu0 %463
      %467 = vset.pattern.permute.xlu0 0
      %468 = vperm.xlu0 %467, %v365
      %v469 = vpop.permute.xlu0 %468
      %472 = vset.pattern.permute.xlu0 0
      %473 = vperm.xlu0 %472, %v366
      %v474 = vpop.permute.xlu0 %473
      %477 = vset.pattern.permute.xlu0 0
      %478 = vperm.xlu0 %477, %v367
      %v479 = vpop.permute.xlu0 %478
      %482 = vset.pattern.permute.xlu0 0
      %483 = vperm.xlu0 %482, %v368
      %v484 = vpop.permute.xlu0 %483
      %487 = vset.pattern.permute.xlu0 0
      %488 = vperm.xlu0 %487, %v369
      %v489 = vpop.permute.xlu0 %488
      %492 = vset.pattern.permute.xlu0 0
      %493 = vperm.xlu0 %492, %v370
      %v494 = vpop.permute.xlu0 %493
      %497 = vset.pattern.permute.xlu0 0
      %498 = vperm.xlu0 %497, %v371
      %v499 = vpop.permute.xlu0 %498
      %502 = vset.pattern.permute.xlu0 0
      %503 = vperm.xlu0 %502, %v372
      %v504 = vpop.permute.xlu0 %503
      %507 = vset.pattern.permute.xlu0 0
      %508 = vperm.xlu0 %507, %v373
      %v509 = vpop.permute.xlu0 %508
      %512 = vset.pattern.permute.xlu0 0
      %513 = vperm.xlu0 %512, %v374
      %v514 = vpop.permute.xlu0 %513
      %517 = vset.pattern.permute.xlu0 0
      %518 = vperm.xlu0 %517, %v375
      %v519 = vpop.permute.xlu0 %518
      %522 = vset.pattern.permute.xlu0 0
      %523 = vperm.xlu0 %522, %v376
      %v524 = vpop.permute.xlu0 %523
      %527 = vset.pattern.permute.xlu0 0
      %528 = vperm.xlu0 %527, %v377
      %v529 = vpop.permute.xlu0 %528
      %532 = vset.pattern.permute.xlu0 0
      %533 = vperm.xlu0 %532, %v378
      %v534 = vpop.permute.xlu0 %533
      %537 = vset.pattern.permute.xlu0 0
      %538 = vperm.xlu0 %537, %v379
      %v539 = vpop.permute.xlu0 %538
      %542 = vset.pattern.permute.xlu0 0
      %543 = vperm.xlu0 %542, %v380
      %v544 = vpop.permute.xlu0 %543
      %547 = vset.pattern.permute.xlu0 0
      %548 = vperm.xlu0 %547, %v381
      %v549 = vpop.permute.xlu0 %548
      %552 = vset.pattern.permute.xlu0 0
      %553 = vperm.xlu0 %552, %v382
      %v554 = vpop.permute.xlu0 %553
      %557 = vset.pattern.permute.xlu0 0
      %558 = vperm.xlu0 %557, %v383
      %v559 = vpop.permute.xlu0 %558
      %562 = vset.pattern.permute.xlu0 0
      %563 = vperm.xlu0 %562, %v384
      %v564 = vpop.permute.xlu0 %563
      %567 = vset.pattern.permute.xlu0 0
      %568 = vperm.xlu0 %567, %v385
      %v569 = vpop.permute.xlu0 %568
      %572 = vset.pattern.permute.xlu0 0
      %573 = vperm.xlu0 %572, %v386
      %v574 = vpop.permute.xlu0 %573
      %577 = vset.pattern.permute.xlu0 0
      %578 = vperm.xlu0 %577, %v387
      %v579 = vpop.permute.xlu0 %578
      %582 = vset.pattern.permute.xlu0 0
      %583 = vperm.xlu0 %582, %v388
      %v584 = vpop.permute.xlu0 %583
      %587 = vset.pattern.permute.xlu0 0
      %588 = vperm.xlu0 %587, %v389
      %v589 = vpop.permute.xlu0 %588
      %592 = vset.pattern.permute.xlu0 0
      %593 = vperm.xlu0 %592, %v390
      %v594 = vpop.permute.xlu0 %593
      %597 = vset.pattern.permute.xlu0 0
      %598 = vperm.xlu0 %597, %v391
      %v599 = vpop.permute.xlu0 %598
      %602 = vset.pattern.permute.xlu0 0
      %603 = vperm.xlu0 %602, %v392
      %v604 = vpop.permute.xlu0 %603
      %607 = vset.pattern.permute.xlu0 0
      %608 = vperm.xlu0 %607, %v393
      %v609 = vpop.permute.xlu0 %608
      %612 = vset.pattern.permute.xlu0 0
      %613 = vperm.xlu0 %612, %v394
      %v614 = vpop.permute.xlu0 %613
      %617 = vset.pattern.permute.xlu0 0
      %618 = vperm.xlu0 %617, %v395
      %v619 = vpop.permute.xlu0 %618
      %622 = vset.pattern.permute.xlu0 0
      %623 = vperm.xlu0 %622, %v396
      %v624 = vpop.permute.xlu0 %623
      %627 = vset.pattern.permute.xlu0 0
      %628 = vperm.xlu0 %627, %v397
      %v629 = vpop.permute.xlu0 %628
      %632 = vset.pattern.permute.xlu0 0
      %633 = vperm.xlu0 %632, %v398
      %v634 = vpop.permute.xlu0 %633
      %637 = vset.pattern.permute.xlu0 0
      %638 = vperm.xlu0 %637, %v399
      %v639 = vpop.permute.xlu0 %638
      %642 = vset.pattern.permute.xlu0 0
      %643 = vperm.xlu0 %642, %v400
      %v644 = vpop.permute.xlu0 %643
      %647 = vset.pattern.permute.xlu0 0
      %648 = vperm.xlu0 %647, %v401
      %v649 = vpop.permute.xlu0 %648
      %652 = vset.pattern.permute.xlu0 0
      %653 = vperm.xlu0 %652, %v402
      %v654 = vpop.permute.xlu0 %653
      %657 = vset.pattern.permute.xlu0 0
      %658 = vperm.xlu0 %657, %v403
      %v659 = vpop.permute.xlu0 %658
      %662 = vset.pattern.permute.xlu0 0
      %663 = vperm.xlu0 %662, %v404
      %v664 = vpop.permute.xlu0 %663
      %667 = vset.pattern.permute.xlu0 0
      %668 = vperm.xlu0 %667, %v405
      %v669 = vpop.permute.xlu0 %668
      %672 = vset.pattern.permute.xlu0 0
      %673 = vperm.xlu0 %672, %v406
      %v674 = vpop.permute.xlu0 %673
      %677 = vset.pattern.permute.xlu0 0
      %678 = vperm.xlu0 %677, %v407
      %v679 = vpop.permute.xlu0 %678
      %682 = vset.pattern.permute.xlu0 0
      %683 = vperm.xlu0 %682, %v408
      %v684 = vpop.permute.xlu0 %683
      %687 = vset.pattern.permute.xlu0 0
      %688 = vperm.xlu0 %687, %v409
      %v689 = vpop.permute.xlu0 %688
      %692 = vset.pattern.permute.xlu0 0
      %693 = vperm.xlu0 %692, %v410
      %v694 = vpop.permute.xlu0 %693
      %697 = vset.pattern.permute.xlu0 0
      %698 = vperm.xlu0 %697, %v411
      %v699 = vpop.permute.xlu0 %698
      %702 = vset.pattern.permute.xlu0 0
      %703 = vperm.xlu0 %702, %v412
      %v704 = vpop.permute.xlu0 %703
      %707 = vset.pattern.permute.xlu0 0
      %708 = vperm.xlu0 %707, %v413
      %v709 = vpop.permute.xlu0 %708
      %712 = vset.pattern.permute.xlu0 0
      %713 = vperm.xlu0 %712, %v414
      %v714 = vpop.permute.xlu0 %713
      %717 = vset.pattern.permute.xlu0 0
      %718 = vperm.xlu0 %717, %v415
      %v719 = vpop.permute.xlu0 %718
      %722 = vset.pattern.permute.xlu0 0
      %723 = vperm.xlu0 %722, %v416
      %v724 = vpop.permute.xlu0 %723
      %727 = vset.pattern.permute.xlu0 0
      %728 = vperm.xlu0 %727, %v417
      %v729 = vpop.permute.xlu0 %728
      %732 = vset.pattern.permute.xlu0 0
      %733 = vperm.xlu0 %732, %v418
      %v734 = vpop.permute.xlu0 %733
      %737 = vset.pattern.permute.xlu0 0
      %738 = vperm.xlu0 %737, %v419
      %v739 = vpop.permute.xlu0 %738
      %v741 = vlaneseq
      %v742 = vshrl.u32 %v741, 7
      %v743 = vsub.s32 0, %v742
      %v744 = vrot.slane %v420, %v743
      %v745 = vmul.f32 %v424, %v744
      %v746 = vmul.f32 %v429, %v744
      %v747 = vmul.f32 %v434, %v744
      %v748 = vmul.f32 %v439, %v744
      %v749 = vmul.f32 %v444, %v744
      %v750 = vmul.f32 %v449, %v744
      %v751 = vmul.f32 %v454, %v744
      %v752 = vmul.f32 %v459, %v744
      %v753 = vmul.f32 %v464, %v744
      %v754 = vmul.f32 %v469, %v744
      %v755 = vmul.f32 %v474, %v744
      %v756 = vmul.f32 %v479, %v744
      %v757 = vmul.f32 %v484, %v744
      %v758 = vmul.f32 %v489, %v744
      %v759 = vmul.f32 %v494, %v744
      %v760 = vmul.f32 %v499, %v744
      %v761 = vmul.f32 %v504, %v744
      %v762 = vmul.f32 %v509, %v744
      %v763 = vmul.f32 %v514, %v744
      %v764 = vmul.f32 %v519, %v744
      %v765 = vmul.f32 %v524, %v744
      %v766 = vmul.f32 %v529, %v744
      %v767 = vmul.f32 %v534, %v744
      %v768 = vmul.f32 %v539, %v744
      %v769 = vmul.f32 %v544, %v744
      %v770 = vmul.f32 %v549, %v744
      %v771 = vmul.f32 %v554, %v744
      %v772 = vmul.f32 %v559, %v744
      %v773 = vmul.f32 %v564, %v744
      %v774 = vmul.f32 %v569, %v744
      %v775 = vmul.f32 %v574, %v744
      %v776 = vmul.f32 %v579, %v744
      %v777 = vmul.f32 %v584, %v744
      %v778 = vmul.f32 %v589, %v744
      %v779 = vmul.f32 %v594, %v744
      %v780 = vmul.f32 %v599, %v744
      %v781 = vmul.f32 %v604, %v744
      %v782 = vmul.f32 %v609, %v744
      %v783 = vmul.f32 %v614, %v744
      %v784 = vmul.f32 %v619, %v744
      %v785 = vmul.f32 %v624, %v744
      %v786 = vmul.f32 %v629, %v744
      %v787 = vmul.f32 %v634, %v744
      %v788 = vmul.f32 %v639, %v744
      %v789 = vmul.f32 %v644, %v744
      %v790 = vmul.f32 %v649, %v744
      %v791 = vmul.f32 %v654, %v744
      %v792 = vmul.f32 %v659, %v744
      %v793 = vmul.f32 %v664, %v744
      %v794 = vmul.f32 %v669, %v744
      %v795 = vmul.f32 %v674, %v744
      %v796 = vmul.f32 %v679, %v744
      %v797 = vmul.f32 %v684, %v744
      %v798 = vmul.f32 %v689, %v744
      %v799 = vmul.f32 %v694, %v744
      %v800 = vmul.f32 %v699, %v744
      %v801 = vmul.f32 %v704, %v744
      %v802 = vmul.f32 %v709, %v744
      %v803 = vmul.f32 %v714, %v744
      %v804 = vmul.f32 %v719, %v744
      %v805 = vmul.f32 %v724, %v744
      %v806 = vmul.f32 %v729, %v744
      %v807 = vmul.f32 %v734, %v744
      %v808 = vmul.f32 %v739, %v744
      %v809 = vld [vmem:[%s4] sm:$0x1]
      %v811 = vlaneseq
      %v812 = vshrl.u32 %v811, 7
      %v813 = vsub.s32 0, %v812
      %v814 = vrot.slane %v809, %v813
      %v816 = vadd.f32 %v745, %v814
      %v817 = vadd.f32 %v746, %v814
      %v818 = vadd.f32 %v747, %v814
      %v819 = vadd.f32 %v748, %v814
      %v820 = vadd.f32 %v749, %v814
      %v821 = vadd.f32 %v750, %v814
      %v822 = vadd.f32 %v751, %v814
      %v823 = vadd.f32 %v752, %v814
      %v824 = vadd.f32 %v753, %v814
      %v825 = vadd.f32 %v754, %v814
      %v826 = vadd.f32 %v755, %v814
      %v827 = vadd.f32 %v756, %v814
      %v828 = vadd.f32 %v757, %v814
      %v829 = vadd.f32 %v758, %v814
      %v830 = vadd.f32 %v759, %v814
      %v831 = vadd.f32 %v760, %v814
      %v832 = vadd.f32 %v761, %v814
      %v833 = vadd.f32 %v762, %v814
      %v834 = vadd.f32 %v763, %v814
      %v835 = vadd.f32 %v764, %v814
      %v836 = vadd.f32 %v765, %v814
      %v837 = vadd.f32 %v766, %v814
      %v838 = vadd.f32 %v767, %v814
      %v839 = vadd.f32 %v768, %v814
      %v840 = vadd.f32 %v769, %v814
      %v841 = vadd.f32 %v770, %v814
      %v842 = vadd.f32 %v771, %v814
      %v843 = vadd.f32 %v772, %v814
      %v844 = vadd.f32 %v773, %v814
      %v845 = vadd.f32 %v774, %v814
      %v846 = vadd.f32 %v775, %v814
      %v847 = vadd.f32 %v776, %v814
      %v848 = vadd.f32 %v777, %v814
      %v849 = vadd.f32 %v778, %v814
      %v850 = vadd.f32 %v779, %v814
      %v851 = vadd.f32 %v780, %v814
      %v852 = vadd.f32 %v781, %v814
      %v853 = vadd.f32 %v782, %v814
      %v854 = vadd.f32 %v783, %v814
      %v855 = vadd.f32 %v784, %v814
      %v856 = vadd.f32 %v785, %v814
      %v857 = vadd.f32 %v786, %v814
      %v858 = vadd.f32 %v787, %v814
      %v859 = vadd.f32 %v788, %v814
      %v860 = vadd.f32 %v789, %v814
      %v861 = vadd.f32 %v790, %v814
      %v862 = vadd.f32 %v791, %v814
      %v863 = vadd.f32 %v792, %v814
      %v864 = vadd.f32 %v793, %v814
      %v865 = vadd.f32 %v794, %v814
      %v866 = vadd.f32 %v795, %v814
      %v867 = vadd.f32 %v796, %v814
      %v868 = vadd.f32 %v797, %v814
      %v869 = vadd.f32 %v798, %v814
      %v870 = vadd.f32 %v799, %v814
      %v871 = vadd.f32 %v800, %v814
      %v872 = vadd.f32 %v801, %v814
      %v873 = vadd.f32 %v802, %v814
      %v874 = vadd.f32 %v803, %v814
      %v875 = vadd.f32 %v804, %v814
      %v876 = vadd.f32 %v805, %v814
      %v877 = vadd.f32 %v806, %v814
      %v878 = vadd.f32 %v807, %v814
      %v879 = vadd.f32 %v808, %v814
      %880 = vset.pattern.permute.xlu0 1
      %881 = vperm.xlu0 %880, %v356
      %v882 = vpop.permute.xlu0 %881
      %884 = vset.pattern.permute.xlu0 1
      %885 = vperm.xlu0 %884, %v357
      %v886 = vpop.permute.xlu0 %885
      %888 = vset.pattern.permute.xlu0 1
      %889 = vperm.xlu0 %888, %v358
      %v890 = vpop.permute.xlu0 %889
      %892 = vset.pattern.permute.xlu0 1
      %893 = vperm.xlu0 %892, %v359
      %v894 = vpop.permute.xlu0 %893
      %896 = vset.pattern.permute.xlu0 1
      %897 = vperm.xlu0 %896, %v360
      %v898 = vpop.permute.xlu0 %897
      %900 = vset.pattern.permute.xlu0 1
      %901 = vperm.xlu0 %900, %v361
      %v902 = vpop.permute.xlu0 %901
      %904 = vset.pattern.permute.xlu0 1
      %905 = vperm.xlu0 %904, %v362
      %v906 = vpop.permute.xlu0 %905
      %908 = vset.pattern.permute.xlu0 1
      %909 = vperm.xlu0 %908, %v363
      %v910 = vpop.permute.xlu0 %909
      %912 = vset.pattern.permute.xlu0 1
      %913 = vperm.xlu0 %912, %v364
      %v914 = vpop.permute.xlu0 %913
      %916 = vset.pattern.permute.xlu0 1
      %917 = vperm.xlu0 %916, %v365
      %v918 = vpop.permute.xlu0 %917
      %920 = vset.pattern.permute.xlu0 1
      %921 = vperm.xlu0 %920, %v366
      %v922 = vpop.permute.xlu0 %921
      %924 = vset.pattern.permute.xlu0 1
      %925 = vperm.xlu0 %924, %v367
      %v926 = vpop.permute.xlu0 %925
      %928 = vset.pattern.permute.xlu0 1
      %929 = vperm.xlu0 %928, %v368
      %v930 = vpop.permute.xlu0 %929
      %932 = vset.pattern.permute.xlu0 1
      %933 = vperm.xlu0 %932, %v369
      %v934 = vpop.permute.xlu0 %933
      %936 = vset.pattern.permute.xlu0 1
      %937 = vperm.xlu0 %936, %v370
      %v938 = vpop.permute.xlu0 %937
      %940 = vset.pattern.permute.xlu0 1
      %941 = vperm.xlu0 %940, %v371
      %v942 = vpop.permute.xlu0 %941
      %944 = vset.pattern.permute.xlu0 1
      %945 = vperm.xlu0 %944, %v372
      %v946 = vpop.permute.xlu0 %945
      %948 = vset.pattern.permute.xlu0 1
      %949 = vperm.xlu0 %948, %v373
      %v950 = vpop.permute.xlu0 %949
      %952 = vset.pattern.permute.xlu0 1
      %953 = vperm.xlu0 %952, %v374
      %v954 = vpop.permute.xlu0 %953
      %956 = vset.pattern.permute.xlu0 1
      %957 = vperm.xlu0 %956, %v375
      %v958 = vpop.permute.xlu0 %957
      %960 = vset.pattern.permute.xlu0 1
      %961 = vperm.xlu0 %960, %v376
      %v962 = vpop.permute.xlu0 %961
      %964 = vset.pattern.permute.xlu0 1
      %965 = vperm.xlu0 %964, %v377
      %v966 = vpop.permute.xlu0 %965
      %968 = vset.pattern.permute.xlu0 1
      %969 = vperm.xlu0 %968, %v378
      %v970 = vpop.permute.xlu0 %969
      %972 = vset.pattern.permute.xlu0 1
      %973 = vperm.xlu0 %972, %v379
      %v974 = vpop.permute.xlu0 %973
      %976 = vset.pattern.permute.xlu0 1
      %977 = vperm.xlu0 %976, %v380
      %v978 = vpop.permute.xlu0 %977
      %980 = vset.pattern.permute.xlu0 1
      %981 = vperm.xlu0 %980, %v381
      %v982 = vpop.permute.xlu0 %981
      %984 = vset.pattern.permute.xlu0 1
      %985 = vperm.xlu0 %984, %v382
      %v986 = vpop.permute.xlu0 %985
      %988 = vset.pattern.permute.xlu0 1
      %989 = vperm.xlu0 %988, %v383
      %v990 = vpop.permute.xlu0 %989
      %992 = vset.pattern.permute.xlu0 1
      %993 = vperm.xlu0 %992, %v384
      %v994 = vpop.permute.xlu0 %993
      %996 = vset.pattern.permute.xlu0 1
      %997 = vperm.xlu0 %996, %v385
      %v998 = vpop.permute.xlu0 %997
      %1000 = vset.pattern.permute.xlu0 1
      %1001 = vperm.xlu0 %1000, %v386
      %v1002 = vpop.permute.xlu0 %1001
      %1004 = vset.pattern.permute.xlu0 1
      %1005 = vperm.xlu0 %1004, %v387
      %v1006 = vpop.permute.xlu0 %1005
      %1008 = vset.pattern.permute.xlu0 1
      %1009 = vperm.xlu0 %1008, %v388
      %v1010 = vpop.permute.xlu0 %1009
      %1012 = vset.pattern.permute.xlu0 1
      %1013 = vperm.xlu0 %1012, %v389
      %v1014 = vpop.permute.xlu0 %1013
      %1016 = vset.pattern.permute.xlu0 1
      %1017 = vperm.xlu0 %1016, %v390
      %v1018 = vpop.permute.xlu0 %1017
      %1020 = vset.pattern.permute.xlu0 1
      %1021 = vperm.xlu0 %1020, %v391
      %v1022 = vpop.permute.xlu0 %1021
      %1024 = vset.pattern.permute.xlu0 1
      %1025 = vperm.xlu0 %1024, %v392
      %v1026 = vpop.permute.xlu0 %1025
      %1028 = vset.pattern.permute.xlu0 1
      %1029 = vperm.xlu0 %1028, %v393
      %v1030 = vpop.permute.xlu0 %1029
      %1032 = vset.pattern.permute.xlu0 1
      %1033 = vperm.xlu0 %1032, %v394
      %v1034 = vpop.permute.xlu0 %1033
      %1036 = vset.pattern.permute.xlu0 1
      %1037 = vperm.xlu0 %1036, %v395
      %v1038 = vpop.permute.xlu0 %1037
      %1040 = vset.pattern.permute.xlu0 1
      %1041 = vperm.xlu0 %1040, %v396
      %v1042 = vpop.permute.xlu0 %1041
      %1044 = vset.pattern.permute.xlu0 1
      %1045 = vperm.xlu0 %1044, %v397
      %v1046 = vpop.permute.xlu0 %1045
      %1048 = vset.pattern.permute.xlu0 1
      %1049 = vperm.xlu0 %1048, %v398
      %v1050 = vpop.permute.xlu0 %1049
      %1052 = vset.pattern.permute.xlu0 1
      %1053 = vperm.xlu0 %1052, %v399
      %v1054 = vpop.permute.xlu0 %1053
      %1056 = vset.pattern.permute.xlu0 1
      %1057 = vperm.xlu0 %1056, %v400
      %v1058 = vpop.permute.xlu0 %1057
      %1060 = vset.pattern.permute.xlu0 1
      %1061 = vperm.xlu0 %1060, %v401
      %v1062 = vpop.permute.xlu0 %1061
      %1064 = vset.pattern.permute.xlu0 1
      %1065 = vperm.xlu0 %1064, %v402
      %v1066 = vpop.permute.xlu0 %1065
      %1068 = vset.pattern.permute.xlu0 1
      %1069 = vperm.xlu0 %1068, %v403
      %v1070 = vpop.permute.xlu0 %1069
      %1072 = vset.pattern.permute.xlu0 1
      %1073 = vperm.xlu0 %1072, %v404
      %v1074 = vpop.permute.xlu0 %1073
      %1076 = vset.pattern.permute.xlu0 1
      %1077 = vperm.xlu0 %1076, %v405
      %v1078 = vpop.permute.xlu0 %1077
      %1080 = vset.pattern.permute.xlu0 1
      %1081 = vperm.xlu0 %1080, %v406
      %v1082 = vpop.permute.xlu0 %1081
      %1084 = vset.pattern.permute.xlu0 1
      %1085 = vperm.xlu0 %1084, %v407
      %v1086 = vpop.permute.xlu0 %1085
      %1088 = vset.pattern.permute.xlu0 1
      %1089 = vperm.xlu0 %1088, %v408
      %v1090 = vpop.permute.xlu0 %1089
      %1092 = vset.pattern.permute.xlu0 1
      %1093 = vperm.xlu0 %1092, %v409
      %v1094 = vpop.permute.xlu0 %1093
      %1096 = vset.pattern.permute.xlu0 1
      %1097 = vperm.xlu0 %1096, %v410
      %v1098 = vpop.permute.xlu0 %1097
      %1100 = vset.pattern.permute.xlu0 1
      %1101 = vperm.xlu0 %1100, %v411
      %v1102 = vpop.permute.xlu0 %1101
      %1104 = vset.pattern.permute.xlu0 1
      %1105 = vperm.xlu0 %1104, %v412
      %v1106 = vpop.permute.xlu0 %1105
      %1108 = vset.pattern.permute.xlu0 1
      %1109 = vperm.xlu0 %1108, %v413
      %v1110 = vpop.permute.xlu0 %1109
      %1112 = vset.pattern.permute.xlu0 1
      %1113 = vperm.xlu0 %1112, %v414
      %v1114 = vpop.permute.xlu0 %1113
      %1116 = vset.pattern.permute.xlu0 1
      %1117 = vperm.xlu0 %1116, %v415
      %v1118 = vpop.permute.xlu0 %1117
      %1120 = vset.pattern.permute.xlu0 1
      %1121 = vperm.xlu0 %1120, %v416
      %v1122 = vpop.permute.xlu0 %1121
      %1124 = vset.pattern.permute.xlu0 1
      %1125 = vperm.xlu0 %1124, %v417
      %v1126 = vpop.permute.xlu0 %1125
      %1128 = vset.pattern.permute.xlu0 1
      %1129 = vperm.xlu0 %1128, %v418
      %v1130 = vpop.permute.xlu0 %1129
      %1132 = vset.pattern.permute.xlu0 1
      %1133 = vperm.xlu0 %1132, %v419
      %v1134 = vpop.permute.xlu0 %1133
      %v1136 = vlaneseq
      %v1137 = vshrl.u32 %v1136, 7
      %v1138 = vsub.s32 1, %v1137
      %v1139 = vrot.slane %v420, %v1138
      %v1140 = vmul.f32 %v882, %v1139
      %v1141 = vmul.f32 %v886, %v1139
      %v1142 = vmul.f32 %v890, %v1139
      %v1143 = vmul.f32 %v894, %v1139
      %v1144 = vmul.f32 %v898, %v1139
      %v1145 = vmul.f32 %v902, %v1139
      %v1146 = vmul.f32 %v906, %v1139
      %v1147 = vmul.f32 %v910, %v1139
      %v1148 = vmul.f32 %v914, %v1139
      %v1149 = vmul.f32 %v918, %v1139
      %v1150 = vmul.f32 %v922, %v1139
      %v1151 = vmul.f32 %v926, %v1139
      %v1152 = vmul.f32 %v930, %v1139
      %v1153 = vmul.f32 %v934, %v1139
      %v1154 = vmul.f32 %v938, %v1139
      %v1155 = vmul.f32 %v942, %v1139
      %v1156 = vmul.f32 %v946, %v1139
      %v1157 = vmul.f32 %v950, %v1139
      %v1158 = vmul.f32 %v954, %v1139
      %v1159 = vmul.f32 %v958, %v1139
      %v1160 = vmul.f32 %v962, %v1139
      %v1161 = vmul.f32 %v966, %v1139
      %v1162 = vmul.f32 %v970, %v1139
      %v1163 = vmul.f32 %v974, %v1139
      %v1164 = vmul.f32 %v978, %v1139
      %v1165 = vmul.f32 %v982, %v1139
      %v1166 = vmul.f32 %v986, %v1139
      %v1167 = vmul.f32 %v990, %v1139
      %v1168 = vmul.f32 %v994, %v1139
      %v1169 = vmul.f32 %v998, %v1139
      %v1170 = vmul.f32 %v1002, %v1139
      %v1171 = vmul.f32 %v1006, %v1139
      %v1172 = vmul.f32 %v1010, %v1139
      %v1173 = vmul.f32 %v1014, %v1139
      %v1174 = vmul.f32 %v1018, %v1139
      %v1175 = vmul.f32 %v1022, %v1139
      %v1176 = vmul.f32 %v1026, %v1139
      %v1177 = vmul.f32 %v1030, %v1139
      %v1178 = vmul.f32 %v1034, %v1139
      %v1179 = vmul.f32 %v1038, %v1139
      %v1180 = vmul.f32 %v1042, %v1139
      %v1181 = vmul.f32 %v1046, %v1139
      %v1182 = vmul.f32 %v1050, %v1139
      %v1183 = vmul.f32 %v1054, %v1139
      %v1184 = vmul.f32 %v1058, %v1139
      %v1185 = vmul.f32 %v1062, %v1139
      %v1186 = vmul.f32 %v1066, %v1139
      %v1187 = vmul.f32 %v1070, %v1139
      %v1188 = vmul.f32 %v1074, %v1139
      %v1189 = vmul.f32 %v1078, %v1139
      %v1190 = vmul.f32 %v1082, %v1139
      %v1191 = vmul.f32 %v1086, %v1139
      %v1192 = vmul.f32 %v1090, %v1139
      %v1193 = vmul.f32 %v1094, %v1139
      %v1194 = vmul.f32 %v1098, %v1139
      %v1195 = vmul.f32 %v1102, %v1139
      %v1196 = vmul.f32 %v1106, %v1139
      %v1197 = vmul.f32 %v1110, %v1139
      %v1198 = vmul.f32 %v1114, %v1139
      %v1199 = vmul.f32 %v1118, %v1139
      %v1200 = vmul.f32 %v1122, %v1139
      %v1201 = vmul.f32 %v1126, %v1139
      %v1202 = vmul.f32 %v1130, %v1139
      %v1203 = vmul.f32 %v1134, %v1139
      %v1204 = vadd.f32 %v816, %v1140
      %v1205 = vadd.f32 %v817, %v1141
      %v1206 = vadd.f32 %v818, %v1142
      %v1207 = vadd.f32 %v819, %v1143
      %v1208 = vadd.f32 %v820, %v1144
      %v1209 = vadd.f32 %v821, %v1145
      %v1210 = vadd.f32 %v822, %v1146
      %v1211 = vadd.f32 %v823, %v1147
      %v1212 = vadd.f32 %v824, %v1148
      %v1213 = vadd.f32 %v825, %v1149
      %v1214 = vadd.f32 %v826, %v1150
      %v1215 = vadd.f32 %v827, %v1151
      %v1216 = vadd.f32 %v828, %v1152
      %v1217 = vadd.f32 %v829, %v1153
      %v1218 = vadd.f32 %v830, %v1154
      %v1219 = vadd.f32 %v831, %v1155
      %v1220 = vadd.f32 %v832, %v1156
      %v1221 = vadd.f32 %v833, %v1157
      %v1222 = vadd.f32 %v834, %v1158
      %v1223 = vadd.f32 %v835, %v1159
      %v1224 = vadd.f32 %v836, %v1160
      %v1225 = vadd.f32 %v837, %v1161
      %v1226 = vadd.f32 %v838, %v1162
      %v1227 = vadd.f32 %v839, %v1163
      %v1228 = vadd.f32 %v840, %v1164
      %v1229 = vadd.f32 %v841, %v1165
      %v1230 = vadd.f32 %v842, %v1166
      %v1231 = vadd.f32 %v843, %v1167
      %v1232 = vadd.f32 %v844, %v1168
      %v1233 = vadd.f32 %v845, %v1169
      %v1234 = vadd.f32 %v846, %v1170
      %v1235 = vadd.f32 %v847, %v1171
      %v1236 = vadd.f32 %v848, %v1172
      %v1237 = vadd.f32 %v849, %v1173
      %v1238 = vadd.f32 %v850, %v1174
      %v1239 = vadd.f32 %v851, %v1175
      %v1240 = vadd.f32 %v852, %v1176
      %v1241 = vadd.f32 %v853, %v1177
      %v1242 = vadd.f32 %v854, %v1178
      %v1243 = vadd.f32 %v855, %v1179
      %v1244 = vadd.f32 %v856, %v1180
      %v1245 = vadd.f32 %v857, %v1181
      %v1246 = vadd.f32 %v858, %v1182
      %v1247 = vadd.f32 %v859, %v1183
      %v1248 = vadd.f32 %v860, %v1184
      %v1249 = vadd.f32 %v861, %v1185
      %v1250 = vadd.f32 %v862, %v1186
      %v1251 = vadd.f32 %v863, %v1187
      %v1252 = vadd.f32 %v864, %v1188
      %v1253 = vadd.f32 %v865, %v1189
      %v1254 = vadd.f32 %v866, %v1190
      %v1255 = vadd.f32 %v867, %v1191
      %v1256 = vadd.f32 %v868, %v1192
      %v1257 = vadd.f32 %v869, %v1193
      %v1258 = vadd.f32 %v870, %v1194
      %v1259 = vadd.f32 %v871, %v1195
      %v1260 = vadd.f32 %v872, %v1196
      %v1261 = vadd.f32 %v873, %v1197
      %v1262 = vadd.f32 %v874, %v1198
      %v1263 = vadd.f32 %v875, %v1199
      %v1264 = vadd.f32 %v876, %v1200
      %v1265 = vadd.f32 %v877, %v1201
      %v1266 = vadd.f32 %v878, %v1202
      %v1267 = vadd.f32 %v879, %v1203
      %1268 = vset.pattern.permute.xlu0 2
      %1269 = vperm.xlu0 %1268, %v356
      %v1270 = vpop.permute.xlu0 %1269
      %1272 = vset.pattern.permute.xlu0 2
      %1273 = vperm.xlu0 %1272, %v357
      %v1274 = vpop.permute.xlu0 %1273
      %1276 = vset.pattern.permute.xlu0 2
      %1277 = vperm.xlu0 %1276, %v358
      %v1278 = vpop.permute.xlu0 %1277
      %1280 = vset.pattern.permute.xlu0 2
      %1281 = vperm.xlu0 %1280, %v359
      %v1282 = vpop.permute.xlu0 %1281
      %1284 = vset.pattern.permute.xlu0 2
      %1285 = vperm.xlu0 %1284, %v360
      %v1286 = vpop.permute.xlu0 %1285
      %1288 = vset.pattern.permute.xlu0 2
      %1289 = vperm.xlu0 %1288, %v361
      %v1290 = vpop.permute.xlu0 %1289
      %1292 = vset.pattern.permute.xlu0 2
      %1293 = vperm.xlu0 %1292, %v362
      %v1294 = vpop.permute.xlu0 %1293
      %1296 = vset.pattern.permute.xlu0 2
      %1297 = vperm.xlu0 %1296, %v363
      %v1298 = vpop.permute.xlu0 %1297
      %1300 = vset.pattern.permute.xlu0 2
      %1301 = vperm.xlu0 %1300, %v364
      %v1302 = vpop.permute.xlu0 %1301
      %1304 = vset.pattern.permute.xlu0 2
      %1305 = vperm.xlu0 %1304, %v365
      %v1306 = vpop.permute.xlu0 %1305
      %1308 = vset.pattern.permute.xlu0 2
      %1309 = vperm.xlu0 %1308, %v366
      %v1310 = vpop.permute.xlu0 %1309
      %1312 = vset.pattern.permute.xlu0 2
      %1313 = vperm.xlu0 %1312, %v367
      %v1314 = vpop.permute.xlu0 %1313
      %1316 = vset.pattern.permute.xlu0 2
      %1317 = vperm.xlu0 %1316, %v368
      %v1318 = vpop.permute.xlu0 %1317
      %1320 = vset.pattern.permute.xlu0 2
      %1321 = vperm.xlu0 %1320, %v369
      %v1322 = vpop.permute.xlu0 %1321
      %1324 = vset.pattern.permute.xlu0 2
      %1325 = vperm.xlu0 %1324, %v370
      %v1326 = vpop.permute.xlu0 %1325
      %1328 = vset.pattern.permute.xlu0 2
      %1329 = vperm.xlu0 %1328, %v371
      %v1330 = vpop.permute.xlu0 %1329
      %1332 = vset.pattern.permute.xlu0 2
      %1333 = vperm.xlu0 %1332, %v372
      %v1334 = vpop.permute.xlu0 %1333
      %1336 = vset.pattern.permute.xlu0 2
      %1337 = vperm.xlu0 %1336, %v373
      %v1338 = vpop.permute.xlu0 %1337
      %1340 = vset.pattern.permute.xlu0 2
      %1341 = vperm.xlu0 %1340, %v374
      %v1342 = vpop.permute.xlu0 %1341
      %1344 = vset.pattern.permute.xlu0 2
      %1345 = vperm.xlu0 %1344, %v375
      %v1346 = vpop.permute.xlu0 %1345
      %1348 = vset.pattern.permute.xlu0 2
      %1349 = vperm.xlu0 %1348, %v376
      %v1350 = vpop.permute.xlu0 %1349
      %1352 = vset.pattern.permute.xlu0 2
      %1353 = vperm.xlu0 %1352, %v377
      %v1354 = vpop.permute.xlu0 %1353
      %1356 = vset.pattern.permute.xlu0 2
      %1357 = vperm.xlu0 %1356, %v378
      %v1358 = vpop.permute.xlu0 %1357
      %1360 = vset.pattern.permute.xlu0 2
      %1361 = vperm.xlu0 %1360, %v379
      %v1362 = vpop.permute.xlu0 %1361
      %1364 = vset.pattern.permute.xlu0 2
      %1365 = vperm.xlu0 %1364, %v380
      %v1366 = vpop.permute.xlu0 %1365
      %1368 = vset.pattern.permute.xlu0 2
      %1369 = vperm.xlu0 %1368, %v381
      %v1370 = vpop.permute.xlu0 %1369
      %1372 = vset.pattern.permute.xlu0 2
      %1373 = vperm.xlu0 %1372, %v382
      %v1374 = vpop.permute.xlu0 %1373
      %1376 = vset.pattern.permute.xlu0 2
      %1377 = vperm.xlu0 %1376, %v383
      %v1378 = vpop.permute.xlu0 %1377
      %1380 = vset.pattern.permute.xlu0 2
      %1381 = vperm.xlu0 %1380, %v384
      %v1382 = vpop.permute.xlu0 %1381
      %1384 = vset.pattern.permute.xlu0 2
      %1385 = vperm.xlu0 %1384, %v385
      %v1386 = vpop.permute.xlu0 %1385
      %1388 = vset.pattern.permute.xlu0 2
      %1389 = vperm.xlu0 %1388, %v386
      %v1390 = vpop.permute.xlu0 %1389
      %1392 = vset.pattern.permute.xlu0 2
      %1393 = vperm.xlu0 %1392, %v387
      %v1394 = vpop.permute.xlu0 %1393
      %1396 = vset.pattern.permute.xlu0 2
      %1397 = vperm.xlu0 %1396, %v388
      %v1398 = vpop.permute.xlu0 %1397
      %1400 = vset.pattern.permute.xlu0 2
      %1401 = vperm.xlu0 %1400, %v389
      %v1402 = vpop.permute.xlu0 %1401
      %1404 = vset.pattern.permute.xlu0 2
      %1405 = vperm.xlu0 %1404, %v390
      %v1406 = vpop.permute.xlu0 %1405
      %1408 = vset.pattern.permute.xlu0 2
      %1409 = vperm.xlu0 %1408, %v391
      %v1410 = vpop.permute.xlu0 %1409
      %1412 = vset.pattern.permute.xlu0 2
      %1413 = vperm.xlu0 %1412, %v392
      %v1414 = vpop.permute.xlu0 %1413
      %1416 = vset.pattern.permute.xlu0 2
      %1417 = vperm.xlu0 %1416, %v393
      %v1418 = vpop.permute.xlu0 %1417
      %1420 = vset.pattern.permute.xlu0 2
      %1421 = vperm.xlu0 %1420, %v394
      %v1422 = vpop.permute.xlu0 %1421
      %1424 = vset.pattern.permute.xlu0 2
      %1425 = vperm.xlu0 %1424, %v395
      %v1426 = vpop.permute.xlu0 %1425
      %1428 = vset.pattern.permute.xlu0 2
      %1429 = vperm.xlu0 %1428, %v396
      %v1430 = vpop.permute.xlu0 %1429
      %1432 = vset.pattern.permute.xlu0 2
      %1433 = vperm.xlu0 %1432, %v397
      %v1434 = vpop.permute.xlu0 %1433
      %1436 = vset.pattern.permute.xlu0 2
      %1437 = vperm.xlu0 %1436, %v398
      %v1438 = vpop.permute.xlu0 %1437
      %1440 = vset.pattern.permute.xlu0 2
      %1441 = vperm.xlu0 %1440, %v399
      %v1442 = vpop.permute.xlu0 %1441
      %1444 = vset.pattern.permute.xlu0 2
      %1445 = vperm.xlu0 %1444, %v400
      %v1446 = vpop.permute.xlu0 %1445
      %1448 = vset.pattern.permute.xlu0 2
      %1449 = vperm.xlu0 %1448, %v401
      %v1450 = vpop.permute.xlu0 %1449
      %1452 = vset.pattern.permute.xlu0 2
      %1453 = vperm.xlu0 %1452, %v402
      %v1454 = vpop.permute.xlu0 %1453
      %1456 = vset.pattern.permute.xlu0 2
      %1457 = vperm.xlu0 %1456, %v403
      %v1458 = vpop.permute.xlu0 %1457
      %1460 = vset.pattern.permute.xlu0 2
      %1461 = vperm.xlu0 %1460, %v404
      %v1462 = vpop.permute.xlu0 %1461
      %1464 = vset.pattern.permute.xlu0 2
      %1465 = vperm.xlu0 %1464, %v405
      %v1466 = vpop.permute.xlu0 %1465
      %1468 = vset.pattern.permute.xlu0 2
      %1469 = vperm.xlu0 %1468, %v406
      %v1470 = vpop.permute.xlu0 %1469
      %1472 = vset.pattern.permute.xlu0 2
      %1473 = vperm.xlu0 %1472, %v407
      %v1474 = vpop.permute.xlu0 %1473
      %1476 = vset.pattern.permute.xlu0 2
      %1477 = vperm.xlu0 %1476, %v408
      %v1478 = vpop.permute.xlu0 %1477
      %1480 = vset.pattern.permute.xlu0 2
      %1481 = vperm.xlu0 %1480, %v409
      %v1482 = vpop.permute.xlu0 %1481
      %1484 = vset.pattern.permute.xlu0 2
      %1485 = vperm.xlu0 %1484, %v410
      %v1486 = vpop.permute.xlu0 %1485
      %1488 = vset.pattern.permute.xlu0 2
      %1489 = vperm.xlu0 %1488, %v411
      %v1490 = vpop.permute.xlu0 %1489
      %1492 = vset.pattern.permute.xlu0 2
      %1493 = vperm.xlu0 %1492, %v412
      %v1494 = vpop.permute.xlu0 %1493
      %1496 = vset.pattern.permute.xlu0 2
      %1497 = vperm.xlu0 %1496, %v413
      %v1498 = vpop.permute.xlu0 %1497
      %1500 = vset.pattern.permute.xlu0 2
      %1501 = vperm.xlu0 %1500, %v414
      %v1502 = vpop.permute.xlu0 %1501
      %1504 = vset.pattern.permute.xlu0 2
      %1505 = vperm.xlu0 %1504, %v415
      %v1506 = vpop.permute.xlu0 %1505
      %1508 = vset.pattern.permute.xlu0 2
      %1509 = vperm.xlu0 %1508, %v416
      %v1510 = vpop.permute.xlu0 %1509
      %1512 = vset.pattern.permute.xlu0 2
      %1513 = vperm.xlu0 %1512, %v417
      %v1514 = vpop.permute.xlu0 %1513
      %1516 = vset.pattern.permute.xlu0 2
      %1517 = vperm.xlu0 %1516, %v418
      %v1518 = vpop.permute.xlu0 %1517
      %1520 = vset.pattern.permute.xlu0 2
      %1521 = vperm.xlu0 %1520, %v419
      %v1522 = vpop.permute.xlu0 %1521
      %v1524 = vlaneseq
      %v1525 = vshrl.u32 %v1524, 7
      %v1526 = vsub.s32 2, %v1525
      %v1527 = vrot.slane %v420, %v1526
      %v1528 = vmul.f32 %v1270, %v1527
      %v1529 = vmul.f32 %v1274, %v1527
      %v1530 = vmul.f32 %v1278, %v1527
      %v1531 = vmul.f32 %v1282, %v1527
      %v1532 = vmul.f32 %v1286, %v1527
      %v1533 = vmul.f32 %v1290, %v1527
      %v1534 = vmul.f32 %v1294, %v1527
      %v1535 = vmul.f32 %v1298, %v1527
      %v1536 = vmul.f32 %v1302, %v1527
      %v1537 = vmul.f32 %v1306, %v1527
      %v1538 = vmul.f32 %v1310, %v1527
      %v1539 = vmul.f32 %v1314, %v1527
      %v1540 = vmul.f32 %v1318, %v1527
      %v1541 = vmul.f32 %v1322, %v1527
      %v1542 = vmul.f32 %v1326, %v1527
      %v1543 = vmul.f32 %v1330, %v1527
      %v1544 = vmul.f32 %v1334, %v1527
      %v1545 = vmul.f32 %v1338, %v1527
      %v1546 = vmul.f32 %v1342, %v1527
      %v1547 = vmul.f32 %v1346, %v1527
      %v1548 = vmul.f32 %v1350, %v1527
      %v1549 = vmul.f32 %v1354, %v1527
      %v1550 = vmul.f32 %v1358, %v1527
      %v1551 = vmul.f32 %v1362, %v1527
      %v1552 = vmul.f32 %v1366, %v1527
      %v1553 = vmul.f32 %v1370, %v1527
      %v1554 = vmul.f32 %v1374, %v1527
      %v1555 = vmul.f32 %v1378, %v1527
      %v1556 = vmul.f32 %v1382, %v1527
      %v1557 = vmul.f32 %v1386, %v1527
      %v1558 = vmul.f32 %v1390, %v1527
      %v1559 = vmul.f32 %v1394, %v1527
      %v1560 = vmul.f32 %v1398, %v1527
      %v1561 = vmul.f32 %v1402, %v1527
      %v1562 = vmul.f32 %v1406, %v1527
      %v1563 = vmul.f32 %v1410, %v1527
      %v1564 = vmul.f32 %v1414, %v1527
      %v1565 = vmul.f32 %v1418, %v1527
      %v1566 = vmul.f32 %v1422, %v1527
      %v1567 = vmul.f32 %v1426, %v1527
      %v1568 = vmul.f32 %v1430, %v1527
      %v1569 = vmul.f32 %v1434, %v1527
      %v1570 = vmul.f32 %v1438, %v1527
      %v1571 = vmul.f32 %v1442, %v1527
      %v1572 = vmul.f32 %v1446, %v1527
      %v1573 = vmul.f32 %v1450, %v1527
      %v1574 = vmul.f32 %v1454, %v1527
      %v1575 = vmul.f32 %v1458, %v1527
      %v1576 = vmul.f32 %v1462, %v1527
      %v1577 = vmul.f32 %v1466, %v1527
      %v1578 = vmul.f32 %v1470, %v1527
      %v1579 = vmul.f32 %v1474, %v1527
      %v1580 = vmul.f32 %v1478, %v1527
      %v1581 = vmul.f32 %v1482, %v1527
      %v1582 = vmul.f32 %v1486, %v1527
      %v1583 = vmul.f32 %v1490, %v1527
      %v1584 = vmul.f32 %v1494, %v1527
      %v1585 = vmul.f32 %v1498, %v1527
      %v1586 = vmul.f32 %v1502, %v1527
      %v1587 = vmul.f32 %v1506, %v1527
      %v1588 = vmul.f32 %v1510, %v1527
      %v1589 = vmul.f32 %v1514, %v1527
      %v1590 = vmul.f32 %v1518, %v1527
      %v1591 = vmul.f32 %v1522, %v1527
      %v1592 = vadd.f32 %v1204, %v1528
      %v1593 = vadd.f32 %v1205, %v1529
      %v1594 = vadd.f32 %v1206, %v1530
      %v1595 = vadd.f32 %v1207, %v1531
      %v1596 = vadd.f32 %v1208, %v1532
      %v1597 = vadd.f32 %v1209, %v1533
      %v1598 = vadd.f32 %v1210, %v1534
      %v1599 = vadd.f32 %v1211, %v1535
      %v1600 = vadd.f32 %v1212, %v1536
      %v1601 = vadd.f32 %v1213, %v1537
      %v1602 = vadd.f32 %v1214, %v1538
      %v1603 = vadd.f32 %v1215, %v1539
      %v1604 = vadd.f32 %v1216, %v1540
      %v1605 = vadd.f32 %v1217, %v1541
      %v1606 = vadd.f32 %v1218, %v1542
      %v1607 = vadd.f32 %v1219, %v1543
      %v1608 = vadd.f32 %v1220, %v1544
      %v1609 = vadd.f32 %v1221, %v1545
      %v1610 = vadd.f32 %v1222, %v1546
      %v1611 = vadd.f32 %v1223, %v1547
      %v1612 = vadd.f32 %v1224, %v1548
      %v1613 = vadd.f32 %v1225, %v1549
      %v1614 = vadd.f32 %v1226, %v1550
      %v1615 = vadd.f32 %v1227, %v1551
      %v1616 = vadd.f32 %v1228, %v1552
      %v1617 = vadd.f32 %v1229, %v1553
      %v1618 = vadd.f32 %v1230, %v1554
      %v1619 = vadd.f32 %v1231, %v1555
      %v1620 = vadd.f32 %v1232, %v1556
      %v1621 = vadd.f32 %v1233, %v1557
      %v1622 = vadd.f32 %v1234, %v1558
      %v1623 = vadd.f32 %v1235, %v1559
      %v1624 = vadd.f32 %v1236, %v1560
      %v1625 = vadd.f32 %v1237, %v1561
      %v1626 = vadd.f32 %v1238, %v1562
      %v1627 = vadd.f32 %v1239, %v1563
      %v1628 = vadd.f32 %v1240, %v1564
      %v1629 = vadd.f32 %v1241, %v1565
      %v1630 = vadd.f32 %v1242, %v1566
      %v1631 = vadd.f32 %v1243, %v1567
      %v1632 = vadd.f32 %v1244, %v1568
      %v1633 = vadd.f32 %v1245, %v1569
      %v1634 = vadd.f32 %v1246, %v1570
      %v1635 = vadd.f32 %v1247, %v1571
      %v1636 = vadd.f32 %v1248, %v1572
      %v1637 = vadd.f32 %v1249, %v1573
      %v1638 = vadd.f32 %v1250, %v1574
      %v1639 = vadd.f32 %v1251, %v1575
      %v1640 = vadd.f32 %v1252, %v1576
      %v1641 = vadd.f32 %v1253, %v1577
      %v1642 = vadd.f32 %v1254, %v1578
      %v1643 = vadd.f32 %v1255, %v1579
      %v1644 = vadd.f32 %v1256, %v1580
      %v1645 = vadd.f32 %v1257, %v1581
      %v1646 = vadd.f32 %v1258, %v1582
      %v1647 = vadd.f32 %v1259, %v1583
      %v1648 = vadd.f32 %v1260, %v1584
      %v1649 = vadd.f32 %v1261, %v1585
      %v1650 = vadd.f32 %v1262, %v1586
      %v1651 = vadd.f32 %v1263, %v1587
      %v1652 = vadd.f32 %v1264, %v1588
      %v1653 = vadd.f32 %v1265, %v1589
      %v1654 = vadd.f32 %v1266, %v1590
      %v1655 = vadd.f32 %v1267, %v1591
      %1656 = vset.pattern.permute.xlu0 3
      %1657 = vperm.xlu0 %1656, %v356
      %v1658 = vpop.permute.xlu0 %1657
      %1660 = vset.pattern.permute.xlu0 3
      %1661 = vperm.xlu0 %1660, %v357
      %v1662 = vpop.permute.xlu0 %1661
      %1664 = vset.pattern.permute.xlu0 3
      %1665 = vperm.xlu0 %1664, %v358
      %v1666 = vpop.permute.xlu0 %1665
      %1668 = vset.pattern.permute.xlu0 3
      %1669 = vperm.xlu0 %1668, %v359
      %v1670 = vpop.permute.xlu0 %1669
      %1672 = vset.pattern.permute.xlu0 3
      %1673 = vperm.xlu0 %1672, %v360
      %v1674 = vpop.permute.xlu0 %1673
      %1676 = vset.pattern.permute.xlu0 3
      %1677 = vperm.xlu0 %1676, %v361
      %v1678 = vpop.permute.xlu0 %1677
      %1680 = vset.pattern.permute.xlu0 3
      %1681 = vperm.xlu0 %1680, %v362
      %v1682 = vpop.permute.xlu0 %1681
      %1684 = vset.pattern.permute.xlu0 3
      %1685 = vperm.xlu0 %1684, %v363
      %v1686 = vpop.permute.xlu0 %1685
      %1688 = vset.pattern.permute.xlu0 3
      %1689 = vperm.xlu0 %1688, %v364
      %v1690 = vpop.permute.xlu0 %1689
      %1692 = vset.pattern.permute.xlu0 3
      %1693 = vperm.xlu0 %1692, %v365
      %v1694 = vpop.permute.xlu0 %1693
      %1696 = vset.pattern.permute.xlu0 3
      %1697 = vperm.xlu0 %1696, %v366
      %v1698 = vpop.permute.xlu0 %1697
      %1700 = vset.pattern.permute.xlu0 3
      %1701 = vperm.xlu0 %1700, %v367
      %v1702 = vpop.permute.xlu0 %1701
      %1704 = vset.pattern.permute.xlu0 3
      %1705 = vperm.xlu0 %1704, %v368
      %v1706 = vpop.permute.xlu0 %1705
      %1708 = vset.pattern.permute.xlu0 3
      %1709 = vperm.xlu0 %1708, %v369
      %v1710 = vpop.permute.xlu0 %1709
      %1712 = vset.pattern.permute.xlu0 3
      %1713 = vperm.xlu0 %1712, %v370
      %v1714 = vpop.permute.xlu0 %1713
      %1716 = vset.pattern.permute.xlu0 3
      %1717 = vperm.xlu0 %1716, %v371
      %v1718 = vpop.permute.xlu0 %1717
      %1720 = vset.pattern.permute.xlu0 3
      %1721 = vperm.xlu0 %1720, %v372
      %v1722 = vpop.permute.xlu0 %1721
      %1724 = vset.pattern.permute.xlu0 3
      %1725 = vperm.xlu0 %1724, %v373
      %v1726 = vpop.permute.xlu0 %1725
      %1728 = vset.pattern.permute.xlu0 3
      %1729 = vperm.xlu0 %1728, %v374
      %v1730 = vpop.permute.xlu0 %1729
      %1732 = vset.pattern.permute.xlu0 3
      %1733 = vperm.xlu0 %1732, %v375
      %v1734 = vpop.permute.xlu0 %1733
      %1736 = vset.pattern.permute.xlu0 3
      %1737 = vperm.xlu0 %1736, %v376
      %v1738 = vpop.permute.xlu0 %1737
      %1740 = vset.pattern.permute.xlu0 3
      %1741 = vperm.xlu0 %1740, %v377
      %v1742 = vpop.permute.xlu0 %1741
      %1744 = vset.pattern.permute.xlu0 3
      %1745 = vperm.xlu0 %1744, %v378
      %v1746 = vpop.permute.xlu0 %1745
      %1748 = vset.pattern.permute.xlu0 3
      %1749 = vperm.xlu0 %1748, %v379
      %v1750 = vpop.permute.xlu0 %1749
      %1752 = vset.pattern.permute.xlu0 3
      %1753 = vperm.xlu0 %1752, %v380
      %v1754 = vpop.permute.xlu0 %1753
      %1756 = vset.pattern.permute.xlu0 3
      %1757 = vperm.xlu0 %1756, %v381
      %v1758 = vpop.permute.xlu0 %1757
      %1760 = vset.pattern.permute.xlu0 3
      %1761 = vperm.xlu0 %1760, %v382
      %v1762 = vpop.permute.xlu0 %1761
      %1764 = vset.pattern.permute.xlu0 3
      %1765 = vperm.xlu0 %1764, %v383
      %v1766 = vpop.permute.xlu0 %1765
      %1768 = vset.pattern.permute.xlu0 3
      %1769 = vperm.xlu0 %1768, %v384
      %v1770 = vpop.permute.xlu0 %1769
      %1772 = vset.pattern.permute.xlu0 3
      %1773 = vperm.xlu0 %1772, %v385
      %v1774 = vpop.permute.xlu0 %1773
      %1776 = vset.pattern.permute.xlu0 3
      %1777 = vperm.xlu0 %1776, %v386
      %v1778 = vpop.permute.xlu0 %1777
      %1780 = vset.pattern.permute.xlu0 3
      %1781 = vperm.xlu0 %1780, %v387
      %v1782 = vpop.permute.xlu0 %1781
      %1784 = vset.pattern.permute.xlu0 3
      %1785 = vperm.xlu0 %1784, %v388
      %v1786 = vpop.permute.xlu0 %1785
      %1788 = vset.pattern.permute.xlu0 3
      %1789 = vperm.xlu0 %1788, %v389
      %v1790 = vpop.permute.xlu0 %1789
      %1792 = vset.pattern.permute.xlu0 3
      %1793 = vperm.xlu0 %1792, %v390
      %v1794 = vpop.permute.xlu0 %1793
      %1796 = vset.pattern.permute.xlu0 3
      %1797 = vperm.xlu0 %1796, %v391
      %v1798 = vpop.permute.xlu0 %1797
      %1800 = vset.pattern.permute.xlu0 3
      %1801 = vperm.xlu0 %1800, %v392
      %v1802 = vpop.permute.xlu0 %1801
      %1804 = vset.pattern.permute.xlu0 3
      %1805 = vperm.xlu0 %1804, %v393
      %v1806 = vpop.permute.xlu0 %1805
      %1808 = vset.pattern.permute.xlu0 3
      %1809 = vperm.xlu0 %1808, %v394
      %v1810 = vpop.permute.xlu0 %1809
      %1812 = vset.pattern.permute.xlu0 3
      %1813 = vperm.xlu0 %1812, %v395
      %v1814 = vpop.permute.xlu0 %1813
      %1816 = vset.pattern.permute.xlu0 3
      %1817 = vperm.xlu0 %1816, %v396
      %v1818 = vpop.permute.xlu0 %1817
      %1820 = vset.pattern.permute.xlu0 3
      %1821 = vperm.xlu0 %1820, %v397
      %v1822 = vpop.permute.xlu0 %1821
      %1824 = vset.pattern.permute.xlu0 3
      %1825 = vperm.xlu0 %1824, %v398
      %v1826 = vpop.permute.xlu0 %1825
      %1828 = vset.pattern.permute.xlu0 3
      %1829 = vperm.xlu0 %1828, %v399
      %v1830 = vpop.permute.xlu0 %1829
      %1832 = vset.pattern.permute.xlu0 3
      %1833 = vperm.xlu0 %1832, %v400
      %v1834 = vpop.permute.xlu0 %1833
      %1836 = vset.pattern.permute.xlu0 3
      %1837 = vperm.xlu0 %1836, %v401
      %v1838 = vpop.permute.xlu0 %1837
      %1840 = vset.pattern.permute.xlu0 3
      %1841 = vperm.xlu0 %1840, %v402
      %v1842 = vpop.permute.xlu0 %1841
      %1844 = vset.pattern.permute.xlu0 3
      %1845 = vperm.xlu0 %1844, %v403
      %v1846 = vpop.permute.xlu0 %1845
      %1848 = vset.pattern.permute.xlu0 3
      %1849 = vperm.xlu0 %1848, %v404
      %v1850 = vpop.permute.xlu0 %1849
      %1852 = vset.pattern.permute.xlu0 3
      %1853 = vperm.xlu0 %1852, %v405
      %v1854 = vpop.permute.xlu0 %1853
      %1856 = vset.pattern.permute.xlu0 3
      %1857 = vperm.xlu0 %1856, %v406
      %v1858 = vpop.permute.xlu0 %1857
      %1860 = vset.pattern.permute.xlu0 3
      %1861 = vperm.xlu0 %1860, %v407
      %v1862 = vpop.permute.xlu0 %1861
      %1864 = vset.pattern.permute.xlu0 3
      %1865 = vperm.xlu0 %1864, %v408
      %v1866 = vpop.permute.xlu0 %1865
      %1868 = vset.pattern.permute.xlu0 3
      %1869 = vperm.xlu0 %1868, %v409
      %v1870 = vpop.permute.xlu0 %1869
      %1872 = vset.pattern.permute.xlu0 3
      %1873 = vperm.xlu0 %1872, %v410
      %v1874 = vpop.permute.xlu0 %1873
      %1876 = vset.pattern.permute.xlu0 3
      %1877 = vperm.xlu0 %1876, %v411
      %v1878 = vpop.permute.xlu0 %1877
      %1880 = vset.pattern.permute.xlu0 3
      %1881 = vperm.xlu0 %1880, %v412
      %v1882 = vpop.permute.xlu0 %1881
      %1884 = vset.pattern.permute.xlu0 3
      %1885 = vperm.xlu0 %1884, %v413
      %v1886 = vpop.permute.xlu0 %1885
      %1888 = vset.pattern.permute.xlu0 3
      %1889 = vperm.xlu0 %1888, %v414
      %v1890 = vpop.permute.xlu0 %1889
      %1892 = vset.pattern.permute.xlu0 3
      %1893 = vperm.xlu0 %1892, %v415
      %v1894 = vpop.permute.xlu0 %1893
      %1896 = vset.pattern.permute.xlu0 3
      %1897 = vperm.xlu0 %1896, %v416
      %v1898 = vpop.permute.xlu0 %1897
      %1900 = vset.pattern.permute.xlu0 3
      %1901 = vperm.xlu0 %1900, %v417
      %v1902 = vpop.permute.xlu0 %1901
      %1904 = vset.pattern.permute.xlu0 3
      %1905 = vperm.xlu0 %1904, %v418
      %v1906 = vpop.permute.xlu0 %1905
      %1908 = vset.pattern.permute.xlu0 3
      %1909 = vperm.xlu0 %1908, %v419
      %v1910 = vpop.permute.xlu0 %1909
      %v1912 = vlaneseq
      %v1913 = vshrl.u32 %v1912, 7
      %v1914 = vsub.s32 3, %v1913
      %v1915 = vrot.slane %v420, %v1914
      %v1916 = vmul.f32 %v1658, %v1915
      %v1917 = vmul.f32 %v1662, %v1915
      %v1918 = vmul.f32 %v1666, %v1915
      %v1919 = vmul.f32 %v1670, %v1915
      %v1920 = vmul.f32 %v1674, %v1915
      %v1921 = vmul.f32 %v1678, %v1915
      %v1922 = vmul.f32 %v1682, %v1915
      %v1923 = vmul.f32 %v1686, %v1915
      %v1924 = vmul.f32 %v1690, %v1915
      %v1925 = vmul.f32 %v1694, %v1915
      %v1926 = vmul.f32 %v1698, %v1915
      %v1927 = vmul.f32 %v1702, %v1915
      %v1928 = vmul.f32 %v1706, %v1915
      %v1929 = vmul.f32 %v1710, %v1915
      %v1930 = vmul.f32 %v1714, %v1915
      %v1931 = vmul.f32 %v1718, %v1915
      %v1932 = vmul.f32 %v1722, %v1915
      %v1933 = vmul.f32 %v1726, %v1915
      %v1934 = vmul.f32 %v1730, %v1915
      %v1935 = vmul.f32 %v1734, %v1915
      %v1936 = vmul.f32 %v1738, %v1915
      %v1937 = vmul.f32 %v1742, %v1915
      %v1938 = vmul.f32 %v1746, %v1915
      %v1939 = vmul.f32 %v1750, %v1915
      %v1940 = vmul.f32 %v1754, %v1915
      %v1941 = vmul.f32 %v1758, %v1915
      %v1942 = vmul.f32 %v1762, %v1915
      %v1943 = vmul.f32 %v1766, %v1915
      %v1944 = vmul.f32 %v1770, %v1915
      %v1945 = vmul.f32 %v1774, %v1915
      %v1946 = vmul.f32 %v1778, %v1915
      %v1947 = vmul.f32 %v1782, %v1915
      %v1948 = vmul.f32 %v1786, %v1915
      %v1949 = vmul.f32 %v1790, %v1915
      %v1950 = vmul.f32 %v1794, %v1915
      %v1951 = vmul.f32 %v1798, %v1915
      %v1952 = vmul.f32 %v1802, %v1915
      %v1953 = vmul.f32 %v1806, %v1915
      %v1954 = vmul.f32 %v1810, %v1915
      %v1955 = vmul.f32 %v1814, %v1915
      %v1956 = vmul.f32 %v1818, %v1915
      %v1957 = vmul.f32 %v1822, %v1915
      %v1958 = vmul.f32 %v1826, %v1915
      %v1959 = vmul.f32 %v1830, %v1915
      %v1960 = vmul.f32 %v1834, %v1915
      %v1961 = vmul.f32 %v1838, %v1915
      %v1962 = vmul.f32 %v1842, %v1915
      %v1963 = vmul.f32 %v1846, %v1915
      %v1964 = vmul.f32 %v1850, %v1915
      %v1965 = vmul.f32 %v1854, %v1915
      %v1966 = vmul.f32 %v1858, %v1915
      %v1967 = vmul.f32 %v1862, %v1915
      %v1968 = vmul.f32 %v1866, %v1915
      %v1969 = vmul.f32 %v1870, %v1915
      %v1970 = vmul.f32 %v1874, %v1915
      %v1971 = vmul.f32 %v1878, %v1915
      %v1972 = vmul.f32 %v1882, %v1915
      %v1973 = vmul.f32 %v1886, %v1915
      %v1974 = vmul.f32 %v1890, %v1915
      %v1975 = vmul.f32 %v1894, %v1915
      %v1976 = vmul.f32 %v1898, %v1915
      %v1977 = vmul.f32 %v1902, %v1915
      %v1978 = vmul.f32 %v1906, %v1915
      %v1979 = vmul.f32 %v1910, %v1915
      %v1980 = vadd.f32 %v1592, %v1916
      %v1981 = vadd.f32 %v1593, %v1917
      %v1982 = vadd.f32 %v1594, %v1918
      %v1983 = vadd.f32 %v1595, %v1919
      %v1984 = vadd.f32 %v1596, %v1920
      %v1985 = vadd.f32 %v1597, %v1921
      %v1986 = vadd.f32 %v1598, %v1922
      %v1987 = vadd.f32 %v1599, %v1923
      %v1988 = vadd.f32 %v1600, %v1924
      %v1989 = vadd.f32 %v1601, %v1925
      %v1990 = vadd.f32 %v1602, %v1926
      %v1991 = vadd.f32 %v1603, %v1927
      %v1992 = vadd.f32 %v1604, %v1928
      %v1993 = vadd.f32 %v1605, %v1929
      %v1994 = vadd.f32 %v1606, %v1930
      %v1995 = vadd.f32 %v1607, %v1931
      %v1996 = vadd.f32 %v1608, %v1932
      %v1997 = vadd.f32 %v1609, %v1933
      %v1998 = vadd.f32 %v1610, %v1934
      %v1999 = vadd.f32 %v1611, %v1935
      %v2000 = vadd.f32 %v1612, %v1936
      %v2001 = vadd.f32 %v1613, %v1937
      %v2002 = vadd.f32 %v1614, %v1938
      %v2003 = vadd.f32 %v1615, %v1939
      %v2004 = vadd.f32 %v1616, %v1940
      %v2005 = vadd.f32 %v1617, %v1941
      %v2006 = vadd.f32 %v1618, %v1942
      %v2007 = vadd.f32 %v1619, %v1943
      %v2008 = vadd.f32 %v1620, %v1944
      %v2009 = vadd.f32 %v1621, %v1945
      %v2010 = vadd.f32 %v1622, %v1946
      %v2011 = vadd.f32 %v1623, %v1947
      %v2012 = vadd.f32 %v1624, %v1948
      %v2013 = vadd.f32 %v1625, %v1949
      %v2014 = vadd.f32 %v1626, %v1950
      %v2015 = vadd.f32 %v1627, %v1951
      %v2016 = vadd.f32 %v1628, %v1952
      %v2017 = vadd.f32 %v1629, %v1953
      %v2018 = vadd.f32 %v1630, %v1954
      %v2019 = vadd.f32 %v1631, %v1955
      %v2020 = vadd.f32 %v1632, %v1956
      %v2021 = vadd.f32 %v1633, %v1957
      %v2022 = vadd.f32 %v1634, %v1958
      %v2023 = vadd.f32 %v1635, %v1959
      %v2024 = vadd.f32 %v1636, %v1960
      %v2025 = vadd.f32 %v1637, %v1961
      %v2026 = vadd.f32 %v1638, %v1962
      %v2027 = vadd.f32 %v1639, %v1963
      %v2028 = vadd.f32 %v1640, %v1964
      %v2029 = vadd.f32 %v1641, %v1965
      %v2030 = vadd.f32 %v1642, %v1966
      %v2031 = vadd.f32 %v1643, %v1967
      %v2032 = vadd.f32 %v1644, %v1968
      %v2033 = vadd.f32 %v1645, %v1969
      %v2034 = vadd.f32 %v1646, %v1970
      %v2035 = vadd.f32 %v1647, %v1971
      %v2036 = vadd.f32 %v1648, %v1972
      %v2037 = vadd.f32 %v1649, %v1973
      %v2038 = vadd.f32 %v1650, %v1974
      %v2039 = vadd.f32 %v1651, %v1975
      %v2040 = vadd.f32 %v1652, %v1976
      %v2041 = vadd.f32 %v1653, %v1977
      %v2042 = vadd.f32 %v1654, %v1978
      %v2043 = vadd.f32 %v1655, %v1979
      %vm2044 = vcmask 261120
      %2045 = vst.msk [vmem:[%s346] sm:$0xff] %vm2044, %v1980
      %2046 = vst.msk [vmem:[%s346 + $0x8] sm:$0xff] %vm2044, %v1981
      %2047 = vst.msk [vmem:[%s346 + $0x10] sm:$0xff] %vm2044, %v1982
      %2048 = vst.msk [vmem:[%s346 + $0x18] sm:$0xff] %vm2044, %v1983
      %2049 = vst.msk [vmem:[%s346 + $0x20] sm:$0xff] %vm2044, %v1984
      %2050 = vst.msk [vmem:[%s346 + $0x28] sm:$0xff] %vm2044, %v1985
      %2051 = vst.msk [vmem:[%s346 + $0x30] sm:$0xff] %vm2044, %v1986
      %2052 = vst.msk [vmem:[%s346 + $0x38] sm:$0xff] %vm2044, %v1987
      %2053 = vst.msk [vmem:[%s346 + $0x40] sm:$0xff] %vm2044, %v1988
      %2054 = vst.msk [vmem:[%s346 + $0x48] sm:$0xff] %vm2044, %v1989
      %2055 = vst.msk [vmem:[%s346 + $0x50] sm:$0xff] %vm2044, %v1990
      %2056 = vst.msk [vmem:[%s346 + $0x58] sm:$0xff] %vm2044, %v1991
      %2057 = vst.msk [vmem:[%s346 + $0x60] sm:$0xff] %vm2044, %v1992
      %2058 = vst.msk [vmem:[%s346 + $0x68] sm:$0xff] %vm2044, %v1993
      %2059 = vst.msk [vmem:[%s346 + $0x70] sm:$0xff] %vm2044, %v1994
      %2060 = vst.msk [vmem:[%s346 + $0x78] sm:$0xff] %vm2044, %v1995
      %2061 = vst.msk [vmem:[%s346 + $0x80] sm:$0xff] %vm2044, %v1996
      %2062 = vst.msk [vmem:[%s346 + $0x88] sm:$0xff] %vm2044, %v1997
      %2063 = vst.msk [vmem:[%s346 + $0x90] sm:$0xff] %vm2044, %v1998
      %2064 = vst.msk [vmem:[%s346 + $0x98] sm:$0xff] %vm2044, %v1999
      %2065 = vst.msk [vmem:[%s346 + $0xa0] sm:$0xff] %vm2044, %v2000
      %2066 = vst.msk [vmem:[%s346 + $0xa8] sm:$0xff] %vm2044, %v2001
      %2067 = vst.msk [vmem:[%s346 + $0xb0] sm:$0xff] %vm2044, %v2002
      %2068 = vst.msk [vmem:[%s346 + $0xb8] sm:$0xff] %vm2044, %v2003
      %2069 = vst.msk [vmem:[%s346 + $0xc0] sm:$0xff] %vm2044, %v2004
      %2070 = vst.msk [vmem:[%s346 + $0xc8] sm:$0xff] %vm2044, %v2005
      %2071 = vst.msk [vmem:[%s346 + $0xd0] sm:$0xff] %vm2044, %v2006
      %2072 = vst.msk [vmem:[%s346 + $0xd8] sm:$0xff] %vm2044, %v2007
      %2073 = vst.msk [vmem:[%s346 + $0xe0] sm:$0xff] %vm2044, %v2008
      %2074 = vst.msk [vmem:[%s346 + $0xe8] sm:$0xff] %vm2044, %v2009
      %2075 = vst.msk [vmem:[%s346 + $0xf0] sm:$0xff] %vm2044, %v2010
      %2076 = vst.msk [vmem:[%s346 + $0xf8] sm:$0xff] %vm2044, %v2011
      %2077 = vst.msk [vmem:[%s346 + $0x100] sm:$0xff] %vm2044, %v2012
      %2078 = vst.msk [vmem:[%s346 + $0x108] sm:$0xff] %vm2044, %v2013
      %2079 = vst.msk [vmem:[%s346 + $0x110] sm:$0xff] %vm2044, %v2014
      %2080 = vst.msk [vmem:[%s346 + $0x118] sm:$0xff] %vm2044, %v2015
      %2081 = vst.msk [vmem:[%s346 + $0x120] sm:$0xff] %vm2044, %v2016
      %2082 = vst.msk [vmem:[%s346 + $0x128] sm:$0xff] %vm2044, %v2017
      %2083 = vst.msk [vmem:[%s346 + $0x130] sm:$0xff] %vm2044, %v2018
      %2084 = vst.msk [vmem:[%s346 + $0x138] sm:$0xff] %vm2044, %v2019
      %2085 = vst.msk [vmem:[%s346 + $0x140] sm:$0xff] %vm2044, %v2020
      %2086 = vst.msk [vmem:[%s346 + $0x148] sm:$0xff] %vm2044, %v2021
      %2087 = vst.msk [vmem:[%s346 + $0x150] sm:$0xff] %vm2044, %v2022
      %2088 = vst.msk [vmem:[%s346 + $0x158] sm:$0xff] %vm2044, %v2023
      %2089 = vst.msk [vmem:[%s346 + $0x160] sm:$0xff] %vm2044, %v2024
      %2090 = vst.msk [vmem:[%s346 + $0x168] sm:$0xff] %vm2044, %v2025
      %2091 = vst.msk [vmem:[%s346 + $0x170] sm:$0xff] %vm2044, %v2026
      %2092 = vst.msk [vmem:[%s346 + $0x178] sm:$0xff] %vm2044, %v2027
      %2093 = vst.msk [vmem:[%s346 + $0x180] sm:$0xff] %vm2044, %v2028
      %2094 = vst.msk [vmem:[%s346 + $0x188] sm:$0xff] %vm2044, %v2029
      %2095 = vst.msk [vmem:[%s346 + $0x190] sm:$0xff] %vm2044, %v2030
      %2096 = vst.msk [vmem:[%s346 + $0x198] sm:$0xff] %vm2044, %v2031
      %2097 = vst.msk [vmem:[%s346 + $0x1a0] sm:$0xff] %vm2044, %v2032
      %2098 = vst.msk [vmem:[%s346 + $0x1a8] sm:$0xff] %vm2044, %v2033
      %2099 = vst.msk [vmem:[%s346 + $0x1b0] sm:$0xff] %vm2044, %v2034
      %2100 = vst.msk [vmem:[%s346 + $0x1b8] sm:$0xff] %vm2044, %v2035
      %2101 = vst.msk [vmem:[%s346 + $0x1c0] sm:$0xff] %vm2044, %v2036
      %2102 = vst.msk [vmem:[%s346 + $0x1c8] sm:$0xff] %vm2044, %v2037
      %2103 = vst.msk [vmem:[%s346 + $0x1d0] sm:$0xff] %vm2044, %v2038
      %2104 = vst.msk [vmem:[%s346 + $0x1d8] sm:$0xff] %vm2044, %v2039
      %2105 = vst.msk [vmem:[%s346 + $0x1e0] sm:$0xff] %vm2044, %v2040
      %2106 = vst.msk [vmem:[%s346 + $0x1e8] sm:$0xff] %vm2044, %v2041
      %2107 = vst.msk [vmem:[%s346 + $0x1f0] sm:$0xff] %vm2044, %v2042
      %2108 = vst.msk [vmem:[%s346 + $0x1f8] sm:$0xff] %vm2044, %v2043
      %v2109 = vld [vmem:[%s339] sm:$0xff]
      %v2110 = vld [vmem:[%s339 + $0x8] sm:$0xff]
      %v2111 = vld [vmem:[%s339 + $0x10] sm:$0xff]
      %v2112 = vld [vmem:[%s339 + $0x18] sm:$0xff]
      %v2113 = vld [vmem:[%s339 + $0x20] sm:$0xff]
      %v2114 = vld [vmem:[%s339 + $0x28] sm:$0xff]
      %v2115 = vld [vmem:[%s339 + $0x30] sm:$0xff]
      %v2116 = vld [vmem:[%s339 + $0x38] sm:$0xff]
      %v2117 = vld [vmem:[%s339 + $0x40] sm:$0xff]
      %v2118 = vld [vmem:[%s339 + $0x48] sm:$0xff]
      %v2119 = vld [vmem:[%s339 + $0x50] sm:$0xff]
      %v2120 = vld [vmem:[%s339 + $0x58] sm:$0xff]
      %v2121 = vld [vmem:[%s339 + $0x60] sm:$0xff]
      %v2122 = vld [vmem:[%s339 + $0x68] sm:$0xff]
      %v2123 = vld [vmem:[%s339 + $0x70] sm:$0xff]
      %v2124 = vld [vmem:[%s339 + $0x78] sm:$0xff]
      %v2125 = vld [vmem:[%s339 + $0x80] sm:$0xff]
      %v2126 = vld [vmem:[%s339 + $0x88] sm:$0xff]
      %v2127 = vld [vmem:[%s339 + $0x90] sm:$0xff]
      %v2128 = vld [vmem:[%s339 + $0x98] sm:$0xff]
      %v2129 = vld [vmem:[%s339 + $0xa0] sm:$0xff]
      %v2130 = vld [vmem:[%s339 + $0xa8] sm:$0xff]
      %v2131 = vld [vmem:[%s339 + $0xb0] sm:$0xff]
      %v2132 = vld [vmem:[%s339 + $0xb8] sm:$0xff]
      %v2133 = vld [vmem:[%s339 + $0xc0] sm:$0x3]
      %v2134 = vld [vmem:[%s339 + $0xc8] sm:$0x3]
      %v2135 = vld [vmem:[%s339 + $0xd0] sm:$0x3]
      %v2136 = vld [vmem:[%s339 + $0xd8] sm:$0x3]
      %v2137 = vld [vmem:[%s339 + $0xe0] sm:$0x3]
      %v2138 = vld [vmem:[%s339 + $0xe8] sm:$0x3]
      %v2139 = vld [vmem:[%s339 + $0xf0] sm:$0x3]
      %v2140 = vld [vmem:[%s339 + $0xf8] sm:$0x3]
      %v2141 = vld [vmem:[%s339 + $0x100] sm:$0xff]
      %v2142 = vld [vmem:[%s339 + $0x108] sm:$0xff]
      %v2143 = vld [vmem:[%s339 + $0x110] sm:$0xff]
      %v2144 = vld [vmem:[%s339 + $0x118] sm:$0xff]
      %v2145 = vld [vmem:[%s339 + $0x120] sm:$0xff]
      %v2146 = vld [vmem:[%s339 + $0x128] sm:$0xff]
      %v2147 = vld [vmem:[%s339 + $0x130] sm:$0xff]
      %v2148 = vld [vmem:[%s339 + $0x138] sm:$0xff]
      %v2149 = vld [vmem:[%s339 + $0x140] sm:$0xff]
      %v2150 = vld [vmem:[%s339 + $0x148] sm:$0xff]
      %v2151 = vld [vmem:[%s339 + $0x150] sm:$0xff]
      %v2152 = vld [vmem:[%s339 + $0x158] sm:$0xff]
      %v2153 = vld [vmem:[%s339 + $0x160] sm:$0xff]
      %v2154 = vld [vmem:[%s339 + $0x168] sm:$0xff]
      %v2155 = vld [vmem:[%s339 + $0x170] sm:$0xff]
      %v2156 = vld [vmem:[%s339 + $0x178] sm:$0xff]
      %v2157 = vld [vmem:[%s339 + $0x180] sm:$0xff]
      %v2158 = vld [vmem:[%s339 + $0x188] sm:$0xff]
      %v2159 = vld [vmem:[%s339 + $0x190] sm:$0xff]
      %v2160 = vld [vmem:[%s339 + $0x198] sm:$0xff]
      %v2161 = vld [vmem:[%s339 + $0x1a0] sm:$0xff]
      %v2162 = vld [vmem:[%s339 + $0x1a8] sm:$0xff]
      %v2163 = vld [vmem:[%s339 + $0x1b0] sm:$0xff]
      %v2164 = vld [vmem:[%s339 + $0x1b8] sm:$0xff]
      %v2165 = vld [vmem:[%s339 + $0x1c0] sm:$0x3]
      %v2166 = vld [vmem:[%s339 + $0x1c8] sm:$0x3]
      %v2167 = vld [vmem:[%s339 + $0x1d0] sm:$0x3]
      %v2168 = vld [vmem:[%s339 + $0x1d8] sm:$0x3]
      %v2169 = vld [vmem:[%s339 + $0x1e0] sm:$0x3]
      %v2170 = vld [vmem:[%s339 + $0x1e8] sm:$0x3]
      %v2171 = vld [vmem:[%s339 + $0x1f0] sm:$0x3]
      %v2172 = vld [vmem:[%s339 + $0x1f8] sm:$0x3]
      %v2237 = vcombine.low %v2109, %v2110
      %v2238 = vcombine.high %v2109, %v2110
      %v2239 = vcombine.low %v2111, %v2112
      %v2240 = vcombine.high %v2111, %v2112
      %v2242 = vunpack.c.l.s4 1983009808
      %v2243 = vunpack.c.0.s8 %v2242
      %v2244 = vlaneseq
      %v2245 = vshrl.u32 %v2244, 7
      %v2246 = vsub.s32 %v2243, %v2245
      %v2247 = vrot.slane %v2237, %v2246
      %v2249 = vunpack.c.l.s4 1983009808
      %v2250 = vunpack.c.0.s8 %v2249
      %v2251 = vlaneseq
      %v2252 = vshrl.u32 %v2251, 7
      %v2253 = vsub.s32 %v2250, %v2252
      %v2254 = vrot.slane %v2238, %v2253
      %v2256 = vunpack.c.l.s4 1983009808
      %v2257 = vunpack.c.0.s8 %v2256
      %v2258 = vlaneseq
      %v2259 = vshrl.u32 %v2258, 7
      %v2260 = vsub.s32 %v2257, %v2259
      %v2261 = vrot.slane %v2239, %v2260
      %v2263 = vunpack.c.l.s4 1983009808
      %v2264 = vunpack.c.0.s8 %v2263
      %v2265 = vlaneseq
      %v2266 = vshrl.u32 %v2265, 7
      %v2267 = vsub.s32 %v2264, %v2266
      %v2268 = vrot.slane %v2240, %v2267
      %v2269 = vcombine.low %v2247, %v2261
      %v2270 = vcombine.high %v2247, %v2261
      %v2271 = vcombine.low %v2254, %v2268
      %v2272 = vcombine.high %v2254, %v2268
      %v2273 = vcombine.low %v2113, %v2114
      %v2274 = vcombine.high %v2113, %v2114
      %v2275 = vcombine.low %v2115, %v2116
      %v2276 = vcombine.high %v2115, %v2116
      %v2278 = vunpack.c.l.s4 1983009808
      %v2279 = vunpack.c.0.s8 %v2278
      %v2280 = vlaneseq
      %v2281 = vshrl.u32 %v2280, 7
      %v2282 = vsub.s32 %v2279, %v2281
      %v2283 = vrot.slane %v2273, %v2282
      %v2285 = vunpack.c.l.s4 1983009808
      %v2286 = vunpack.c.0.s8 %v2285
      %v2287 = vlaneseq
      %v2288 = vshrl.u32 %v2287, 7
      %v2289 = vsub.s32 %v2286, %v2288
      %v2290 = vrot.slane %v2274, %v2289
      %v2292 = vunpack.c.l.s4 1983009808
      %v2293 = vunpack.c.0.s8 %v2292
      %v2294 = vlaneseq
      %v2295 = vshrl.u32 %v2294, 7
      %v2296 = vsub.s32 %v2293, %v2295
      %v2297 = vrot.slane %v2275, %v2296
      %v2299 = vunpack.c.l.s4 1983009808
      %v2300 = vunpack.c.0.s8 %v2299
      %v2301 = vlaneseq
      %v2302 = vshrl.u32 %v2301, 7
      %v2303 = vsub.s32 %v2300, %v2302
      %v2304 = vrot.slane %v2276, %v2303
      %v2305 = vcombine.low %v2283, %v2297
      %v2306 = vcombine.high %v2283, %v2297
      %v2307 = vcombine.low %v2290, %v2304
      %v2308 = vcombine.high %v2290, %v2304
      %v2309 = vcombine.low %v2117, %v2118
      %v2310 = vcombine.high %v2117, %v2118
      %v2311 = vcombine.low %v2119, %v2120
      %v2312 = vcombine.high %v2119, %v2120
      %v2314 = vunpack.c.l.s4 1983009808
      %v2315 = vunpack.c.0.s8 %v2314
      %v2316 = vlaneseq
      %v2317 = vshrl.u32 %v2316, 7
      %v2318 = vsub.s32 %v2315, %v2317
      %v2319 = vrot.slane %v2309, %v2318
      %v2321 = vunpack.c.l.s4 1983009808
      %v2322 = vunpack.c.0.s8 %v2321
      %v2323 = vlaneseq
      %v2324 = vshrl.u32 %v2323, 7
      %v2325 = vsub.s32 %v2322, %v2324
      %v2326 = vrot.slane %v2310, %v2325
      %v2328 = vunpack.c.l.s4 1983009808
      %v2329 = vunpack.c.0.s8 %v2328
      %v2330 = vlaneseq
      %v2331 = vshrl.u32 %v2330, 7
      %v2332 = vsub.s32 %v2329, %v2331
      %v2333 = vrot.slane %v2311, %v2332
      %v2335 = vunpack.c.l.s4 1983009808
      %v2336 = vunpack.c.0.s8 %v2335
      %v2337 = vlaneseq
      %v2338 = vshrl.u32 %v2337, 7
      %v2339 = vsub.s32 %v2336, %v2338
      %v2340 = vrot.slane %v2312, %v2339
      %v2341 = vcombine.low %v2319, %v2333
      %v2342 = vcombine.high %v2319, %v2333
      %v2343 = vcombine.low %v2326, %v2340
      %v2344 = vcombine.high %v2326, %v2340
      %v2345 = vcombine.low %v2121, %v2122
      %v2346 = vcombine.high %v2121, %v2122
      %v2347 = vcombine.low %v2123, %v2124
      %v2348 = vcombine.high %v2123, %v2124
      %v2350 = vunpack.c.l.s4 1983009808
      %v2351 = vunpack.c.0.s8 %v2350
      %v2352 = vlaneseq
      %v2353 = vshrl.u32 %v2352, 7
      %v2354 = vsub.s32 %v2351, %v2353
      %v2355 = vrot.slane %v2345, %v2354
      %v2357 = vunpack.c.l.s4 1983009808
      %v2358 = vunpack.c.0.s8 %v2357
      %v2359 = vlaneseq
      %v2360 = vshrl.u32 %v2359, 7
      %v2361 = vsub.s32 %v2358, %v2360
      %v2362 = vrot.slane %v2346, %v2361
      %v2364 = vunpack.c.l.s4 1983009808
      %v2365 = vunpack.c.0.s8 %v2364
      %v2366 = vlaneseq
      %v2367 = vshrl.u32 %v2366, 7
      %v2368 = vsub.s32 %v2365, %v2367
      %v2369 = vrot.slane %v2347, %v2368
      %v2371 = vunpack.c.l.s4 1983009808
      %v2372 = vunpack.c.0.s8 %v2371
      %v2373 = vlaneseq
      %v2374 = vshrl.u32 %v2373, 7
      %v2375 = vsub.s32 %v2372, %v2374
      %v2376 = vrot.slane %v2348, %v2375
      %v2377 = vcombine.low %v2355, %v2369
      %v2378 = vcombine.high %v2355, %v2369
      %v2379 = vcombine.low %v2362, %v2376
      %v2380 = vcombine.high %v2362, %v2376
      %v2381 = vcombine.low %v2125, %v2126
      %v2382 = vcombine.high %v2125, %v2126
      %v2383 = vcombine.low %v2127, %v2128
      %v2384 = vcombine.high %v2127, %v2128
      %v2386 = vunpack.c.l.s4 1983009808
      %v2387 = vunpack.c.0.s8 %v2386
      %v2388 = vlaneseq
      %v2389 = vshrl.u32 %v2388, 7
      %v2390 = vsub.s32 %v2387, %v2389
      %v2391 = vrot.slane %v2381, %v2390
      %v2393 = vunpack.c.l.s4 1983009808
      %v2394 = vunpack.c.0.s8 %v2393
      %v2395 = vlaneseq
      %v2396 = vshrl.u32 %v2395, 7
      %v2397 = vsub.s32 %v2394, %v2396
      %v2398 = vrot.slane %v2382, %v2397
      %v2400 = vunpack.c.l.s4 1983009808
      %v2401 = vunpack.c.0.s8 %v2400
      %v2402 = vlaneseq
      %v2403 = vshrl.u32 %v2402, 7
      %v2404 = vsub.s32 %v2401, %v2403
      %v2405 = vrot.slane %v2383, %v2404
      %v2407 = vunpack.c.l.s4 1983009808
      %v2408 = vunpack.c.0.s8 %v2407
      %v2409 = vlaneseq
      %v2410 = vshrl.u32 %v2409, 7
      %v2411 = vsub.s32 %v2408, %v2410
      %v2412 = vrot.slane %v2384, %v2411
      %v2413 = vcombine.low %v2391, %v2405
      %v2414 = vcombine.high %v2391, %v2405
      %v2415 = vcombine.low %v2398, %v2412
      %v2416 = vcombine.high %v2398, %v2412
      %v2417 = vcombine.low %v2129, %v2130
      %v2418 = vcombine.high %v2129, %v2130
      %v2419 = vcombine.low %v2131, %v2132
      %v2420 = vcombine.high %v2131, %v2132
      %v2422 = vunpack.c.l.s4 1983009808
      %v2423 = vunpack.c.0.s8 %v2422
      %v2424 = vlaneseq
      %v2425 = vshrl.u32 %v2424, 7
      %v2426 = vsub.s32 %v2423, %v2425
      %v2427 = vrot.slane %v2417, %v2426
      %v2429 = vunpack.c.l.s4 1983009808
      %v2430 = vunpack.c.0.s8 %v2429
      %v2431 = vlaneseq
      %v2432 = vshrl.u32 %v2431, 7
      %v2433 = vsub.s32 %v2430, %v2432
      %v2434 = vrot.slane %v2418, %v2433
      %v2436 = vunpack.c.l.s4 1983009808
      %v2437 = vunpack.c.0.s8 %v2436
      %v2438 = vlaneseq
      %v2439 = vshrl.u32 %v2438, 7
      %v2440 = vsub.s32 %v2437, %v2439
      %v2441 = vrot.slane %v2419, %v2440
      %v2443 = vunpack.c.l.s4 1983009808
      %v2444 = vunpack.c.0.s8 %v2443
      %v2445 = vlaneseq
      %v2446 = vshrl.u32 %v2445, 7
      %v2447 = vsub.s32 %v2444, %v2446
      %v2448 = vrot.slane %v2420, %v2447
      %v2449 = vcombine.low %v2427, %v2441
      %v2450 = vcombine.high %v2427, %v2441
      %v2451 = vcombine.low %v2434, %v2448
      %v2452 = vcombine.high %v2434, %v2448
      %v2453 = vcombine.low %v2133, %v2134
      %v2454 = vcombine.low %v2135, %v2136
      %v2456 = vunpack.c.l.s4 1983009808
      %v2457 = vunpack.c.0.s8 %v2456
      %v2458 = vlaneseq
      %v2459 = vshrl.u32 %v2458, 7
      %v2460 = vsub.s32 %v2457, %v2459
      %v2461 = vrot.slane %v2453, %v2460
      %v2463 = vunpack.c.l.s4 1983009808
      %v2464 = vunpack.c.0.s8 %v2463
      %v2465 = vlaneseq
      %v2466 = vshrl.u32 %v2465, 7
      %v2467 = vsub.s32 %v2464, %v2466
      %v2468 = vrot.slane %v2454, %v2467
      %v2469 = vcombine.low %v2461, %v2468
      %v2470 = vcombine.low %v2137, %v2138
      %v2471 = vcombine.low %v2139, %v2140
      %v2473 = vunpack.c.l.s4 1983009808
      %v2474 = vunpack.c.0.s8 %v2473
      %v2475 = vlaneseq
      %v2476 = vshrl.u32 %v2475, 7
      %v2477 = vsub.s32 %v2474, %v2476
      %v2478 = vrot.slane %v2470, %v2477
      %v2480 = vunpack.c.l.s4 1983009808
      %v2481 = vunpack.c.0.s8 %v2480
      %v2482 = vlaneseq
      %v2483 = vshrl.u32 %v2482, 7
      %v2484 = vsub.s32 %v2481, %v2483
      %v2485 = vrot.slane %v2471, %v2484
      %v2486 = vcombine.low %v2478, %v2485
      %v2487 = vcombine.low %v2141, %v2142
      %v2488 = vcombine.high %v2141, %v2142
      %v2489 = vcombine.low %v2143, %v2144
      %v2490 = vcombine.high %v2143, %v2144
      %v2492 = vunpack.c.l.s4 1983009808
      %v2493 = vunpack.c.0.s8 %v2492
      %v2494 = vlaneseq
      %v2495 = vshrl.u32 %v2494, 7
      %v2496 = vsub.s32 %v2493, %v2495
      %v2497 = vrot.slane %v2487, %v2496
      %v2499 = vunpack.c.l.s4 1983009808
      %v2500 = vunpack.c.0.s8 %v2499
      %v2501 = vlaneseq
      %v2502 = vshrl.u32 %v2501, 7
      %v2503 = vsub.s32 %v2500, %v2502
      %v2504 = vrot.slane %v2488, %v2503
      %v2506 = vunpack.c.l.s4 1983009808
      %v2507 = vunpack.c.0.s8 %v2506
      %v2508 = vlaneseq
      %v2509 = vshrl.u32 %v2508, 7
      %v2510 = vsub.s32 %v2507, %v2509
      %v2511 = vrot.slane %v2489, %v2510
      %v2513 = vunpack.c.l.s4 1983009808
      %v2514 = vunpack.c.0.s8 %v2513
      %v2515 = vlaneseq
      %v2516 = vshrl.u32 %v2515, 7
      %v2517 = vsub.s32 %v2514, %v2516
      %v2518 = vrot.slane %v2490, %v2517
      %v2519 = vcombine.low %v2497, %v2511
      %v2520 = vcombine.high %v2497, %v2511
      %v2521 = vcombine.low %v2504, %v2518
      %v2522 = vcombine.high %v2504, %v2518
      %v2523 = vcombine.low %v2145, %v2146
      %v2524 = vcombine.high %v2145, %v2146
      %v2525 = vcombine.low %v2147, %v2148
      %v2526 = vcombine.high %v2147, %v2148
      %v2528 = vunpack.c.l.s4 1983009808
      %v2529 = vunpack.c.0.s8 %v2528
      %v2530 = vlaneseq
      %v2531 = vshrl.u32 %v2530, 7
      %v2532 = vsub.s32 %v2529, %v2531
      %v2533 = vrot.slane %v2523, %v2532
      %v2535 = vunpack.c.l.s4 1983009808
      %v2536 = vunpack.c.0.s8 %v2535
      %v2537 = vlaneseq
      %v2538 = vshrl.u32 %v2537, 7
      %v2539 = vsub.s32 %v2536, %v2538
      %v2540 = vrot.slane %v2524, %v2539
      %v2542 = vunpack.c.l.s4 1983009808
      %v2543 = vunpack.c.0.s8 %v2542
      %v2544 = vlaneseq
      %v2545 = vshrl.u32 %v2544, 7
      %v2546 = vsub.s32 %v2543, %v2545
      %v2547 = vrot.slane %v2525, %v2546
      %v2549 = vunpack.c.l.s4 1983009808
      %v2550 = vunpack.c.0.s8 %v2549
      %v2551 = vlaneseq
      %v2552 = vshrl.u32 %v2551, 7
      %v2553 = vsub.s32 %v2550, %v2552
      %v2554 = vrot.slane %v2526, %v2553
      %v2555 = vcombine.low %v2533, %v2547
      %v2556 = vcombine.high %v2533, %v2547
      %v2557 = vcombine.low %v2540, %v2554
      %v2558 = vcombine.high %v2540, %v2554
      %v2559 = vcombine.low %v2149, %v2150
      %v2560 = vcombine.high %v2149, %v2150
      %v2561 = vcombine.low %v2151, %v2152
      %v2562 = vcombine.high %v2151, %v2152
      %v2564 = vunpack.c.l.s4 1983009808
      %v2565 = vunpack.c.0.s8 %v2564
      %v2566 = vlaneseq
      %v2567 = vshrl.u32 %v2566, 7
      %v2568 = vsub.s32 %v2565, %v2567
      %v2569 = vrot.slane %v2559, %v2568
      %v2571 = vunpack.c.l.s4 1983009808
      %v2572 = vunpack.c.0.s8 %v2571
      %v2573 = vlaneseq
      %v2574 = vshrl.u32 %v2573, 7
      %v2575 = vsub.s32 %v2572, %v2574
      %v2576 = vrot.slane %v2560, %v2575
      %v2578 = vunpack.c.l.s4 1983009808
      %v2579 = vunpack.c.0.s8 %v2578
      %v2580 = vlaneseq
      %v2581 = vshrl.u32 %v2580, 7
      %v2582 = vsub.s32 %v2579, %v2581
      %v2583 = vrot.slane %v2561, %v2582
      %v2585 = vunpack.c.l.s4 1983009808
      %v2586 = vunpack.c.0.s8 %v2585
      %v2587 = vlaneseq
      %v2588 = vshrl.u32 %v2587, 7
      %v2589 = vsub.s32 %v2586, %v2588
      %v2590 = vrot.slane %v2562, %v2589
      %v2591 = vcombine.low %v2569, %v2583
      %v2592 = vcombine.high %v2569, %v2583
      %v2593 = vcombine.low %v2576, %v2590
      %v2594 = vcombine.high %v2576, %v2590
      %v2595 = vcombine.low %v2153, %v2154
      %v2596 = vcombine.high %v2153, %v2154
      %v2597 = vcombine.low %v2155, %v2156
      %v2598 = vcombine.high %v2155, %v2156
      %v2600 = vunpack.c.l.s4 1983009808
      %v2601 = vunpack.c.0.s8 %v2600
      %v2602 = vlaneseq
      %v2603 = vshrl.u32 %v2602, 7
      %v2604 = vsub.s32 %v2601, %v2603
      %v2605 = vrot.slane %v2595, %v2604
      %v2607 = vunpack.c.l.s4 1983009808
      %v2608 = vunpack.c.0.s8 %v2607
      %v2609 = vlaneseq
      %v2610 = vshrl.u32 %v2609, 7
      %v2611 = vsub.s32 %v2608, %v2610
      %v2612 = vrot.slane %v2596, %v2611
      %v2614 = vunpack.c.l.s4 1983009808
      %v2615 = vunpack.c.0.s8 %v2614
      %v2616 = vlaneseq
      %v2617 = vshrl.u32 %v2616, 7
      %v2618 = vsub.s32 %v2615, %v2617
      %v2619 = vrot.slane %v2597, %v2618
      %v2621 = vunpack.c.l.s4 1983009808
      %v2622 = vunpack.c.0.s8 %v2621
      %v2623 = vlaneseq
      %v2624 = vshrl.u32 %v2623, 7
      %v2625 = vsub.s32 %v2622, %v2624
      %v2626 = vrot.slane %v2598, %v2625
      %v2627 = vcombine.low %v2605, %v2619
      %v2628 = vcombine.high %v2605, %v2619
      %v2629 = vcombine.low %v2612, %v2626
      %v2630 = vcombine.high %v2612, %v2626
      %v2631 = vcombine.low %v2157, %v2158
      %v2632 = vcombine.high %v2157, %v2158
      %v2633 = vcombine.low %v2159, %v2160
      %v2634 = vcombine.high %v2159, %v2160
      %v2636 = vunpack.c.l.s4 1983009808
      %v2637 = vunpack.c.0.s8 %v2636
      %v2638 = vlaneseq
      %v2639 = vshrl.u32 %v2638, 7
      %v2640 = vsub.s32 %v2637, %v2639
      %v2641 = vrot.slane %v2631, %v2640
      %v2643 = vunpack.c.l.s4 1983009808
      %v2644 = vunpack.c.0.s8 %v2643
      %v2645 = vlaneseq
      %v2646 = vshrl.u32 %v2645, 7
      %v2647 = vsub.s32 %v2644, %v2646
      %v2648 = vrot.slane %v2632, %v2647
      %v2650 = vunpack.c.l.s4 1983009808
      %v2651 = vunpack.c.0.s8 %v2650
      %v2652 = vlaneseq
      %v2653 = vshrl.u32 %v2652, 7
      %v2654 = vsub.s32 %v2651, %v2653
      %v2655 = vrot.slane %v2633, %v2654
      %v2657 = vunpack.c.l.s4 1983009808
      %v2658 = vunpack.c.0.s8 %v2657
      %v2659 = vlaneseq
      %v2660 = vshrl.u32 %v2659, 7
      %v2661 = vsub.s32 %v2658, %v2660
      %v2662 = vrot.slane %v2634, %v2661
      %v2663 = vcombine.low %v2641, %v2655
      %v2664 = vcombine.high %v2641, %v2655
      %v2665 = vcombine.low %v2648, %v2662
      %v2666 = vcombine.high %v2648, %v2662
      %v2667 = vcombine.low %v2161, %v2162
      %v2668 = vcombine.high %v2161, %v2162
      %v2669 = vcombine.low %v2163, %v2164
      %v2670 = vcombine.high %v2163, %v2164
      %v2672 = vunpack.c.l.s4 1983009808
      %v2673 = vunpack.c.0.s8 %v2672
      %v2674 = vlaneseq
      %v2675 = vshrl.u32 %v2674, 7
      %v2676 = vsub.s32 %v2673, %v2675
      %v2677 = vrot.slane %v2667, %v2676
      %v2679 = vunpack.c.l.s4 1983009808
      %v2680 = vunpack.c.0.s8 %v2679
      %v2681 = vlaneseq
      %v2682 = vshrl.u32 %v2681, 7
      %v2683 = vsub.s32 %v2680, %v2682
      %v2684 = vrot.slane %v2668, %v2683
      %v2686 = vunpack.c.l.s4 1983009808
      %v2687 = vunpack.c.0.s8 %v2686
      %v2688 = vlaneseq
      %v2689 = vshrl.u32 %v2688, 7
      %v2690 = vsub.s32 %v2687, %v2689
      %v2691 = vrot.slane %v2669, %v2690
      %v2693 = vunpack.c.l.s4 1983009808
      %v2694 = vunpack.c.0.s8 %v2693
      %v2695 = vlaneseq
      %v2696 = vshrl.u32 %v2695, 7
      %v2697 = vsub.s32 %v2694, %v2696
      %v2698 = vrot.slane %v2670, %v2697
      %v2699 = vcombine.low %v2677, %v2691
      %v2700 = vcombine.high %v2677, %v2691
      %v2701 = vcombine.low %v2684, %v2698
      %v2702 = vcombine.high %v2684, %v2698
      %v2703 = vcombine.low %v2165, %v2166
      %v2704 = vcombine.low %v2167, %v2168
      %v2706 = vunpack.c.l.s4 1983009808
      %v2707 = vunpack.c.0.s8 %v2706
      %v2708 = vlaneseq
      %v2709 = vshrl.u32 %v2708, 7
      %v2710 = vsub.s32 %v2707, %v2709
      %v2711 = vrot.slane %v2703, %v2710
      %v2713 = vunpack.c.l.s4 1983009808
      %v2714 = vunpack.c.0.s8 %v2713
      %v2715 = vlaneseq
      %v2716 = vshrl.u32 %v2715, 7
      %v2717 = vsub.s32 %v2714, %v2716
      %v2718 = vrot.slane %v2704, %v2717
      %v2719 = vcombine.low %v2711, %v2718
      %v2720 = vcombine.low %v2169, %v2170
      %v2721 = vcombine.low %v2171, %v2172
      %v2723 = vunpack.c.l.s4 1983009808
      %v2724 = vunpack.c.0.s8 %v2723
      %v2725 = vlaneseq
      %v2726 = vshrl.u32 %v2725, 7
      %v2727 = vsub.s32 %v2724, %v2726
      %v2728 = vrot.slane %v2720, %v2727
      %v2730 = vunpack.c.l.s4 1983009808
      %v2731 = vunpack.c.0.s8 %v2730
      %v2732 = vlaneseq
      %v2733 = vshrl.u32 %v2732, 7
      %v2734 = vsub.s32 %v2731, %v2733
      %v2735 = vrot.slane %v2721, %v2734
      %v2736 = vcombine.low %v2728, %v2735
      %v2737 = vcombine.low %v2269, %v2270
      %v2738 = vcombine.high %v2269, %v2270
      %v2739 = vcombine.low %v2271, %v2272
      %v2740 = vcombine.high %v2271, %v2272
      %v2742 = vunpack.c.l.s4 1983009808
      %v2743 = vunpack.c.0.s8 %v2742
      %v2744 = vlaneseq
      %v2745 = vshrl.u32 %v2744, 7
      %v2746 = vsub.s32 %v2743, %v2745
      %v2747 = vrot.slane %v2737, %v2746
      %v2749 = vunpack.c.l.s4 1983009808
      %v2750 = vunpack.c.0.s8 %v2749
      %v2751 = vlaneseq
      %v2752 = vshrl.u32 %v2751, 7
      %v2753 = vsub.s32 %v2750, %v2752
      %v2754 = vrot.slane %v2738, %v2753
      %v2756 = vunpack.c.l.s4 1983009808
      %v2757 = vunpack.c.0.s8 %v2756
      %v2758 = vlaneseq
      %v2759 = vshrl.u32 %v2758, 7
      %v2760 = vsub.s32 %v2757, %v2759
      %v2761 = vrot.slane %v2739, %v2760
      %v2763 = vunpack.c.l.s4 1983009808
      %v2764 = vunpack.c.0.s8 %v2763
      %v2765 = vlaneseq
      %v2766 = vshrl.u32 %v2765, 7
      %v2767 = vsub.s32 %v2764, %v2766
      %v2768 = vrot.slane %v2740, %v2767
      %v2769 = vcombine.low %v2747, %v2761
      %v2770 = vcombine.high %v2747, %v2761
      %v2771 = vcombine.low %v2754, %v2768
      %v2772 = vcombine.high %v2754, %v2768
      %v2773 = vcombine.low %v2305, %v2306
      %v2774 = vcombine.high %v2305, %v2306
      %v2775 = vcombine.low %v2307, %v2308
      %v2776 = vcombine.high %v2307, %v2308
      %v2778 = vunpack.c.l.s4 1983009808
      %v2779 = vunpack.c.0.s8 %v2778
      %v2780 = vlaneseq
      %v2781 = vshrl.u32 %v2780, 7
      %v2782 = vsub.s32 %v2779, %v2781
      %v2783 = vrot.slane %v2773, %v2782
      %v2785 = vunpack.c.l.s4 1983009808
      %v2786 = vunpack.c.0.s8 %v2785
      %v2787 = vlaneseq
      %v2788 = vshrl.u32 %v2787, 7
      %v2789 = vsub.s32 %v2786, %v2788
      %v2790 = vrot.slane %v2774, %v2789
      %v2792 = vunpack.c.l.s4 1983009808
      %v2793 = vunpack.c.0.s8 %v2792
      %v2794 = vlaneseq
      %v2795 = vshrl.u32 %v2794, 7
      %v2796 = vsub.s32 %v2793, %v2795
      %v2797 = vrot.slane %v2775, %v2796
      %v2799 = vunpack.c.l.s4 1983009808
      %v2800 = vunpack.c.0.s8 %v2799
      %v2801 = vlaneseq
      %v2802 = vshrl.u32 %v2801, 7
      %v2803 = vsub.s32 %v2800, %v2802
      %v2804 = vrot.slane %v2776, %v2803
      %v2805 = vcombine.low %v2783, %v2797
      %v2806 = vcombine.high %v2783, %v2797
      %v2807 = vcombine.low %v2790, %v2804
      %v2808 = vcombine.high %v2790, %v2804
      %v2809 = vcombine.low %v2341, %v2342
      %v2810 = vcombine.high %v2341, %v2342
      %v2811 = vcombine.low %v2343, %v2344
      %v2812 = vcombine.high %v2343, %v2344
      %v2814 = vunpack.c.l.s4 1983009808
      %v2815 = vunpack.c.0.s8 %v2814
      %v2816 = vlaneseq
      %v2817 = vshrl.u32 %v2816, 7
      %v2818 = vsub.s32 %v2815, %v2817
      %v2819 = vrot.slane %v2809, %v2818
      %v2821 = vunpack.c.l.s4 1983009808
      %v2822 = vunpack.c.0.s8 %v2821
      %v2823 = vlaneseq
      %v2824 = vshrl.u32 %v2823, 7
      %v2825 = vsub.s32 %v2822, %v2824
      %v2826 = vrot.slane %v2810, %v2825
      %v2828 = vunpack.c.l.s4 1983009808
      %v2829 = vunpack.c.0.s8 %v2828
      %v2830 = vlaneseq
      %v2831 = vshrl.u32 %v2830, 7
      %v2832 = vsub.s32 %v2829, %v2831
      %v2833 = vrot.slane %v2811, %v2832
      %v2835 = vunpack.c.l.s4 1983009808
      %v2836 = vunpack.c.0.s8 %v2835
      %v2837 = vlaneseq
      %v2838 = vshrl.u32 %v2837, 7
      %v2839 = vsub.s32 %v2836, %v2838
      %v2840 = vrot.slane %v2812, %v2839
      %v2841 = vcombine.low %v2819, %v2833
      %v2842 = vcombine.high %v2819, %v2833
      %v2843 = vcombine.low %v2826, %v2840
      %v2844 = vcombine.high %v2826, %v2840
      %v2845 = vcombine.low %v2377, %v2378
      %v2846 = vcombine.high %v2377, %v2378
      %v2847 = vcombine.low %v2379, %v2380
      %v2848 = vcombine.high %v2379, %v2380
      %v2850 = vunpack.c.l.s4 1983009808
      %v2851 = vunpack.c.0.s8 %v2850
      %v2852 = vlaneseq
      %v2853 = vshrl.u32 %v2852, 7
      %v2854 = vsub.s32 %v2851, %v2853
      %v2855 = vrot.slane %v2845, %v2854
      %v2857 = vunpack.c.l.s4 1983009808
      %v2858 = vunpack.c.0.s8 %v2857
      %v2859 = vlaneseq
      %v2860 = vshrl.u32 %v2859, 7
      %v2861 = vsub.s32 %v2858, %v2860
      %v2862 = vrot.slane %v2846, %v2861
      %v2864 = vunpack.c.l.s4 1983009808
      %v2865 = vunpack.c.0.s8 %v2864
      %v2866 = vlaneseq
      %v2867 = vshrl.u32 %v2866, 7
      %v2868 = vsub.s32 %v2865, %v2867
      %v2869 = vrot.slane %v2847, %v2868
      %v2871 = vunpack.c.l.s4 1983009808
      %v2872 = vunpack.c.0.s8 %v2871
      %v2873 = vlaneseq
      %v2874 = vshrl.u32 %v2873, 7
      %v2875 = vsub.s32 %v2872, %v2874
      %v2876 = vrot.slane %v2848, %v2875
      %v2877 = vcombine.low %v2855, %v2869
      %v2878 = vcombine.high %v2855, %v2869
      %v2879 = vcombine.low %v2862, %v2876
      %v2880 = vcombine.high %v2862, %v2876
      %v2881 = vcombine.low %v2413, %v2414
      %v2882 = vcombine.high %v2413, %v2414
      %v2883 = vcombine.low %v2415, %v2416
      %v2884 = vcombine.high %v2415, %v2416
      %v2886 = vunpack.c.l.s4 1983009808
      %v2887 = vunpack.c.0.s8 %v2886
      %v2888 = vlaneseq
      %v2889 = vshrl.u32 %v2888, 7
      %v2890 = vsub.s32 %v2887, %v2889
      %v2891 = vrot.slane %v2881, %v2890
      %v2893 = vunpack.c.l.s4 1983009808
      %v2894 = vunpack.c.0.s8 %v2893
      %v2895 = vlaneseq
      %v2896 = vshrl.u32 %v2895, 7
      %v2897 = vsub.s32 %v2894, %v2896
      %v2898 = vrot.slane %v2882, %v2897
      %v2900 = vunpack.c.l.s4 1983009808
      %v2901 = vunpack.c.0.s8 %v2900
      %v2902 = vlaneseq
      %v2903 = vshrl.u32 %v2902, 7
      %v2904 = vsub.s32 %v2901, %v2903
      %v2905 = vrot.slane %v2883, %v2904
      %v2907 = vunpack.c.l.s4 1983009808
      %v2908 = vunpack.c.0.s8 %v2907
      %v2909 = vlaneseq
      %v2910 = vshrl.u32 %v2909, 7
      %v2911 = vsub.s32 %v2908, %v2910
      %v2912 = vrot.slane %v2884, %v2911
      %v2913 = vcombine.low %v2891, %v2905
      %v2914 = vcombine.high %v2891, %v2905
      %v2915 = vcombine.low %v2898, %v2912
      %v2916 = vcombine.high %v2898, %v2912
      %v2917 = vcombine.low %v2449, %v2450
      %v2918 = vcombine.high %v2449, %v2450
      %v2919 = vcombine.low %v2451, %v2452
      %v2920 = vcombine.high %v2451, %v2452
      %v2922 = vunpack.c.l.s4 1983009808
      %v2923 = vunpack.c.0.s8 %v2922
      %v2924 = vlaneseq
      %v2925 = vshrl.u32 %v2924, 7
      %v2926 = vsub.s32 %v2923, %v2925
      %v2927 = vrot.slane %v2917, %v2926
      %v2929 = vunpack.c.l.s4 1983009808
      %v2930 = vunpack.c.0.s8 %v2929
      %v2931 = vlaneseq
      %v2932 = vshrl.u32 %v2931, 7
      %v2933 = vsub.s32 %v2930, %v2932
      %v2934 = vrot.slane %v2918, %v2933
      %v2936 = vunpack.c.l.s4 1983009808
      %v2937 = vunpack.c.0.s8 %v2936
      %v2938 = vlaneseq
      %v2939 = vshrl.u32 %v2938, 7
      %v2940 = vsub.s32 %v2937, %v2939
      %v2941 = vrot.slane %v2919, %v2940
      %v2943 = vunpack.c.l.s4 1983009808
      %v2944 = vunpack.c.0.s8 %v2943
      %v2945 = vlaneseq
      %v2946 = vshrl.u32 %v2945, 7
      %v2947 = vsub.s32 %v2944, %v2946
      %v2948 = vrot.slane %v2920, %v2947
      %v2949 = vcombine.low %v2927, %v2941
      %v2950 = vcombine.high %v2927, %v2941
      %v2951 = vcombine.low %v2934, %v2948
      %v2952 = vcombine.high %v2934, %v2948
      %v2953 = vcombine.low %v2469, %v2519
      %v2954 = vcombine.high %v2469, %v2519
      %v2955 = vcombine.low %v2520, %v2521
      %v2956 = vcombine.high %v2520, %v2521
      %v2958 = vunpack.c.l.s4 1983009808
      %v2959 = vunpack.c.0.s8 %v2958
      %v2960 = vlaneseq
      %v2961 = vshrl.u32 %v2960, 7
      %v2962 = vsub.s32 %v2959, %v2961
      %v2963 = vrot.slane %v2953, %v2962
      %v2965 = vunpack.c.l.s4 1983009808
      %v2966 = vunpack.c.0.s8 %v2965
      %v2967 = vlaneseq
      %v2968 = vshrl.u32 %v2967, 7
      %v2969 = vsub.s32 %v2966, %v2968
      %v2970 = vrot.slane %v2954, %v2969
      %v2972 = vunpack.c.l.s4 1983009808
      %v2973 = vunpack.c.0.s8 %v2972
      %v2974 = vlaneseq
      %v2975 = vshrl.u32 %v2974, 7
      %v2976 = vsub.s32 %v2973, %v2975
      %v2977 = vrot.slane %v2955, %v2976
      %v2979 = vunpack.c.l.s4 1983009808
      %v2980 = vunpack.c.0.s8 %v2979
      %v2981 = vlaneseq
      %v2982 = vshrl.u32 %v2981, 7
      %v2983 = vsub.s32 %v2980, %v2982
      %v2984 = vrot.slane %v2956, %v2983
      %v2985 = vcombine.low %v2963, %v2977
      %v2986 = vcombine.high %v2963, %v2977
      %v2987 = vcombine.low %v2970, %v2984
      %v2988 = vcombine.high %v2970, %v2984
      %v2989 = vcombine.low %v2486, %v2555
      %v2990 = vcombine.high %v2486, %v2555
      %v2991 = vcombine.low %v2556, %v2557
      %v2992 = vcombine.high %v2556, %v2557
      %v2994 = vunpack.c.l.s4 1983009808
      %v2995 = vunpack.c.0.s8 %v2994
      %v2996 = vlaneseq
      %v2997 = vshrl.u32 %v2996, 7
      %v2998 = vsub.s32 %v2995, %v2997
      %v2999 = vrot.slane %v2989, %v2998
      %v3001 = vunpack.c.l.s4 1983009808
      %v3002 = vunpack.c.0.s8 %v3001
      %v3003 = vlaneseq
      %v3004 = vshrl.u32 %v3003, 7
      %v3005 = vsub.s32 %v3002, %v3004
      %v3006 = vrot.slane %v2990, %v3005
      %v3008 = vunpack.c.l.s4 1983009808
      %v3009 = vunpack.c.0.s8 %v3008
      %v3010 = vlaneseq
      %v3011 = vshrl.u32 %v3010, 7
      %v3012 = vsub.s32 %v3009, %v3011
      %v3013 = vrot.slane %v2991, %v3012
      %v3015 = vunpack.c.l.s4 1983009808
      %v3016 = vunpack.c.0.s8 %v3015
      %v3017 = vlaneseq
      %v3018 = vshrl.u32 %v3017, 7
      %v3019 = vsub.s32 %v3016, %v3018
      %v3020 = vrot.slane %v2992, %v3019
      %v3021 = vcombine.low %v2999, %v3013
      %v3022 = vcombine.high %v2999, %v3013
      %v3023 = vcombine.low %v3006, %v3020
      %v3024 = vcombine.high %v3006, %v3020
      %v3025 = vcombine.low %v2522, %v2591
      %v3026 = vcombine.high %v2522, %v2591
      %v3027 = vcombine.low %v2592, %v2593
      %v3028 = vcombine.high %v2592, %v2593
      %v3030 = vunpack.c.l.s4 1983009808
      %v3031 = vunpack.c.0.s8 %v3030
      %v3032 = vlaneseq
      %v3033 = vshrl.u32 %v3032, 7
      %v3034 = vsub.s32 %v3031, %v3033
      %v3035 = vrot.slane %v3025, %v3034
      %v3037 = vunpack.c.l.s4 1983009808
      %v3038 = vunpack.c.0.s8 %v3037
      %v3039 = vlaneseq
      %v3040 = vshrl.u32 %v3039, 7
      %v3041 = vsub.s32 %v3038, %v3040
      %v3042 = vrot.slane %v3026, %v3041
      %v3044 = vunpack.c.l.s4 1983009808
      %v3045 = vunpack.c.0.s8 %v3044
      %v3046 = vlaneseq
      %v3047 = vshrl.u32 %v3046, 7
      %v3048 = vsub.s32 %v3045, %v3047
      %v3049 = vrot.slane %v3027, %v3048
      %v3051 = vunpack.c.l.s4 1983009808
      %v3052 = vunpack.c.0.s8 %v3051
      %v3053 = vlaneseq
      %v3054 = vshrl.u32 %v3053, 7
      %v3055 = vsub.s32 %v3052, %v3054
      %v3056 = vrot.slane %v3028, %v3055
      %v3057 = vcombine.low %v3035, %v3049
      %v3058 = vcombine.high %v3035, %v3049
      %v3059 = vcombine.low %v3042, %v3056
      %v3060 = vcombine.high %v3042, %v3056
      %v3061 = vcombine.low %v2558, %v2627
      %v3062 = vcombine.high %v2558, %v2627
      %v3063 = vcombine.low %v2628, %v2629
      %v3064 = vcombine.high %v2628, %v2629
      %v3066 = vunpack.c.l.s4 1983009808
      %v3067 = vunpack.c.0.s8 %v3066
      %v3068 = vlaneseq
      %v3069 = vshrl.u32 %v3068, 7
      %v3070 = vsub.s32 %v3067, %v3069
      %v3071 = vrot.slane %v3061, %v3070
      %v3073 = vunpack.c.l.s4 1983009808
      %v3074 = vunpack.c.0.s8 %v3073
      %v3075 = vlaneseq
      %v3076 = vshrl.u32 %v3075, 7
      %v3077 = vsub.s32 %v3074, %v3076
      %v3078 = vrot.slane %v3062, %v3077
      %v3080 = vunpack.c.l.s4 1983009808
      %v3081 = vunpack.c.0.s8 %v3080
      %v3082 = vlaneseq
      %v3083 = vshrl.u32 %v3082, 7
      %v3084 = vsub.s32 %v3081, %v3083
      %v3085 = vrot.slane %v3063, %v3084
      %v3087 = vunpack.c.l.s4 1983009808
      %v3088 = vunpack.c.0.s8 %v3087
      %v3089 = vlaneseq
      %v3090 = vshrl.u32 %v3089, 7
      %v3091 = vsub.s32 %v3088, %v3090
      %v3092 = vrot.slane %v3064, %v3091
      %v3093 = vcombine.low %v3071, %v3085
      %v3094 = vcombine.high %v3071, %v3085
      %v3095 = vcombine.low %v3078, %v3092
      %v3096 = vcombine.high %v3078, %v3092
      %v3097 = vcombine.low %v2594, %v2663
      %v3098 = vcombine.high %v2594, %v2663
      %v3099 = vcombine.low %v2664, %v2665
      %v3100 = vcombine.high %v2664, %v2665
      %v3102 = vunpack.c.l.s4 1983009808
      %v3103 = vunpack.c.0.s8 %v3102
      %v3104 = vlaneseq
      %v3105 = vshrl.u32 %v3104, 7
      %v3106 = vsub.s32 %v3103, %v3105
      %v3107 = vrot.slane %v3097, %v3106
      %v3109 = vunpack.c.l.s4 1983009808
      %v3110 = vunpack.c.0.s8 %v3109
      %v3111 = vlaneseq
      %v3112 = vshrl.u32 %v3111, 7
      %v3113 = vsub.s32 %v3110, %v3112
      %v3114 = vrot.slane %v3098, %v3113
      %v3116 = vunpack.c.l.s4 1983009808
      %v3117 = vunpack.c.0.s8 %v3116
      %v3118 = vlaneseq
      %v3119 = vshrl.u32 %v3118, 7
      %v3120 = vsub.s32 %v3117, %v3119
      %v3121 = vrot.slane %v3099, %v3120
      %v3123 = vunpack.c.l.s4 1983009808
      %v3124 = vunpack.c.0.s8 %v3123
      %v3125 = vlaneseq
      %v3126 = vshrl.u32 %v3125, 7
      %v3127 = vsub.s32 %v3124, %v3126
      %v3128 = vrot.slane %v3100, %v3127
      %v3129 = vcombine.low %v3107, %v3121
      %v3130 = vcombine.high %v3107, %v3121
      %v3131 = vcombine.low %v3114, %v3128
      %v3132 = vcombine.high %v3114, %v3128
      %v3133 = vcombine.low %v2630, %v2699
      %v3134 = vcombine.high %v2630, %v2699
      %v3135 = vcombine.low %v2700, %v2701
      %v3136 = vcombine.high %v2700, %v2701
      %v3138 = vunpack.c.l.s4 1983009808
      %v3139 = vunpack.c.0.s8 %v3138
      %v3140 = vlaneseq
      %v3141 = vshrl.u32 %v3140, 7
      %v3142 = vsub.s32 %v3139, %v3141
      %v3143 = vrot.slane %v3133, %v3142
      %v3145 = vunpack.c.l.s4 1983009808
      %v3146 = vunpack.c.0.s8 %v3145
      %v3147 = vlaneseq
      %v3148 = vshrl.u32 %v3147, 7
      %v3149 = vsub.s32 %v3146, %v3148
      %v3150 = vrot.slane %v3134, %v3149
      %v3152 = vunpack.c.l.s4 1983009808
      %v3153 = vunpack.c.0.s8 %v3152
      %v3154 = vlaneseq
      %v3155 = vshrl.u32 %v3154, 7
      %v3156 = vsub.s32 %v3153, %v3155
      %v3157 = vrot.slane %v3135, %v3156
      %v3159 = vunpack.c.l.s4 1983009808
      %v3160 = vunpack.c.0.s8 %v3159
      %v3161 = vlaneseq
      %v3162 = vshrl.u32 %v3161, 7
      %v3163 = vsub.s32 %v3160, %v3162
      %v3164 = vrot.slane %v3136, %v3163
      %v3165 = vcombine.low %v3143, %v3157
      %v3166 = vcombine.high %v3143, %v3157
      %v3167 = vcombine.low %v3150, %v3164
      %v3168 = vcombine.high %v3150, %v3164
      %v3169 = vcombine.low %v2666, %v2719
      %v3170 = vcombine.high %v2666, %v2719
      %v3172 = vunpack.c.l.s4 1983009808
      %v3173 = vunpack.c.0.s8 %v3172
      %v3174 = vlaneseq
      %v3175 = vshrl.u32 %v3174, 7
      %v3176 = vsub.s32 %v3173, %v3175
      %v3177 = vrot.slane %v3169, %v3176
      %v3179 = vunpack.c.l.s4 1983009808
      %v3180 = vunpack.c.0.s8 %v3179
      %v3181 = vlaneseq
      %v3182 = vshrl.u32 %v3181, 7
      %v3183 = vsub.s32 %v3180, %v3182
      %v3184 = vrot.slane %v3170, %v3183
      %v3185 = vcombine.high %v3177, %v3177
      %v3186 = vcombine.high %v3184, %v3184
      %v3187 = vcombine.low %v2702, %v2736
      %v3188 = vcombine.high %v2702, %v2736
      %v3190 = vunpack.c.l.s4 1983009808
      %v3191 = vunpack.c.0.s8 %v3190
      %v3192 = vlaneseq
      %v3193 = vshrl.u32 %v3192, 7
      %v3194 = vsub.s32 %v3191, %v3193
      %v3195 = vrot.slane %v3187, %v3194
      %v3197 = vunpack.c.l.s4 1983009808
      %v3198 = vunpack.c.0.s8 %v3197
      %v3199 = vlaneseq
      %v3200 = vshrl.u32 %v3199, 7
      %v3201 = vsub.s32 %v3198, %v3200
      %v3202 = vrot.slane %v3188, %v3201
      %v3203 = vcombine.high %v3195, %v3195
      %v3204 = vcombine.high %v3202, %v3202
      %v3261 = vpack.c.bf16 %v2841, %v2769
      %v3262 = vpack.c.bf16 %v2842, %v2770
      %v3263 = vpack.c.bf16 %v2843, %v2771
      %v3264 = vpack.c.bf16 %v2844, %v2772
      %v3265 = vpack.c.bf16 %v2877, %v2805
      %v3266 = vpack.c.bf16 %v2878, %v2806
      %v3267 = vpack.c.bf16 %v2879, %v2807
      %v3268 = vpack.c.bf16 %v2880, %v2808
      %v3269 = vpack.c.bf16 %v2985, %v2913
      %v3270 = vpack.c.bf16 %v2986, %v2914
      %v3271 = vpack.c.bf16 %v2987, %v2915
      %v3272 = vpack.c.bf16 %v2988, %v2916
      %v3273 = vpack.c.bf16 %v3021, %v2949
      %v3274 = vpack.c.bf16 %v3022, %v2950
      %v3275 = vpack.c.bf16 %v3023, %v2951
      %v3276 = vpack.c.bf16 %v3024, %v2952
      %v3277 = vpack.c.bf16 %v3129, %v3057
      %v3278 = vpack.c.bf16 %v3130, %v3058
      %v3279 = vpack.c.bf16 %v3131, %v3059
      %v3280 = vpack.c.bf16 %v3132, %v3060
      %v3281 = vpack.c.bf16 %v3165, %v3093
      %v3282 = vpack.c.bf16 %v3166, %v3094
      %v3283 = vpack.c.bf16 %v3167, %v3095
      %v3284 = vpack.c.bf16 %v3168, %v3096
      %v3285 = vpack.c.bf16 %v3177, %v3177
      %v3286 = vpack.c.bf16 %v3185, %v3185
      %v3287 = vpack.c.bf16 %v3184, %v3184
      %v3288 = vpack.c.bf16 %v3186, %v3186
      %v3289 = vpack.c.bf16 %v3195, %v3195
      %v3290 = vpack.c.bf16 %v3203, %v3203
      %v3291 = vpack.c.bf16 %v3202, %v3202
      %v3292 = vpack.c.bf16 %v3204, %v3204
      %v3293 = vld [vmem:[%s2] sm:$0xff]
      %v3294 = vld [vmem:[%s2 + $0x8] sm:$0xff]
      %v3295 = vld [vmem:[%s2 + $0x10] sm:$0xff]
      %v3296 = vld [vmem:[%s2 + $0x18] sm:$0xff]
      %v3297 = vld [vmem:[%s2 + $0x20] sm:$0xff]
      %v3298 = vld [vmem:[%s2 + $0x28] sm:$0xff]
      %v3299 = vld [vmem:[%s2 + $0x30] sm:$0xff]
      %v3300 = vld [vmem:[%s2 + $0x38] sm:$0xff]
      %v3301 = vld [vmem:[%s2 + $0x40] sm:$0xff]
      %v3302 = vld [vmem:[%s2 + $0x48] sm:$0xff]
      %v3303 = vld [vmem:[%s2 + $0x50] sm:$0xff]
      %v3304 = vld [vmem:[%s2 + $0x58] sm:$0xff]
      %v3305 = vld [vmem:[%s2 + $0x60] sm:$0xff]
      %v3306 = vld [vmem:[%s2 + $0x68] sm:$0xff]
      %v3307 = vld [vmem:[%s2 + $0x70] sm:$0xff]
      %v3308 = vld [vmem:[%s2 + $0x78] sm:$0xff]
      %v3309 = vld [vmem:[%s2 + $0x80] sm:$0xff]
      %v3310 = vld [vmem:[%s2 + $0x88] sm:$0xff]
      %v3311 = vld [vmem:[%s2 + $0x90] sm:$0xff]
      %v3312 = vld [vmem:[%s2 + $0x98] sm:$0xff]
      %v3313 = vld [vmem:[%s2 + $0xa0] sm:$0xff]
      %v3314 = vld [vmem:[%s2 + $0xa8] sm:$0xff]
      %v3315 = vld [vmem:[%s2 + $0xb0] sm:$0xff]
      %v3316 = vld [vmem:[%s2 + $0xb8] sm:$0xff]
      %v3317 = vld [vmem:[%s2 + $0xc0] sm:$0xff]
      %v3318 = vld [vmem:[%s2 + $0xc8] sm:$0xff]
      %v3319 = vld [vmem:[%s2 + $0xd0] sm:$0xff]
      %v3320 = vld [vmem:[%s2 + $0xd8] sm:$0xff]
      %v3321 = vld [vmem:[%s2 + $0xe0] sm:$0xff]
      %v3322 = vld [vmem:[%s2 + $0xe8] sm:$0xff]
      %v3323 = vld [vmem:[%s2 + $0xf0] sm:$0xff]
      %v3324 = vld [vmem:[%s2 + $0xf8] sm:$0xff]
      %v3325 = vld [vmem:[%s2 + $0x100] sm:$0xff]
      %v3326 = vld [vmem:[%s2 + $0x108] sm:$0xff]
      %v3327 = vld [vmem:[%s2 + $0x110] sm:$0xff]
      %v3328 = vld [vmem:[%s2 + $0x118] sm:$0xff]
      %v3329 = vld [vmem:[%s2 + $0x120] sm:$0xff]
      %v3330 = vld [vmem:[%s2 + $0x128] sm:$0xff]
      %v3331 = vld [vmem:[%s2 + $0x130] sm:$0xff]
      %v3332 = vld [vmem:[%s2 + $0x138] sm:$0xff]
      %v3333 = vld [vmem:[%s2 + $0x140] sm:$0xff]
      %v3334 = vld [vmem:[%s2 + $0x148] sm:$0xff]
      %v3335 = vld [vmem:[%s2 + $0x150] sm:$0xff]
      %v3336 = vld [vmem:[%s2 + $0x158] sm:$0xff]
      %v3337 = vld [vmem:[%s2 + $0x160] sm:$0xff]
      %v3338 = vld [vmem:[%s2 + $0x168] sm:$0xff]
      %v3339 = vld [vmem:[%s2 + $0x170] sm:$0xff]
      %v3340 = vld [vmem:[%s2 + $0x178] sm:$0xff]
      %v3341 = vld [vmem:[%s2 + $0x180] sm:$0xff]
      %v3342 = vld [vmem:[%s2 + $0x188] sm:$0xff]
      %v3343 = vld [vmem:[%s2 + $0x190] sm:$0xff]
      %v3344 = vld [vmem:[%s2 + $0x198] sm:$0xff]
      %v3345 = vld [vmem:[%s2 + $0x1a0] sm:$0xff]
      %v3346 = vld [vmem:[%s2 + $0x1a8] sm:$0xff]
      %v3347 = vld [vmem:[%s2 + $0x1b0] sm:$0xff]
      %v3348 = vld [vmem:[%s2 + $0x1b8] sm:$0xff]
      %v3349 = vld [vmem:[%s2 + $0x1c0] sm:$0xff]
      %v3350 = vld [vmem:[%s2 + $0x1c8] sm:$0xff]
      %v3351 = vld [vmem:[%s2 + $0x1d0] sm:$0xff]
      %v3352 = vld [vmem:[%s2 + $0x1d8] sm:$0xff]
      %v3353 = vld [vmem:[%s2 + $0x1e0] sm:$0xff]
      %v3354 = vld [vmem:[%s2 + $0x1e8] sm:$0xff]
      %v3355 = vld [vmem:[%s2 + $0x1f0] sm:$0xff]
      %v3356 = vld [vmem:[%s2 + $0x1f8] sm:$0xff]
      %v3357 = vld [vmem:[%s2 + $0x200] sm:$0xff]
      %v3358 = vld [vmem:[%s2 + $0x208] sm:$0xff]
      %v3359 = vld [vmem:[%s2 + $0x210] sm:$0xff]
      %v3360 = vld [vmem:[%s2 + $0x218] sm:$0xff]
      %v3361 = vld [vmem:[%s2 + $0x220] sm:$0xff]
      %v3362 = vld [vmem:[%s2 + $0x228] sm:$0xff]
      %v3363 = vld [vmem:[%s2 + $0x230] sm:$0xff]
      %v3364 = vld [vmem:[%s2 + $0x238] sm:$0xff]
      %v3365 = vld [vmem:[%s2 + $0x240] sm:$0xff]
      %v3366 = vld [vmem:[%s2 + $0x248] sm:$0xff]
      %v3367 = vld [vmem:[%s2 + $0x250] sm:$0xff]
      %v3368 = vld [vmem:[%s2 + $0x258] sm:$0xff]
      %v3369 = vld [vmem:[%s2 + $0x260] sm:$0xff]
      %v3370 = vld [vmem:[%s2 + $0x268] sm:$0xff]
      %v3371 = vld [vmem:[%s2 + $0x270] sm:$0xff]
      %v3372 = vld [vmem:[%s2 + $0x278] sm:$0xff]
      %v3373 = vld [vmem:[%s2 + $0x280] sm:$0xff]
      %v3374 = vld [vmem:[%s2 + $0x288] sm:$0xff]
      %v3375 = vld [vmem:[%s2 + $0x290] sm:$0xff]
      %v3376 = vld [vmem:[%s2 + $0x298] sm:$0xff]
      %v3377 = vld [vmem:[%s2 + $0x2a0] sm:$0xff]
      %v3378 = vld [vmem:[%s2 + $0x2a8] sm:$0xff]
      %v3379 = vld [vmem:[%s2 + $0x2b0] sm:$0xff]
      %v3380 = vld [vmem:[%s2 + $0x2b8] sm:$0xff]
      %v3381 = vld [vmem:[%s2 + $0x2c0] sm:$0xff]
      %v3382 = vld [vmem:[%s2 + $0x2c8] sm:$0xff]
      %v3383 = vld [vmem:[%s2 + $0x2d0] sm:$0xff]
      %v3384 = vld [vmem:[%s2 + $0x2d8] sm:$0xff]
      %v3385 = vld [vmem:[%s2 + $0x2e0] sm:$0xff]
      %v3386 = vld [vmem:[%s2 + $0x2e8] sm:$0xff]
      %v3387 = vld [vmem:[%s2 + $0x2f0] sm:$0xff]
      %v3388 = vld [vmem:[%s2 + $0x2f8] sm:$0xff]
      %v3389 = vld [vmem:[%s2 + $0x300] sm:$0xff]
      %v3390 = vld [vmem:[%s2 + $0x308] sm:$0xff]
      %v3391 = vld [vmem:[%s2 + $0x310] sm:$0xff]
      %v3392 = vld [vmem:[%s2 + $0x318] sm:$0xff]
      %v3393 = vld [vmem:[%s2 + $0x320] sm:$0xff]
      %v3394 = vld [vmem:[%s2 + $0x328] sm:$0xff]
      %v3395 = vld [vmem:[%s2 + $0x330] sm:$0xff]
      %v3396 = vld [vmem:[%s2 + $0x338] sm:$0xff]
      %v3397 = vld [vmem:[%s2 + $0x340] sm:$0xff]
      %v3398 = vld [vmem:[%s2 + $0x348] sm:$0xff]
      %v3399 = vld [vmem:[%s2 + $0x350] sm:$0xff]
      %v3400 = vld [vmem:[%s2 + $0x358] sm:$0xff]
      %v3401 = vld [vmem:[%s2 + $0x360] sm:$0xff]
      %v3402 = vld [vmem:[%s2 + $0x368] sm:$0xff]
      %v3403 = vld [vmem:[%s2 + $0x370] sm:$0xff]
      %v3404 = vld [vmem:[%s2 + $0x378] sm:$0xff]
      %v3405 = vld [vmem:[%s2 + $0x380] sm:$0xff]
      %v3406 = vld [vmem:[%s2 + $0x388] sm:$0xff]
      %v3407 = vld [vmem:[%s2 + $0x390] sm:$0xff]
      %v3408 = vld [vmem:[%s2 + $0x398] sm:$0xff]
      %v3409 = vld [vmem:[%s2 + $0x3a0] sm:$0xff]
      %v3410 = vld [vmem:[%s2 + $0x3a8] sm:$0xff]
      %v3411 = vld [vmem:[%s2 + $0x3b0] sm:$0xff]
      %v3412 = vld [vmem:[%s2 + $0x3b8] sm:$0xff]
      %v3413 = vld [vmem:[%s2 + $0x3c0] sm:$0xff]
      %v3414 = vld [vmem:[%s2 + $0x3c8] sm:$0xff]
      %v3415 = vld [vmem:[%s2 + $0x3d0] sm:$0xff]
      %v3416 = vld [vmem:[%s2 + $0x3d8] sm:$0xff]
      %v3417 = vld [vmem:[%s2 + $0x3e0] sm:$0xff]
      %v3418 = vld [vmem:[%s2 + $0x3e8] sm:$0xff]
      %v3419 = vld [vmem:[%s2 + $0x3f0] sm:$0xff]
      %v3420 = vld [vmem:[%s2 + $0x3f8] sm:$0xff]
      %v3549 = vunpack.c.l.b16 %v3293
      %v3550 = vunpack.c.h.b16 %v3293
      %v3551 = vunpack.c.l.b16 %v3294
      %v3552 = vunpack.c.h.b16 %v3294
      %v3553 = vunpack.c.l.b16 %v3295
      %v3554 = vunpack.c.h.b16 %v3295
      %v3555 = vunpack.c.l.b16 %v3296
      %v3556 = vunpack.c.h.b16 %v3296
      %v3557 = vunpack.c.l.b16 %v3297
      %v3558 = vunpack.c.h.b16 %v3297
      %v3559 = vunpack.c.l.b16 %v3298
      %v3560 = vunpack.c.h.b16 %v3298
      %v3561 = vunpack.c.l.b16 %v3299
      %v3562 = vunpack.c.h.b16 %v3299
      %v3563 = vunpack.c.l.b16 %v3300
      %v3564 = vunpack.c.h.b16 %v3300
      %v3565 = vunpack.c.l.b16 %v3301
      %v3566 = vunpack.c.h.b16 %v3301
      %v3567 = vunpack.c.l.b16 %v3302
      %v3568 = vunpack.c.h.b16 %v3302
      %v3569 = vunpack.c.l.b16 %v3303
      %v3570 = vunpack.c.h.b16 %v3303
      %v3571 = vunpack.c.l.b16 %v3304
      %v3572 = vunpack.c.h.b16 %v3304
      %v3573 = vunpack.c.l.b16 %v3305
      %v3574 = vunpack.c.h.b16 %v3305
      %v3575 = vunpack.c.l.b16 %v3306
      %v3576 = vunpack.c.h.b16 %v3306
      %v3577 = vunpack.c.l.b16 %v3307
      %v3578 = vunpack.c.h.b16 %v3307
      %v3579 = vunpack.c.l.b16 %v3308
      %v3580 = vunpack.c.h.b16 %v3308
      %v3581 = vunpack.c.l.b16 %v3309
      %v3582 = vunpack.c.h.b16 %v3309
      %v3583 = vunpack.c.l.b16 %v3310
      %v3584 = vunpack.c.h.b16 %v3310
      %v3585 = vunpack.c.l.b16 %v3311
      %v3586 = vunpack.c.h.b16 %v3311
      %v3587 = vunpack.c.l.b16 %v3312
      %v3588 = vunpack.c.h.b16 %v3312
      %v3589 = vunpack.c.l.b16 %v3313
      %v3590 = vunpack.c.h.b16 %v3313
      %v3591 = vunpack.c.l.b16 %v3314
      %v3592 = vunpack.c.h.b16 %v3314
      %v3593 = vunpack.c.l.b16 %v3315
      %v3594 = vunpack.c.h.b16 %v3315
      %v3595 = vunpack.c.l.b16 %v3316
      %v3596 = vunpack.c.h.b16 %v3316
      %v3597 = vunpack.c.l.b16 %v3317
      %v3598 = vunpack.c.h.b16 %v3317
      %v3599 = vunpack.c.l.b16 %v3318
      %v3600 = vunpack.c.h.b16 %v3318
      %v3601 = vunpack.c.l.b16 %v3319
      %v3602 = vunpack.c.h.b16 %v3319
      %v3603 = vunpack.c.l.b16 %v3320
      %v3604 = vunpack.c.h.b16 %v3320
      %v3605 = vunpack.c.l.b16 %v3321
      %v3606 = vunpack.c.h.b16 %v3321
      %v3607 = vunpack.c.l.b16 %v3322
      %v3608 = vunpack.c.h.b16 %v3322
      %v3609 = vunpack.c.l.b16 %v3323
      %v3610 = vunpack.c.h.b16 %v3323
      %v3611 = vunpack.c.l.b16 %v3324
      %v3612 = vunpack.c.h.b16 %v3324
      %v3613 = vunpack.c.l.b16 %v3325
      %v3614 = vunpack.c.h.b16 %v3325
      %v3615 = vunpack.c.l.b16 %v3326
      %v3616 = vunpack.c.h.b16 %v3326
      %v3617 = vunpack.c.l.b16 %v3327
      %v3618 = vunpack.c.h.b16 %v3327
      %v3619 = vunpack.c.l.b16 %v3328
      %v3620 = vunpack.c.h.b16 %v3328
      %v3621 = vunpack.c.l.b16 %v3329
      %v3622 = vunpack.c.h.b16 %v3329
      %v3623 = vunpack.c.l.b16 %v3330
      %v3624 = vunpack.c.h.b16 %v3330
      %v3625 = vunpack.c.l.b16 %v3331
      %v3626 = vunpack.c.h.b16 %v3331
      %v3627 = vunpack.c.l.b16 %v3332
      %v3628 = vunpack.c.h.b16 %v3332
      %v3629 = vunpack.c.l.b16 %v3333
      %v3630 = vunpack.c.h.b16 %v3333
      %v3631 = vunpack.c.l.b16 %v3334
      %v3632 = vunpack.c.h.b16 %v3334
      %v3633 = vunpack.c.l.b16 %v3335
      %v3634 = vunpack.c.h.b16 %v3335
      %v3635 = vunpack.c.l.b16 %v3336
      %v3636 = vunpack.c.h.b16 %v3336
      %v3637 = vunpack.c.l.b16 %v3337
      %v3638 = vunpack.c.h.b16 %v3337
      %v3639 = vunpack.c.l.b16 %v3338
      %v3640 = vunpack.c.h.b16 %v3338
      %v3641 = vunpack.c.l.b16 %v3339
      %v3642 = vunpack.c.h.b16 %v3339
      %v3643 = vunpack.c.l.b16 %v3340
      %v3644 = vunpack.c.h.b16 %v3340
      %v3645 = vunpack.c.l.b16 %v3341
      %v3646 = vunpack.c.h.b16 %v3341
      %v3647 = vunpack.c.l.b16 %v3342
      %v3648 = vunpack.c.h.b16 %v3342
      %v3649 = vunpack.c.l.b16 %v3343
      %v3650 = vunpack.c.h.b16 %v3343
      %v3651 = vunpack.c.l.b16 %v3344
      %v3652 = vunpack.c.h.b16 %v3344
      %v3653 = vunpack.c.l.b16 %v3345
      %v3654 = vunpack.c.h.b16 %v3345
      %v3655 = vunpack.c.l.b16 %v3346
      %v3656 = vunpack.c.h.b16 %v3346
      %v3657 = vunpack.c.l.b16 %v3347
      %v3658 = vunpack.c.h.b16 %v3347
      %v3659 = vunpack.c.l.b16 %v3348
      %v3660 = vunpack.c.h.b16 %v3348
      %v3661 = vunpack.c.l.b16 %v3349
      %v3662 = vunpack.c.h.b16 %v3349
      %v3663 = vunpack.c.l.b16 %v3350
      %v3664 = vunpack.c.h.b16 %v3350
      %v3665 = vunpack.c.l.b16 %v3351
      %v3666 = vunpack.c.h.b16 %v3351
      %v3667 = vunpack.c.l.b16 %v3352
      %v3668 = vunpack.c.h.b16 %v3352
      %v3669 = vunpack.c.l.b16 %v3353
      %v3670 = vunpack.c.h.b16 %v3353
      %v3671 = vunpack.c.l.b16 %v3354
      %v3672 = vunpack.c.h.b16 %v3354
      %v3673 = vunpack.c.l.b16 %v3355
      %v3674 = vunpack.c.h.b16 %v3355
      %v3675 = vunpack.c.l.b16 %v3356
      %v3676 = vunpack.c.h.b16 %v3356
      %v3677 = vunpack.c.l.b16 %v3357
      %v3678 = vunpack.c.h.b16 %v3357
      %v3679 = vunpack.c.l.b16 %v3358
      %v3680 = vunpack.c.h.b16 %v3358
      %v3681 = vunpack.c.l.b16 %v3359
      %v3682 = vunpack.c.h.b16 %v3359
      %v3683 = vunpack.c.l.b16 %v3360
      %v3684 = vunpack.c.h.b16 %v3360
      %v3685 = vunpack.c.l.b16 %v3361
      %v3686 = vunpack.c.h.b16 %v3361
      %v3687 = vunpack.c.l.b16 %v3362
      %v3688 = vunpack.c.h.b16 %v3362
      %v3689 = vunpack.c.l.b16 %v3363
      %v3690 = vunpack.c.h.b16 %v3363
      %v3691 = vunpack.c.l.b16 %v3364
      %v3692 = vunpack.c.h.b16 %v3364
      %v3693 = vunpack.c.l.b16 %v3365
      %v3694 = vunpack.c.h.b16 %v3365
      %v3695 = vunpack.c.l.b16 %v3366
      %v3696 = vunpack.c.h.b16 %v3366
      %v3697 = vunpack.c.l.b16 %v3367
      %v3698 = vunpack.c.h.b16 %v3367
      %v3699 = vunpack.c.l.b16 %v3368
      %v3700 = vunpack.c.h.b16 %v3368
      %v3701 = vunpack.c.l.b16 %v3369
      %v3702 = vunpack.c.h.b16 %v3369
      %v3703 = vunpack.c.l.b16 %v3370
      %v3704 = vunpack.c.h.b16 %v3370
      %v3705 = vunpack.c.l.b16 %v3371
      %v3706 = vunpack.c.h.b16 %v3371
      %v3707 = vunpack.c.l.b16 %v3372
      %v3708 = vunpack.c.h.b16 %v3372
      %v3709 = vunpack.c.l.b16 %v3373
      %v3710 = vunpack.c.h.b16 %v3373
      %v3711 = vunpack.c.l.b16 %v3374
      %v3712 = vunpack.c.h.b16 %v3374
      %v3713 = vunpack.c.l.b16 %v3375
      %v3714 = vunpack.c.h.b16 %v3375
      %v3715 = vunpack.c.l.b16 %v3376
      %v3716 = vunpack.c.h.b16 %v3376
      %v3717 = vunpack.c.l.b16 %v3377
      %v3718 = vunpack.c.h.b16 %v3377
      %v3719 = vunpack.c.l.b16 %v3378
      %v3720 = vunpack.c.h.b16 %v3378
      %v3721 = vunpack.c.l.b16 %v3379
      %v3722 = vunpack.c.h.b16 %v3379
      %v3723 = vunpack.c.l.b16 %v3380
      %v3724 = vunpack.c.h.b16 %v3380
      %v3725 = vunpack.c.l.b16 %v3381
      %v3726 = vunpack.c.h.b16 %v3381
      %v3727 = vunpack.c.l.b16 %v3382
      %v3728 = vunpack.c.h.b16 %v3382
      %v3729 = vunpack.c.l.b16 %v3383
      %v3730 = vunpack.c.h.b16 %v3383
      %v3731 = vunpack.c.l.b16 %v3384
      %v3732 = vunpack.c.h.b16 %v3384
      %v3733 = vunpack.c.l.b16 %v3385
      %v3734 = vunpack.c.h.b16 %v3385
      %v3735 = vunpack.c.l.b16 %v3386
      %v3736 = vunpack.c.h.b16 %v3386
      %v3737 = vunpack.c.l.b16 %v3387
      %v3738 = vunpack.c.h.b16 %v3387
      %v3739 = vunpack.c.l.b16 %v3388
      %v3740 = vunpack.c.h.b16 %v3388
      %v3741 = vunpack.c.l.b16 %v3389
      %v3742 = vunpack.c.h.b16 %v3389
      %v3743 = vunpack.c.l.b16 %v3390
      %v3744 = vunpack.c.h.b16 %v3390
      %v3745 = vunpack.c.l.b16 %v3391
      %v3746 = vunpack.c.h.b16 %v3391
      %v3747 = vunpack.c.l.b16 %v3392
      %v3748 = vunpack.c.h.b16 %v3392
      %v3749 = vunpack.c.l.b16 %v3393
      %v3750 = vunpack.c.h.b16 %v3393
      %v3751 = vunpack.c.l.b16 %v3394
      %v3752 = vunpack.c.h.b16 %v3394
      %v3753 = vunpack.c.l.b16 %v3395
      %v3754 = vunpack.c.h.b16 %v3395
      %v3755 = vunpack.c.l.b16 %v3396
      %v3756 = vunpack.c.h.b16 %v3396
      %v3757 = vunpack.c.l.b16 %v3397
      %v3758 = vunpack.c.h.b16 %v3397
      %v3759 = vunpack.c.l.b16 %v3398
      %v3760 = vunpack.c.h.b16 %v3398
      %v3761 = vunpack.c.l.b16 %v3399
      %v3762 = vunpack.c.h.b16 %v3399
      %v3763 = vunpack.c.l.b16 %v3400
      %v3764 = vunpack.c.h.b16 %v3400
      %v3765 = vunpack.c.l.b16 %v3401
      %v3766 = vunpack.c.h.b16 %v3401
      %v3767 = vunpack.c.l.b16 %v3402
      %v3768 = vunpack.c.h.b16 %v3402
      %v3769 = vunpack.c.l.b16 %v3403
      %v3770 = vunpack.c.h.b16 %v3403
      %v3771 = vunpack.c.l.b16 %v3404
      %v3772 = vunpack.c.h.b16 %v3404
      %v3773 = vunpack.c.l.b16 %v3405
      %v3774 = vunpack.c.h.b16 %v3405
      %v3775 = vunpack.c.l.b16 %v3406
      %v3776 = vunpack.c.h.b16 %v3406
      %v3777 = vunpack.c.l.b16 %v3407
      %v3778 = vunpack.c.h.b16 %v3407
      %v3779 = vunpack.c.l.b16 %v3408
      %v3780 = vunpack.c.h.b16 %v3408
      %v3781 = vunpack.c.l.b16 %v3409
      %v3782 = vunpack.c.h.b16 %v3409
      %v3783 = vunpack.c.l.b16 %v3410
      %v3784 = vunpack.c.h.b16 %v3410
      %v3785 = vunpack.c.l.b16 %v3411
      %v3786 = vunpack.c.h.b16 %v3411
      %v3787 = vunpack.c.l.b16 %v3412
      %v3788 = vunpack.c.h.b16 %v3412
      %v3789 = vunpack.c.l.b16 %v3413
      %v3790 = vunpack.c.h.b16 %v3413
      %v3791 = vunpack.c.l.b16 %v3414
      %v3792 = vunpack.c.h.b16 %v3414
      %v3793 = vunpack.c.l.b16 %v3415
      %v3794 = vunpack.c.h.b16 %v3415
      %v3795 = vunpack.c.l.b16 %v3416
      %v3796 = vunpack.c.h.b16 %v3416
      %v3797 = vunpack.c.l.b16 %v3417
      %v3798 = vunpack.c.h.b16 %v3417
      %v3799 = vunpack.c.l.b16 %v3418
      %v3800 = vunpack.c.h.b16 %v3418
      %v3801 = vunpack.c.l.b16 %v3419
      %v3802 = vunpack.c.h.b16 %v3419
      %v3803 = vunpack.c.l.b16 %v3420
      %v3804 = vunpack.c.h.b16 %v3420
      %v3805 = vpack.c.b16 %v3551, %v3549
      %v3806 = vpack.c.b16 %v3552, %v3550
      %v3807 = vpack.c.b16 %v3555, %v3553
      %v3808 = vpack.c.b16 %v3556, %v3554
      %v3809 = vpack.c.b16 %v3559, %v3557
      %v3810 = vpack.c.b16 %v3560, %v3558
      %v3811 = vpack.c.b16 %v3563, %v3561
      %v3812 = vpack.c.b16 %v3564, %v3562
      %v3813 = vpack.c.b16 %v3567, %v3565
      %v3814 = vpack.c.b16 %v3568, %v3566
      %v3815 = vpack.c.b16 %v3571, %v3569
      %v3816 = vpack.c.b16 %v3572, %v3570
      %v3817 = vpack.c.b16 %v3575, %v3573
      %v3818 = vpack.c.b16 %v3576, %v3574
      %v3819 = vpack.c.b16 %v3579, %v3577
      %v3820 = vpack.c.b16 %v3580, %v3578
      %v3821 = vpack.c.b16 %v3583, %v3581
      %v3822 = vpack.c.b16 %v3584, %v3582
      %v3823 = vpack.c.b16 %v3587, %v3585
      %v3824 = vpack.c.b16 %v3588, %v3586
      %v3825 = vpack.c.b16 %v3591, %v3589
      %v3826 = vpack.c.b16 %v3592, %v3590
      %v3827 = vpack.c.b16 %v3595, %v3593
      %v3828 = vpack.c.b16 %v3596, %v3594
      %v3829 = vpack.c.b16 %v3599, %v3597
      %v3830 = vpack.c.b16 %v3600, %v3598
      %v3831 = vpack.c.b16 %v3603, %v3601
      %v3832 = vpack.c.b16 %v3604, %v3602
      %v3833 = vpack.c.b16 %v3607, %v3605
      %v3834 = vpack.c.b16 %v3608, %v3606
      %v3835 = vpack.c.b16 %v3611, %v3609
      %v3836 = vpack.c.b16 %v3612, %v3610
      %v3837 = vpack.c.b16 %v3615, %v3613
      %v3838 = vpack.c.b16 %v3616, %v3614
      %v3839 = vpack.c.b16 %v3619, %v3617
      %v3840 = vpack.c.b16 %v3620, %v3618
      %v3841 = vpack.c.b16 %v3623, %v3621
      %v3842 = vpack.c.b16 %v3624, %v3622
      %v3843 = vpack.c.b16 %v3627, %v3625
      %v3844 = vpack.c.b16 %v3628, %v3626
      %v3845 = vpack.c.b16 %v3631, %v3629
      %v3846 = vpack.c.b16 %v3632, %v3630
      %v3847 = vpack.c.b16 %v3635, %v3633
      %v3848 = vpack.c.b16 %v3636, %v3634
      %v3849 = vpack.c.b16 %v3639, %v3637
      %v3850 = vpack.c.b16 %v3640, %v3638
      %v3851 = vpack.c.b16 %v3643, %v3641
      %v3852 = vpack.c.b16 %v3644, %v3642
      %v3853 = vpack.c.b16 %v3647, %v3645
      %v3854 = vpack.c.b16 %v3648, %v3646
      %v3855 = vpack.c.b16 %v3651, %v3649
      %v3856 = vpack.c.b16 %v3652, %v3650
      %v3857 = vpack.c.b16 %v3655, %v3653
      %v3858 = vpack.c.b16 %v3656, %v3654
      %v3859 = vpack.c.b16 %v3659, %v3657
      %v3860 = vpack.c.b16 %v3660, %v3658
      %v3861 = vpack.c.b16 %v3663, %v3661
      %v3862 = vpack.c.b16 %v3664, %v3662
      %v3863 = vpack.c.b16 %v3667, %v3665
      %v3864 = vpack.c.b16 %v3668, %v3666
      %v3865 = vpack.c.b16 %v3671, %v3669
      %v3866 = vpack.c.b16 %v3672, %v3670
      %v3867 = vpack.c.b16 %v3675, %v3673
      %v3868 = vpack.c.b16 %v3676, %v3674
      %v3869 = vpack.c.b16 %v3679, %v3677
      %v3870 = vpack.c.b16 %v3680, %v3678
      %v3871 = vpack.c.b16 %v3683, %v3681
      %v3872 = vpack.c.b16 %v3684, %v3682
      %v3873 = vpack.c.b16 %v3687, %v3685
      %v3874 = vpack.c.b16 %v3688, %v3686
      %v3875 = vpack.c.b16 %v3691, %v3689
      %v3876 = vpack.c.b16 %v3692, %v3690
      %v3877 = vpack.c.b16 %v3695, %v3693
      %v3878 = vpack.c.b16 %v3696, %v3694
      %v3879 = vpack.c.b16 %v3699, %v3697
      %v3880 = vpack.c.b16 %v3700, %v3698
      %v3881 = vpack.c.b16 %v3703, %v3701
      %v3882 = vpack.c.b16 %v3704, %v3702
      %v3883 = vpack.c.b16 %v3707, %v3705
      %v3884 = vpack.c.b16 %v3708, %v3706
      %v3885 = vpack.c.b16 %v3711, %v3709
      %v3886 = vpack.c.b16 %v3712, %v3710
      %v3887 = vpack.c.b16 %v3715, %v3713
      %v3888 = vpack.c.b16 %v3716, %v3714
      %v3889 = vpack.c.b16 %v3719, %v3717
      %v3890 = vpack.c.b16 %v3720, %v3718
      %v3891 = vpack.c.b16 %v3723, %v3721
      %v3892 = vpack.c.b16 %v3724, %v3722
      %v3893 = vpack.c.b16 %v3727, %v3725
      %v3894 = vpack.c.b16 %v3728, %v3726
      %v3895 = vpack.c.b16 %v3731, %v3729
      %v3896 = vpack.c.b16 %v3732, %v3730
      %v3897 = vpack.c.b16 %v3735, %v3733
      %v3898 = vpack.c.b16 %v3736, %v3734
      %v3899 = vpack.c.b16 %v3739, %v3737
      %v3900 = vpack.c.b16 %v3740, %v3738
      %v3901 = vpack.c.b16 %v3743, %v3741
      %v3902 = vpack.c.b16 %v3744, %v3742
      %v3903 = vpack.c.b16 %v3747, %v3745
      %v3904 = vpack.c.b16 %v3748, %v3746
      %v3905 = vpack.c.b16 %v3751, %v3749
      %v3906 = vpack.c.b16 %v3752, %v3750
      %v3907 = vpack.c.b16 %v3755, %v3753
      %v3908 = vpack.c.b16 %v3756, %v3754
      %v3909 = vpack.c.b16 %v3759, %v3757
      %v3910 = vpack.c.b16 %v3760, %v3758
      %v3911 = vpack.c.b16 %v3763, %v3761
      %v3912 = vpack.c.b16 %v3764, %v3762
      %v3913 = vpack.c.b16 %v3767, %v3765
      %v3914 = vpack.c.b16 %v3768, %v3766
      %v3915 = vpack.c.b16 %v3771, %v3769
      %v3916 = vpack.c.b16 %v3772, %v3770
      %v3917 = vpack.c.b16 %v3775, %v3773
      %v3918 = vpack.c.b16 %v3776, %v3774
      %v3919 = vpack.c.b16 %v3779, %v3777
      %v3920 = vpack.c.b16 %v3780, %v3778
      %v3921 = vpack.c.b16 %v3783, %v3781
      %v3922 = vpack.c.b16 %v3784, %v3782
      %v3923 = vpack.c.b16 %v3787, %v3785
      %v3924 = vpack.c.b16 %v3788, %v3786
      %v3925 = vpack.c.b16 %v3791, %v3789
      %v3926 = vpack.c.b16 %v3792, %v3790
      %v3927 = vpack.c.b16 %v3795, %v3793
      %v3928 = vpack.c.b16 %v3796, %v3794
      %v3929 = vpack.c.b16 %v3799, %v3797
      %v3930 = vpack.c.b16 %v3800, %v3798
      %v3931 = vpack.c.b16 %v3803, %v3801
      %v3932 = vpack.c.b16 %v3804, %v3802
      %4061 = vmatprep.subr.bf16.mxu0 %v3820
      %4062 = vmatpush1.bf16.msra.mxu0 %v3819
      %4063 = vmatprep.subr.bf16.mxu0 %v3818
      %4064 = vmatpush1.bf16.msra.mxu0 %v3817
      %4065 = vmatprep.subr.bf16.mxu0 %v3816
      %4066 = vmatpush1.bf16.msra.mxu0 %v3815
      %4067 = vmatprep.subr.bf16.mxu0 %v3814
      %4068 = vmatpush1.bf16.msra.mxu0 %v3813
      %4069 = vmatprep.subr.bf16.mxu0 %v3812
      %4070 = vmatpush1.bf16.msra.mxu0 %v3811
      %4071 = vmatprep.subr.bf16.mxu0 %v3810
      %4072 = vmatpush1.bf16.msra.mxu0 %v3809
      %4073 = vmatprep.subr.bf16.mxu0 %v3808
      %4074 = vmatpush1.bf16.msra.mxu0 %v3807
      %4075 = vmatprep.subr.bf16.mxu0 %v3806
      %4076 = vmatpush1.bf16.msra.mxu0 %v3805
      %4077 = vmatprep.subr.bf16.mxu0 %v3836
      %4078 = vmatpush2.bf16.msra.mxu0 %v3835
      %4079 = vmatprep.subr.bf16.mxu0 %v3834
      %4080 = vmatpush2.bf16.msra.mxu0 %v3833
      %4081 = vmatprep.subr.bf16.mxu0 %v3832
      %4082 = vmatpush2.bf16.msra.mxu0 %v3831
      %4083 = vmatprep.subr.bf16.mxu0 %v3830
      %4084 = vmatpush2.bf16.msra.mxu0 %v3829
      %4085 = vmatprep.subr.bf16.mxu0 %v3828
      %4086 = vmatpush2.bf16.msra.mxu0 %v3827
      %4087 = vmatprep.subr.bf16.mxu0 %v3826
      %4088 = vmatpush2.bf16.msra.mxu0 %v3825
      %4089 = vmatprep.subr.bf16.mxu0 %v3824
      %4090 = vmatpush2.bf16.msra.mxu0 %v3823
      %4091 = vmatprep.subr.bf16.mxu0 %v3822
      %4092 = vmatpush2.bf16.msra.mxu0 %v3821
      %4093 = vmatprep.mubr.bf16.mxu0 %v3262
      %4094 = vmatmul.mubr.bf16.gmra.mxu0 %v3261
      %v4095 = vpop.f32.mrf.mxu0
      %v4096 = vadd.f32 0.0, %v4095
      %v4097 = vpop.f32.mrf.mxu0
      %v4098 = vadd.f32 0.0, %v4097
      %v4099 = vpop.f32.mrf.mxu0
      %v4100 = vadd.f32 0.0, %v4099
      %v4101 = vpop.f32.mrf.mxu0
      %v4102 = vadd.f32 0.0, %v4101
      %4103 = vmatprep.mubr.bf16.mxu0 %v3270
      %4104 = vmatmul.mubr.bf16.gmra.mxu0 %v3269
      %v4105 = vpop.f32.mrf.mxu0
      %v4106 = vadd.f32 0.0, %v4105
      %v4107 = vpop.f32.mrf.mxu0
      %v4108 = vadd.f32 0.0, %v4107
      %v4109 = vpop.f32.mrf.mxu0
      %v4110 = vadd.f32 0.0, %v4109
      %v4111 = vpop.f32.mrf.mxu0
      %v4112 = vadd.f32 0.0, %v4111
      %4113 = vmatprep.mubr.bf16.mxu0 %v3278
      %4114 = vmatmul.mubr.bf16.gmra.mxu0 %v3277
      %v4115 = vpop.f32.mrf.mxu0
      %v4116 = vadd.f32 0.0, %v4115
      %v4117 = vpop.f32.mrf.mxu0
      %v4118 = vadd.f32 0.0, %v4117
      %v4119 = vpop.f32.mrf.mxu0
      %v4120 = vadd.f32 0.0, %v4119
      %v4121 = vpop.f32.mrf.mxu0
      %v4122 = vadd.f32 0.0, %v4121
      %4123 = vmatprep.mubr.bf16.mxu0 %v3286
      %4124 = vmatmul.mubr.bf16.gmra.mxu0 %v3285
      %v4125 = vpop.f32.mrf.mxu0
      %v4126 = vadd.f32 0.0, %v4125
      %v4127 = vpop.f32.mrf.mxu0
      %v4128 = vadd.f32 0.0, %v4127
      %v4129 = vpop.f32.mrf.mxu0
      %v4130 = vpop.f32.mrf.mxu0
      %4131 = vdwg.mxu0
      %4132 = vmatprep.subr.bf16.mxu0 %v3852
      %4133 = vmatpush1.bf16.msra.mxu0 %v3851
      %4134 = vmatprep.subr.bf16.mxu0 %v3850
      %4135 = vmatpush1.bf16.msra.mxu0 %v3849
      %4136 = vmatprep.subr.bf16.mxu0 %v3848
      %4137 = vmatpush1.bf16.msra.mxu0 %v3847
      %4138 = vmatprep.subr.bf16.mxu0 %v3846
      %4139 = vmatpush1.bf16.msra.mxu0 %v3845
      %4140 = vmatprep.subr.bf16.mxu0 %v3844
      %4141 = vmatpush1.bf16.msra.mxu0 %v3843
      %4142 = vmatprep.subr.bf16.mxu0 %v3842
      %4143 = vmatpush1.bf16.msra.mxu0 %v3841
      %4144 = vmatprep.subr.bf16.mxu0 %v3840
      %4145 = vmatpush1.bf16.msra.mxu0 %v3839
      %4146 = vmatprep.subr.bf16.mxu0 %v3838
      %4147 = vmatpush1.bf16.msra.mxu0 %v3837
      %4148 = vmatprep.subr.bf16.mxu0 %v3868
      %4149 = vmatpush2.bf16.msra.mxu0 %v3867
      %4150 = vmatprep.subr.bf16.mxu0 %v3866
      %4151 = vmatpush2.bf16.msra.mxu0 %v3865
      %4152 = vmatprep.subr.bf16.mxu0 %v3864
      %4153 = vmatpush2.bf16.msra.mxu0 %v3863
      %4154 = vmatprep.subr.bf16.mxu0 %v3862
      %4155 = vmatpush2.bf16.msra.mxu0 %v3861
      %4156 = vmatprep.subr.bf16.mxu0 %v3860
      %4157 = vmatpush2.bf16.msra.mxu0 %v3859
      %4158 = vmatprep.subr.bf16.mxu0 %v3858
      %4159 = vmatpush2.bf16.msra.mxu0 %v3857
      %4160 = vmatprep.subr.bf16.mxu0 %v3856
      %4161 = vmatpush2.bf16.msra.mxu0 %v3855
      %4162 = vmatprep.subr.bf16.mxu0 %v3854
      %4163 = vmatpush2.bf16.msra.mxu0 %v3853
      %4164 = vmatprep.mubr.bf16.mxu0 %v3264
      %4165 = vmatmul.mubr.bf16.gmra.mxu0 %v3263
      %v4166 = vpop.f32.mrf.mxu0
      %v4167 = vadd.f32 %v4096, %v4166
      %v4168 = vpop.f32.mrf.mxu0
      %v4169 = vadd.f32 %v4098, %v4168
      %v4170 = vpop.f32.mrf.mxu0
      %v4171 = vadd.f32 %v4100, %v4170
      %v4172 = vpop.f32.mrf.mxu0
      %v4173 = vadd.f32 %v4102, %v4172
      %4174 = vmatprep.mubr.bf16.mxu0 %v3272
      %4175 = vmatmul.mubr.bf16.gmra.mxu0 %v3271
      %v4176 = vpop.f32.mrf.mxu0
      %v4177 = vadd.f32 %v4106, %v4176
      %v4178 = vpop.f32.mrf.mxu0
      %v4179 = vadd.f32 %v4108, %v4178
      %v4180 = vpop.f32.mrf.mxu0
      %v4181 = vadd.f32 %v4110, %v4180
      %v4182 = vpop.f32.mrf.mxu0
      %v4183 = vadd.f32 %v4112, %v4182
      %4184 = vmatprep.mubr.bf16.mxu0 %v3280
      %4185 = vmatmul.mubr.bf16.gmra.mxu0 %v3279
      %v4186 = vpop.f32.mrf.mxu0
      %v4187 = vadd.f32 %v4116, %v4186
      %v4188 = vpop.f32.mrf.mxu0
      %v4189 = vadd.f32 %v4118, %v4188
      %v4190 = vpop.f32.mrf.mxu0
      %v4191 = vadd.f32 %v4120, %v4190
      %v4192 = vpop.f32.mrf.mxu0
      %v4193 = vadd.f32 %v4122, %v4192
      %4194 = vmatprep.mubr.bf16.mxu0 %v3288
      %4195 = vmatmul.mubr.bf16.gmra.mxu0 %v3287
      %v4196 = vpop.f32.mrf.mxu0
      %v4197 = vadd.f32 %v4126, %v4196
      %v4198 = vpop.f32.mrf.mxu0
      %v4199 = vadd.f32 %v4128, %v4198
      %v4200 = vpop.f32.mrf.mxu0
      %v4201 = vpop.f32.mrf.mxu0
      %4202 = vdwg.mxu0
      %4203 = vmatprep.subr.bf16.mxu0 %v3884
      %4204 = vmatpush1.bf16.msra.mxu0 %v3883
      %4205 = vmatprep.subr.bf16.mxu0 %v3882
      %4206 = vmatpush1.bf16.msra.mxu0 %v3881
      %4207 = vmatprep.subr.bf16.mxu0 %v3880
      %4208 = vmatpush1.bf16.msra.mxu0 %v3879
      %4209 = vmatprep.subr.bf16.mxu0 %v3878
      %4210 = vmatpush1.bf16.msra.mxu0 %v3877
      %4211 = vmatprep.subr.bf16.mxu0 %v3876
      %4212 = vmatpush1.bf16.msra.mxu0 %v3875
      %4213 = vmatprep.subr.bf16.mxu0 %v3874
      %4214 = vmatpush1.bf16.msra.mxu0 %v3873
      %4215 = vmatprep.subr.bf16.mxu0 %v3872
      %4216 = vmatpush1.bf16.msra.mxu0 %v3871
      %4217 = vmatprep.subr.bf16.mxu0 %v3870
      %4218 = vmatpush1.bf16.msra.mxu0 %v3869
      %4219 = vmatprep.subr.bf16.mxu0 %v3900
      %4220 = vmatpush2.bf16.msra.mxu0 %v3899
      %4221 = vmatprep.subr.bf16.mxu0 %v3898
      %4222 = vmatpush2.bf16.msra.mxu0 %v3897
      %4223 = vmatprep.subr.bf16.mxu0 %v3896
      %4224 = vmatpush2.bf16.msra.mxu0 %v3895
      %4225 = vmatprep.subr.bf16.mxu0 %v3894
      %4226 = vmatpush2.bf16.msra.mxu0 %v3893
      %4227 = vmatprep.subr.bf16.mxu0 %v3892
      %4228 = vmatpush2.bf16.msra.mxu0 %v3891
      %4229 = vmatprep.subr.bf16.mxu0 %v3890
      %4230 = vmatpush2.bf16.msra.mxu0 %v3889
      %4231 = vmatprep.subr.bf16.mxu0 %v3888
      %4232 = vmatpush2.bf16.msra.mxu0 %v3887
      %4233 = vmatprep.subr.bf16.mxu0 %v3886
      %4234 = vmatpush2.bf16.msra.mxu0 %v3885
      %4235 = vmatprep.mubr.bf16.mxu0 %v3266
      %4236 = vmatmul.mubr.bf16.gmra.mxu0 %v3265
      %v4237 = vpop.f32.mrf.mxu0
      %v4238 = vadd.f32 %v4167, %v4237
      %v4239 = vpop.f32.mrf.mxu0
      %v4240 = vadd.f32 %v4169, %v4239
      %v4241 = vpop.f32.mrf.mxu0
      %v4242 = vadd.f32 %v4171, %v4241
      %v4243 = vpop.f32.mrf.mxu0
      %v4244 = vadd.f32 %v4173, %v4243
      %4245 = vmatprep.mubr.bf16.mxu0 %v3274
      %4246 = vmatmul.mubr.bf16.gmra.mxu0 %v3273
      %v4247 = vpop.f32.mrf.mxu0
      %v4248 = vadd.f32 %v4177, %v4247
      %v4249 = vpop.f32.mrf.mxu0
      %v4250 = vadd.f32 %v4179, %v4249
      %v4251 = vpop.f32.mrf.mxu0
      %v4252 = vadd.f32 %v4181, %v4251
      %v4253 = vpop.f32.mrf.mxu0
      %v4254 = vadd.f32 %v4183, %v4253
      %4255 = vmatprep.mubr.bf16.mxu0 %v3282
      %4256 = vmatmul.mubr.bf16.gmra.mxu0 %v3281
      %v4257 = vpop.f32.mrf.mxu0
      %v4258 = vadd.f32 %v4187, %v4257
      %v4259 = vpop.f32.mrf.mxu0
      %v4260 = vadd.f32 %v4189, %v4259
      %v4261 = vpop.f32.mrf.mxu0
      %v4262 = vadd.f32 %v4191, %v4261
      %v4263 = vpop.f32.mrf.mxu0
      %v4264 = vadd.f32 %v4193, %v4263
      %4265 = vmatprep.mubr.bf16.mxu0 %v3290
      %4266 = vmatmul.mubr.bf16.gmra.mxu0 %v3289
      %v4267 = vpop.f32.mrf.mxu0
      %v4268 = vadd.f32 %v4197, %v4267
      %v4269 = vpop.f32.mrf.mxu0
      %v4270 = vadd.f32 %v4199, %v4269
      %v4271 = vpop.f32.mrf.mxu0
      %v4272 = vpop.f32.mrf.mxu0
      %4273 = vdwg.mxu0
      %4274 = vmatprep.subr.bf16.mxu0 %v3916
      %4275 = vmatpush1.bf16.msra.mxu0 %v3915
      %4276 = vmatprep.subr.bf16.mxu0 %v3914
      %4277 = vmatpush1.bf16.msra.mxu0 %v3913
      %4278 = vmatprep.subr.bf16.mxu0 %v3912
      %4279 = vmatpush1.bf16.msra.mxu0 %v3911
      %4280 = vmatprep.subr.bf16.mxu0 %v3910
      %4281 = vmatpush1.bf16.msra.mxu0 %v3909
      %4282 = vmatprep.subr.bf16.mxu0 %v3908
      %4283 = vmatpush1.bf16.msra.mxu0 %v3907
      %4284 = vmatprep.subr.bf16.mxu0 %v3906
      %4285 = vmatpush1.bf16.msra.mxu0 %v3905
      %4286 = vmatprep.subr.bf16.mxu0 %v3904
      %4287 = vmatpush1.bf16.msra.mxu0 %v3903
      %4288 = vmatprep.subr.bf16.mxu0 %v3902
      %4289 = vmatpush1.bf16.msra.mxu0 %v3901
      %4290 = vmatprep.subr.bf16.mxu0 %v3932
      %4291 = vmatpush2.bf16.msra.mxu0 %v3931
      %4292 = vmatprep.subr.bf16.mxu0 %v3930
      %4293 = vmatpush2.bf16.msra.mxu0 %v3929
      %4294 = vmatprep.subr.bf16.mxu0 %v3928
      %4295 = vmatpush2.bf16.msra.mxu0 %v3927
      %4296 = vmatprep.subr.bf16.mxu0 %v3926
      %4297 = vmatpush2.bf16.msra.mxu0 %v3925
      %4298 = vmatprep.subr.bf16.mxu0 %v3924
      %4299 = vmatpush2.bf16.msra.mxu0 %v3923
      %4300 = vmatprep.subr.bf16.mxu0 %v3922
      %4301 = vmatpush2.bf16.msra.mxu0 %v3921
      %4302 = vmatprep.subr.bf16.mxu0 %v3920
      %4303 = vmatpush2.bf16.msra.mxu0 %v3919
      %4304 = vmatprep.subr.bf16.mxu0 %v3918
      %4305 = vmatpush2.bf16.msra.mxu0 %v3917
      %4306 = vmatprep.mubr.bf16.mxu0 %v3268
      %4307 = vmatmul.mubr.bf16.gmra.mxu0 %v3267
      %v4308 = vpop.f32.mrf.mxu0
      %v4309 = vadd.f32 %v4238, %v4308
      %v4310 = vpop.f32.mrf.mxu0
      %v4311 = vadd.f32 %v4240, %v4310
      %v4312 = vpop.f32.mrf.mxu0
      %v4313 = vadd.f32 %v4242, %v4312
      %v4314 = vpop.f32.mrf.mxu0
      %v4315 = vadd.f32 %v4244, %v4314
      %4316 = vmatprep.mubr.bf16.mxu0 %v3276
      %4317 = vmatmul.mubr.bf16.gmra.mxu0 %v3275
      %v4318 = vpop.f32.mrf.mxu0
      %v4319 = vadd.f32 %v4248, %v4318
      %v4320 = vpop.f32.mrf.mxu0
      %v4321 = vadd.f32 %v4250, %v4320
      %v4322 = vpop.f32.mrf.mxu0
      %v4323 = vadd.f32 %v4252, %v4322
      %v4324 = vpop.f32.mrf.mxu0
      %v4325 = vadd.f32 %v4254, %v4324
      %4326 = vmatprep.mubr.bf16.mxu0 %v3284
      %4327 = vmatmul.mubr.bf16.gmra.mxu0 %v3283
      %v4328 = vpop.f32.mrf.mxu0
      %v4329 = vadd.f32 %v4258, %v4328
      %v4330 = vpop.f32.mrf.mxu0
      %v4331 = vadd.f32 %v4260, %v4330
      %v4332 = vpop.f32.mrf.mxu0
      %v4333 = vadd.f32 %v4262, %v4332
      %v4334 = vpop.f32.mrf.mxu0
      %v4335 = vadd.f32 %v4264, %v4334
      %4336 = vmatprep.mubr.bf16.mxu0 %v3292
      %4337 = vmatmul.mubr.bf16.gmra.mxu0 %v3291
      %v4338 = vpop.f32.mrf.mxu0
      %v4339 = vadd.f32 %v4268, %v4338
      %v4340 = vpop.f32.mrf.mxu0
      %v4341 = vadd.f32 %v4270, %v4340
      %v4342 = vpop.f32.mrf.mxu0
      %v4343 = vpop.f32.mrf.mxu0
      %4344 = vdwg.mxu0
      %v4345 = vadd.f32 %v4309, %v4311
      %4346 = vadd.xlane.f32.xlu0 %v4345
      %v4347 = vpop.xlane.xlu0 %4346
      %v4348 = vadd.f32 %v4313, %v4315
      %4349 = vadd.xlane.f32.xlu0 %v4348
      %v4350 = vpop.xlane.xlu0 %4349
      %v4351 = vadd.f32 %v4319, %v4321
      %4352 = vadd.xlane.f32.xlu0 %v4351
      %v4353 = vpop.xlane.xlu0 %4352
      %v4354 = vadd.f32 %v4323, %v4325
      %4355 = vadd.xlane.f32.xlu0 %v4354
      %v4356 = vpop.xlane.xlu0 %4355
      %v4357 = vadd.f32 %v4329, %v4331
      %4358 = vadd.xlane.f32.xlu0 %v4357
      %v4359 = vpop.xlane.xlu0 %4358
      %v4360 = vadd.f32 %v4333, %v4335
      %4361 = vadd.xlane.f32.xlu0 %v4360
      %v4362 = vpop.xlane.xlu0 %4361
      %vm4363 = vcmask 1043456
      %v4364 = vsel %vm4363, %v4339, 0.0
      %v4365 = vsel %vm4363, %v4341, 0.0
      %v4366 = vadd.f32 %v4364, %v4365
      %4367 = vadd.xlane.f32.xlu0 %v4366
      %v4368 = vpop.xlane.xlu0 %4367
      %vm4369 = vcmp.gt.f32.partialorder %v4347, 0.0
      %vm4370 = vcmp.gt.f32.partialorder %v4350, 0.0
      %vm4371 = vcmp.gt.f32.partialorder %v4353, 0.0
      %vm4372 = vcmp.gt.f32.partialorder %v4356, 0.0
      %vm4373 = vcmp.gt.f32.partialorder %v4359, 0.0
      %vm4374 = vcmp.gt.f32.partialorder %v4362, 0.0
      %vm4375 = vcmp.gt.f32.partialorder %v4368, 0.0
      %v4376 = vrcp.pop %v4347
      %v4377 = vrcp.pop %v4350
      %v4378 = vrcp.pop %v4353
      %v4379 = vrcp.pop %v4356
      %v4380 = vrcp.pop %v4359
      %v4381 = vrcp.pop %v4362
      %v4382 = vrcp.pop %v4368
      %v4383 = vsel %vm4369, %v4376, 0.0
      %v4384 = vsel %vm4370, %v4377, 0.0
      %v4385 = vsel %vm4371, %v4378, 0.0
      %v4386 = vsel %vm4372, %v4379, 0.0
      %v4387 = vsel %vm4373, %v4380, 0.0
      %v4388 = vsel %vm4374, %v4381, 0.0
      %v4389 = vsel %vm4375, %v4382, 0.0
      %v4390 = vmul.f32 %v4309, %v4383
      %v4391 = vmul.f32 %v4311, %v4383
      %v4392 = vmul.f32 %v4313, %v4384
      %v4393 = vmul.f32 %v4315, %v4384
      %v4394 = vmul.f32 %v4319, %v4385
      %v4395 = vmul.f32 %v4321, %v4385
      %v4396 = vmul.f32 %v4323, %v4386
      %v4397 = vmul.f32 %v4325, %v4386
      %v4398 = vmul.f32 %v4329, %v4387
      %v4399 = vmul.f32 %v4331, %v4387
      %v4400 = vmul.f32 %v4333, %v4388
      %v4401 = vmul.f32 %v4335, %v4388
      %v4402 = vmul.f32 %v4339, %v4389
      %v4403 = vmul.f32 %v4341, %v4389
      %v4404 = vpack.c.bf16 %v4392, %v4390
      %v4405 = vpack.c.bf16 %v4393, %v4391
      %v4406 = vpack.c.bf16 %v4396, %v4394
      %v4407 = vpack.c.bf16 %v4397, %v4395
      %v4408 = vpack.c.bf16 %v4400, %v4398
      %v4409 = vpack.c.bf16 %v4401, %v4399
      %v4410 = vpack.c.bf16 %v4402, %v4402
      %v4411 = vpack.c.bf16 %v4403, %v4403
      %v4420 = vcombine.low %v4404, %v4405
      %v4421 = vcombine.high %v4404, %v4405
      %v4423 = vunpack.c.l.s4 1966171168
      %v4424 = vunpack.c.0.s8 %v4423
      %v4425 = vlaneseq
      %v4426 = vshrl.u32 %v4425, 7
      %v4427 = vsub.s32 %v4424, %v4426
      %v4428 = vrot.slane %v4420, %v4427
      %v4430 = vunpack.c.l.s4 1966171168
      %v4431 = vunpack.c.0.s8 %v4430
      %v4432 = vlaneseq
      %v4433 = vshrl.u32 %v4432, 7
      %v4434 = vsub.s32 %v4431, %v4433
      %v4435 = vrot.slane %v4421, %v4434
      %v4436 = vcombine.high %v4428, %v4428
      %v4437 = vcombine.high %v4435, %v4435
      %v4439 = vunpack.c.l.s4 1966171168
      %v4440 = vunpack.c.0.s8 %v4439
      %v4441 = vlaneseq
      %v4442 = vshrl.u32 %v4441, 7
      %v4443 = vsub.s32 %v4440, %v4442
      %v4444 = vrot.slane %v4428, %v4443
      %v4446 = vunpack.c.l.s4 1966171168
      %v4447 = vunpack.c.0.s8 %v4446
      %v4448 = vlaneseq
      %v4449 = vshrl.u32 %v4448, 7
      %v4450 = vsub.s32 %v4447, %v4449
      %v4451 = vrot.slane %v4435, %v4450
      %v4453 = vunpack.c.l.s4 1966171168
      %v4454 = vunpack.c.0.s8 %v4453
      %v4455 = vlaneseq
      %v4456 = vshrl.u32 %v4455, 7
      %v4457 = vsub.s32 %v4454, %v4456
      %v4458 = vrot.slane %v4436, %v4457
      %v4460 = vunpack.c.l.s4 1966171168
      %v4461 = vunpack.c.0.s8 %v4460
      %v4462 = vlaneseq
      %v4463 = vshrl.u32 %v4462, 7
      %v4464 = vsub.s32 %v4461, %v4463
      %v4465 = vrot.slane %v4437, %v4464
      %v4466 = vcombine.high %v4444, %v4444
      %v4467 = vcombine.high %v4451, %v4451
      %v4468 = vcombine.high %v4458, %v4458
      %v4469 = vcombine.high %v4465, %v4465
      %v4470 = vcombine.low %v4406, %v4407
      %v4471 = vcombine.high %v4406, %v4407
      %v4473 = vunpack.c.l.s4 1966171168
      %v4474 = vunpack.c.0.s8 %v4473
      %v4475 = vlaneseq
      %v4476 = vshrl.u32 %v4475, 7
      %v4477 = vsub.s32 %v4474, %v4476
      %v4478 = vrot.slane %v4470, %v4477
      %v4480 = vunpack.c.l.s4 1966171168
      %v4481 = vunpack.c.0.s8 %v4480
      %v4482 = vlaneseq
      %v4483 = vshrl.u32 %v4482, 7
      %v4484 = vsub.s32 %v4481, %v4483
      %v4485 = vrot.slane %v4471, %v4484
      %v4486 = vcombine.high %v4478, %v4478
      %v4487 = vcombine.high %v4485, %v4485
      %v4489 = vunpack.c.l.s4 1966171168
      %v4490 = vunpack.c.0.s8 %v4489
      %v4491 = vlaneseq
      %v4492 = vshrl.u32 %v4491, 7
      %v4493 = vsub.s32 %v4490, %v4492
      %v4494 = vrot.slane %v4478, %v4493
      %v4496 = vunpack.c.l.s4 1966171168
      %v4497 = vunpack.c.0.s8 %v4496
      %v4498 = vlaneseq
      %v4499 = vshrl.u32 %v4498, 7
      %v4500 = vsub.s32 %v4497, %v4499
      %v4501 = vrot.slane %v4485, %v4500
      %v4503 = vunpack.c.l.s4 1966171168
      %v4504 = vunpack.c.0.s8 %v4503
      %v4505 = vlaneseq
      %v4506 = vshrl.u32 %v4505, 7
      %v4507 = vsub.s32 %v4504, %v4506
      %v4508 = vrot.slane %v4486, %v4507
      %v4510 = vunpack.c.l.s4 1966171168
      %v4511 = vunpack.c.0.s8 %v4510
      %v4512 = vlaneseq
      %v4513 = vshrl.u32 %v4512, 7
      %v4514 = vsub.s32 %v4511, %v4513
      %v4515 = vrot.slane %v4487, %v4514
      %v4516 = vcombine.high %v4494, %v4494
      %v4517 = vcombine.high %v4501, %v4501
      %v4518 = vcombine.high %v4508, %v4508
      %v4519 = vcombine.high %v4515, %v4515
      %v4520 = vcombine.low %v4408, %v4409
      %v4521 = vcombine.high %v4408, %v4409
      %v4523 = vunpack.c.l.s4 1966171168
      %v4524 = vunpack.c.0.s8 %v4523
      %v4525 = vlaneseq
      %v4526 = vshrl.u32 %v4525, 7
      %v4527 = vsub.s32 %v4524, %v4526
      %v4528 = vrot.slane %v4520, %v4527
      %v4530 = vunpack.c.l.s4 1966171168
      %v4531 = vunpack.c.0.s8 %v4530
      %v4532 = vlaneseq
      %v4533 = vshrl.u32 %v4532, 7
      %v4534 = vsub.s32 %v4531, %v4533
      %v4535 = vrot.slane %v4521, %v4534
      %v4536 = vcombine.high %v4528, %v4528
      %v4537 = vcombine.high %v4535, %v4535
      %v4539 = vunpack.c.l.s4 1966171168
      %v4540 = vunpack.c.0.s8 %v4539
      %v4541 = vlaneseq
      %v4542 = vshrl.u32 %v4541, 7
      %v4543 = vsub.s32 %v4540, %v4542
      %v4544 = vrot.slane %v4528, %v4543
      %v4546 = vunpack.c.l.s4 1966171168
      %v4547 = vunpack.c.0.s8 %v4546
      %v4548 = vlaneseq
      %v4549 = vshrl.u32 %v4548, 7
      %v4550 = vsub.s32 %v4547, %v4549
      %v4551 = vrot.slane %v4535, %v4550
      %v4553 = vunpack.c.l.s4 1966171168
      %v4554 = vunpack.c.0.s8 %v4553
      %v4555 = vlaneseq
      %v4556 = vshrl.u32 %v4555, 7
      %v4557 = vsub.s32 %v4554, %v4556
      %v4558 = vrot.slane %v4536, %v4557
      %v4560 = vunpack.c.l.s4 1966171168
      %v4561 = vunpack.c.0.s8 %v4560
      %v4562 = vlaneseq
      %v4563 = vshrl.u32 %v4562, 7
      %v4564 = vsub.s32 %v4561, %v4563
      %v4565 = vrot.slane %v4537, %v4564
      %v4566 = vcombine.high %v4544, %v4544
      %v4567 = vcombine.high %v4551, %v4551
      %v4568 = vcombine.high %v4558, %v4558
      %v4569 = vcombine.high %v4565, %v4565
      %v4570 = vcombine.low %v4410, %v4411
      %v4572 = vunpack.c.l.s4 1966171168
      %v4573 = vunpack.c.0.s8 %v4572
      %v4574 = vlaneseq
      %v4575 = vshrl.u32 %v4574, 7
      %v4576 = vsub.s32 %v4573, %v4575
      %v4577 = vrot.slane %v4570, %v4576
      %v4578 = vcombine.high %v4577, %v4577
      %v4580 = vunpack.c.l.s4 1966171168
      %v4581 = vunpack.c.0.s8 %v4580
      %v4582 = vlaneseq
      %v4583 = vshrl.u32 %v4582, 7
      %v4584 = vsub.s32 %v4581, %v4583
      %v4585 = vrot.slane %v4577, %v4584
      %v4587 = vunpack.c.l.s4 1966171168
      %v4588 = vunpack.c.0.s8 %v4587
      %v4589 = vlaneseq
      %v4590 = vshrl.u32 %v4589, 7
      %v4591 = vsub.s32 %v4588, %v4590
      %v4592 = vrot.slane %v4578, %v4591
      %v4593 = vpack.c.bf16 %v1981, %v1980
      %v4594 = vpack.c.bf16 %v1983, %v1982
      %v4595 = vpack.c.bf16 %v1985, %v1984
      %v4596 = vpack.c.bf16 %v1987, %v1986
      %v4597 = vpack.c.bf16 %v1989, %v1988
      %v4598 = vpack.c.bf16 %v1991, %v1990
      %v4599 = vpack.c.bf16 %v1993, %v1992
      %v4600 = vpack.c.bf16 %v1995, %v1994
      %v4601 = vpack.c.bf16 %v1997, %v1996
      %v4602 = vpack.c.bf16 %v1999, %v1998
      %v4603 = vpack.c.bf16 %v2001, %v2000
      %v4604 = vpack.c.bf16 %v2003, %v2002
      %v4605 = vpack.c.bf16 %v2005, %v2004
      %v4606 = vpack.c.bf16 %v2007, %v2006
      %v4607 = vpack.c.bf16 %v2009, %v2008
      %v4608 = vpack.c.bf16 %v2011, %v2010
      %v4609 = vpack.c.bf16 %v2013, %v2012
      %v4610 = vpack.c.bf16 %v2015, %v2014
      %v4611 = vpack.c.bf16 %v2017, %v2016
      %v4612 = vpack.c.bf16 %v2019, %v2018
      %v4613 = vpack.c.bf16 %v2021, %v2020
      %v4614 = vpack.c.bf16 %v2023, %v2022
      %v4615 = vpack.c.bf16 %v2025, %v2024
      %v4616 = vpack.c.bf16 %v2027, %v2026
      %v4617 = vpack.c.bf16 %v2029, %v2028
      %v4618 = vpack.c.bf16 %v2031, %v2030
      %v4619 = vpack.c.bf16 %v2033, %v2032
      %v4620 = vpack.c.bf16 %v2035, %v2034
      %v4621 = vpack.c.bf16 %v2037, %v2036
      %v4622 = vpack.c.bf16 %v2039, %v2038
      %v4623 = vpack.c.bf16 %v2041, %v2040
      %v4624 = vpack.c.bf16 %v2043, %v2042
      %v4625 = vcombine.low %v4444, %v4458
      %v4626 = vcombine.low %v4466, %v4468
      %v4627 = vcombine.low %v4451, %v4465
      %v4628 = vcombine.low %v4467, %v4469
      %v4630 = vunpack.c.l.s4 1966171168
      %v4631 = vunpack.c.0.s8 %v4630
      %v4632 = vlaneseq
      %v4633 = vshrl.u32 %v4632, 7
      %v4634 = vsub.s32 %v4631, %v4633
      %v4635 = vrot.slane %v4625, %v4634
      %v4637 = vunpack.c.l.s4 1966171168
      %v4638 = vunpack.c.0.s8 %v4637
      %v4639 = vlaneseq
      %v4640 = vshrl.u32 %v4639, 7
      %v4641 = vsub.s32 %v4638, %v4640
      %v4642 = vrot.slane %v4626, %v4641
      %v4644 = vunpack.c.l.s4 1966171168
      %v4645 = vunpack.c.0.s8 %v4644
      %v4646 = vlaneseq
      %v4647 = vshrl.u32 %v4646, 7
      %v4648 = vsub.s32 %v4645, %v4647
      %v4649 = vrot.slane %v4627, %v4648
      %v4651 = vunpack.c.l.s4 1966171168
      %v4652 = vunpack.c.0.s8 %v4651
      %v4653 = vlaneseq
      %v4654 = vshrl.u32 %v4653, 7
      %v4655 = vsub.s32 %v4652, %v4654
      %v4656 = vrot.slane %v4628, %v4655
      %v4657 = vcombine.low %v4635, %v4642
      %v4658 = vcombine.high %v4635, %v4642
      %v4659 = vcombine.low %v4649, %v4656
      %v4660 = vcombine.high %v4649, %v4656
      %v4662 = vunpack.c.l.s4 1966171168
      %v4663 = vunpack.c.0.s8 %v4662
      %v4664 = vlaneseq
      %v4665 = vshrl.u32 %v4664, 7
      %v4666 = vsub.s32 %v4663, %v4665
      %v4667 = vrot.slane %v4657, %v4666
      %v4669 = vunpack.c.l.s4 1966171168
      %v4670 = vunpack.c.0.s8 %v4669
      %v4671 = vlaneseq
      %v4672 = vshrl.u32 %v4671, 7
      %v4673 = vsub.s32 %v4670, %v4672
      %v4674 = vrot.slane %v4658, %v4673
      %v4676 = vunpack.c.l.s4 1966171168
      %v4677 = vunpack.c.0.s8 %v4676
      %v4678 = vlaneseq
      %v4679 = vshrl.u32 %v4678, 7
      %v4680 = vsub.s32 %v4677, %v4679
      %v4681 = vrot.slane %v4659, %v4680
      %v4683 = vunpack.c.l.s4 1966171168
      %v4684 = vunpack.c.0.s8 %v4683
      %v4685 = vlaneseq
      %v4686 = vshrl.u32 %v4685, 7
      %v4687 = vsub.s32 %v4684, %v4686
      %v4688 = vrot.slane %v4660, %v4687
      %v4689 = vcombine.low %v4667, %v4681
      %v4690 = vcombine.low %v4674, %v4688
      %v4691 = vcombine.low %v4494, %v4508
      %v4692 = vcombine.low %v4516, %v4518
      %v4694 = vunpack.c.l.s4 1966171168
      %v4695 = vunpack.c.0.s8 %v4694
      %v4696 = vlaneseq
      %v4697 = vshrl.u32 %v4696, 7
      %v4698 = vsub.s32 %v4695, %v4697
      %v4699 = vrot.slane %v4691, %v4698
      %v4701 = vunpack.c.l.s4 1966171168
      %v4702 = vunpack.c.0.s8 %v4701
      %v4703 = vlaneseq
      %v4704 = vshrl.u32 %v4703, 7
      %v4705 = vsub.s32 %v4702, %v4704
      %v4706 = vrot.slane %v4692, %v4705
      %v4708 = vunpack.c.l.s4 1966171168
      %v4709 = vunpack.c.0.s8 %v4708
      %v4710 = vlaneseq
      %v4711 = vshrl.u32 %v4710, 7
      %v4712 = vsub.s32 %v4709, %v4711
      %v4713 = vrot.slane %v4501, %v4712
      %v4714 = vcombine.low %v4699, %v4706
      %v4715 = vcombine.high %v4699, %v4706
      %v4716 = vcombine.high %v4713, %v4713
      %v4718 = vunpack.c.l.s4 1966171168
      %v4719 = vunpack.c.0.s8 %v4718
      %v4720 = vlaneseq
      %v4721 = vshrl.u32 %v4720, 7
      %v4722 = vsub.s32 %v4719, %v4721
      %v4723 = vrot.slane %v4714, %v4722
      %v4725 = vunpack.c.l.s4 1966171168
      %v4726 = vunpack.c.0.s8 %v4725
      %v4727 = vlaneseq
      %v4728 = vshrl.u32 %v4727, 7
      %v4729 = vsub.s32 %v4726, %v4728
      %v4730 = vrot.slane %v4715, %v4729
      %v4732 = vunpack.c.l.s4 1966171168
      %v4733 = vunpack.c.0.s8 %v4732
      %v4734 = vlaneseq
      %v4735 = vshrl.u32 %v4734, 7
      %v4736 = vsub.s32 %v4733, %v4735
      %v4737 = vrot.slane %v4713, %v4736
      %v4739 = vunpack.c.l.s4 1966171168
      %v4740 = vunpack.c.0.s8 %v4739
      %v4741 = vlaneseq
      %v4742 = vshrl.u32 %v4741, 7
      %v4743 = vsub.s32 %v4740, %v4742
      %v4744 = vrot.slane %v4716, %v4743
      %v4745 = vcombine.low %v4723, %v4737
      %v4746 = vcombine.low %v4730, %v4744
      %4751 = vmatprep.subr.bf16.mxu0 0
      %4752 = vmatpush1.bf16.msra.mxu0 %v4600
      %4753 = vmatprep.subr.bf16.mxu0 0
      %4754 = vmatpush1.bf16.msra.mxu0 %v4599
      %4755 = vmatprep.subr.bf16.mxu0 0
      %4756 = vmatpush1.bf16.msra.mxu0 %v4598
      %4757 = vmatprep.subr.bf16.mxu0 0
      %4758 = vmatpush1.bf16.msra.mxu0 %v4597
      %4759 = vmatprep.subr.bf16.mxu0 0
      %4760 = vmatpush1.bf16.msra.mxu0 %v4596
      %4761 = vmatprep.subr.bf16.mxu0 0
      %4762 = vmatpush1.bf16.msra.mxu0 %v4595
      %4763 = vmatprep.subr.bf16.mxu0 0
      %4764 = vmatpush1.bf16.msra.mxu0 %v4594
      %4765 = vmatprep.subr.bf16.mxu0 0
      %4766 = vmatpush1.bf16.msra.mxu0 %v4593
      %4767 = vmatprep.subr.bf16.mxu0 0
      %4768 = vmatpush2.bf16.msra.mxu0 %v4608
      %4769 = vmatprep.subr.bf16.mxu0 0
      %4770 = vmatpush2.bf16.msra.mxu0 %v4607
      %4771 = vmatprep.subr.bf16.mxu0 0
      %4772 = vmatpush2.bf16.msra.mxu0 %v4606
      %4773 = vmatprep.subr.bf16.mxu0 0
      %4774 = vmatpush2.bf16.msra.mxu0 %v4605
      %4775 = vmatprep.subr.bf16.mxu0 0
      %4776 = vmatpush2.bf16.msra.mxu0 %v4604
      %4777 = vmatprep.subr.bf16.mxu0 0
      %4778 = vmatpush2.bf16.msra.mxu0 %v4603
      %4779 = vmatprep.subr.bf16.mxu0 0
      %4780 = vmatpush2.bf16.msra.mxu0 %v4602
      %4781 = vmatprep.subr.bf16.mxu0 0
      %4782 = vmatpush2.bf16.msra.mxu0 %v4601
      %4783 = vmatprep.mubr.bf16.mxu0 %v4690
      %4784 = vmatmul.mubr.bf16.gmra.mxu0 %v4689
      %v4785 = vpop.f32.mrf.mxu0
      %v4786 = vadd.f32 0.0, %v4785
      %v4787 = vpop.f32.mrf.mxu0
      %v4788 = vpop.f32.mrf.mxu0
      %v4789 = vadd.f32 0.0, %v4788
      %v4790 = vpop.f32.mrf.mxu0
      %4791 = vmatprep.mubr.bf16.mxu0 %v4746
      %4792 = vmatmul.mubr.bf16.gmra.mxu0 %v4745
      %v4793 = vpop.f32.mrf.mxu0
      %v4794 = vadd.f32 0.0, %v4793
      %v4795 = vpop.f32.mrf.mxu0
      %v4796 = vpop.f32.mrf.mxu0
      %v4797 = vadd.f32 0.0, %v4796
      %v4798 = vpop.f32.mrf.mxu0
      %4799 = vdwg.mxu0
      %v4800 = vcombine.low %v4515, %v4517
      %v4801 = vcombine.low %v4519, %v4544
      %v4802 = vcombine.low %v4558, %v4566
      %v4803 = vcombine.low %v4568, %v4551
      %v4805 = vunpack.c.l.s4 1966171168
      %v4806 = vunpack.c.0.s8 %v4805
      %v4807 = vlaneseq
      %v4808 = vshrl.u32 %v4807, 7
      %v4809 = vsub.s32 %v4806, %v4808
      %v4810 = vrot.slane %v4800, %v4809
      %v4812 = vunpack.c.l.s4 1966171168
      %v4813 = vunpack.c.0.s8 %v4812
      %v4814 = vlaneseq
      %v4815 = vshrl.u32 %v4814, 7
      %v4816 = vsub.s32 %v4813, %v4815
      %v4817 = vrot.slane %v4801, %v4816
      %v4819 = vunpack.c.l.s4 1966171168
      %v4820 = vunpack.c.0.s8 %v4819
      %v4821 = vlaneseq
      %v4822 = vshrl.u32 %v4821, 7
      %v4823 = vsub.s32 %v4820, %v4822
      %v4824 = vrot.slane %v4802, %v4823
      %v4826 = vunpack.c.l.s4 1966171168
      %v4827 = vunpack.c.0.s8 %v4826
      %v4828 = vlaneseq
      %v4829 = vshrl.u32 %v4828, 7
      %v4830 = vsub.s32 %v4827, %v4829
      %v4831 = vrot.slane %v4803, %v4830
      %v4832 = vcombine.low %v4810, %v4817
      %v4833 = vcombine.high %v4810, %v4817
      %v4834 = vcombine.low %v4824, %v4831
      %v4835 = vcombine.high %v4824, %v4831
      %v4837 = vunpack.c.l.s4 1966171168
      %v4838 = vunpack.c.0.s8 %v4837
      %v4839 = vlaneseq
      %v4840 = vshrl.u32 %v4839, 7
      %v4841 = vsub.s32 %v4838, %v4840
      %v4842 = vrot.slane %v4832, %v4841
      %v4844 = vunpack.c.l.s4 1966171168
      %v4845 = vunpack.c.0.s8 %v4844
      %v4846 = vlaneseq
      %v4847 = vshrl.u32 %v4846, 7
      %v4848 = vsub.s32 %v4845, %v4847
      %v4849 = vrot.slane %v4833, %v4848
      %v4851 = vunpack.c.l.s4 1966171168
      %v4852 = vunpack.c.0.s8 %v4851
      %v4853 = vlaneseq
      %v4854 = vshrl.u32 %v4853, 7
      %v4855 = vsub.s32 %v4852, %v4854
      %v4856 = vrot.slane %v4834, %v4855
      %v4858 = vunpack.c.l.s4 1966171168
      %v4859 = vunpack.c.0.s8 %v4858
      %v4860 = vlaneseq
      %v4861 = vshrl.u32 %v4860, 7
      %v4862 = vsub.s32 %v4859, %v4861
      %v4863 = vrot.slane %v4835, %v4862
      %v4864 = vcombine.low %v4842, %v4856
      %v4865 = vcombine.low %v4849, %v4863
      %v4866 = vcombine.low %v4565, %v4567
      %v4867 = vcombine.low %v4569, %v4585
      %v4869 = vunpack.c.l.s4 1966171168
      %v4870 = vunpack.c.0.s8 %v4869
      %v4871 = vlaneseq
      %v4872 = vshrl.u32 %v4871, 7
      %v4873 = vsub.s32 %v4870, %v4872
      %v4874 = vrot.slane %v4866, %v4873
      %v4876 = vunpack.c.l.s4 1966171168
      %v4877 = vunpack.c.0.s8 %v4876
      %v4878 = vlaneseq
      %v4879 = vshrl.u32 %v4878, 7
      %v4880 = vsub.s32 %v4877, %v4879
      %v4881 = vrot.slane %v4867, %v4880
      %v4883 = vunpack.c.l.s4 1966171168
      %v4884 = vunpack.c.0.s8 %v4883
      %v4885 = vlaneseq
      %v4886 = vshrl.u32 %v4885, 7
      %v4887 = vsub.s32 %v4884, %v4886
      %v4888 = vrot.slane %v4592, %v4887
      %v4889 = vcombine.low %v4874, %v4881
      %v4890 = vcombine.high %v4874, %v4881
      %v4891 = vcombine.high %v4888, %v4888
      %v4893 = vunpack.c.l.s4 1966171168
      %v4894 = vunpack.c.0.s8 %v4893
      %v4895 = vlaneseq
      %v4896 = vshrl.u32 %v4895, 7
      %v4897 = vsub.s32 %v4894, %v4896
      %v4898 = vrot.slane %v4889, %v4897
      %v4900 = vunpack.c.l.s4 1966171168
      %v4901 = vunpack.c.0.s8 %v4900
      %v4902 = vlaneseq
      %v4903 = vshrl.u32 %v4902, 7
      %v4904 = vsub.s32 %v4901, %v4903
      %v4905 = vrot.slane %v4890, %v4904
      %v4907 = vunpack.c.l.s4 1966171168
      %v4908 = vunpack.c.0.s8 %v4907
      %v4909 = vlaneseq
      %v4910 = vshrl.u32 %v4909, 7
      %v4911 = vsub.s32 %v4908, %v4910
      %v4912 = vrot.slane %v4888, %v4911
      %v4914 = vunpack.c.l.s4 1966171168
      %v4915 = vunpack.c.0.s8 %v4914
      %v4916 = vlaneseq
      %v4917 = vshrl.u32 %v4916, 7
      %v4918 = vsub.s32 %v4915, %v4917
      %v4919 = vrot.slane %v4891, %v4918
      %v4920 = vcombine.low %v4898, %v4912
      %v4921 = vcombine.low %v4905, %v4919
      %4926 = vmatprep.subr.bf16.mxu0 0
      %4927 = vmatpush1.bf16.msra.mxu0 %v4616
      %4928 = vmatprep.subr.bf16.mxu0 0
      %4929 = vmatpush1.bf16.msra.mxu0 %v4615
      %4930 = vmatprep.subr.bf16.mxu0 0
      %4931 = vmatpush1.bf16.msra.mxu0 %v4614
      %4932 = vmatprep.subr.bf16.mxu0 0
      %4933 = vmatpush1.bf16.msra.mxu0 %v4613
      %4934 = vmatprep.subr.bf16.mxu0 0
      %4935 = vmatpush1.bf16.msra.mxu0 %v4612
      %4936 = vmatprep.subr.bf16.mxu0 0
      %4937 = vmatpush1.bf16.msra.mxu0 %v4611
      %4938 = vmatprep.subr.bf16.mxu0 0
      %4939 = vmatpush1.bf16.msra.mxu0 %v4610
      %4940 = vmatprep.subr.bf16.mxu0 0
      %4941 = vmatpush1.bf16.msra.mxu0 %v4609
      %4942 = vmatprep.subr.bf16.mxu0 0
      %4943 = vmatpush2.bf16.msra.mxu0 %v4624
      %4944 = vmatprep.subr.bf16.mxu0 0
      %4945 = vmatpush2.bf16.msra.mxu0 %v4623
      %4946 = vmatprep.subr.bf16.mxu0 0
      %4947 = vmatpush2.bf16.msra.mxu0 %v4622
      %4948 = vmatprep.subr.bf16.mxu0 0
      %4949 = vmatpush2.bf16.msra.mxu0 %v4621
      %4950 = vmatprep.subr.bf16.mxu0 0
      %4951 = vmatpush2.bf16.msra.mxu0 %v4620
      %4952 = vmatprep.subr.bf16.mxu0 0
      %4953 = vmatpush2.bf16.msra.mxu0 %v4619
      %4954 = vmatprep.subr.bf16.mxu0 0
      %4955 = vmatpush2.bf16.msra.mxu0 %v4618
      %4956 = vmatprep.subr.bf16.mxu0 0
      %4957 = vmatpush2.bf16.msra.mxu0 %v4617
      %4958 = vmatprep.mubr.bf16.mxu0 %v4865
      %4959 = vmatmul.mubr.bf16.gmra.mxu0 %v4864
      %v4960 = vpop.f32.mrf.mxu0
      %v4961 = vadd.f32 0.0, %v4960
      %v4962 = vpop.f32.mrf.mxu0
      %v4963 = vpop.f32.mrf.mxu0
      %v4964 = vadd.f32 0.0, %v4963
      %v4965 = vpop.f32.mrf.mxu0
      %4966 = vmatprep.mubr.bf16.mxu0 %v4921
      %4967 = vmatmul.mubr.bf16.gmra.mxu0 %v4920
      %v4968 = vpop.f32.mrf.mxu0
      %v4969 = vadd.f32 0.0, %v4968
      %v4970 = vpop.f32.mrf.mxu0
      %v4971 = vpop.f32.mrf.mxu0
      %v4972 = vadd.f32 0.0, %v4971
      %v4973 = vpop.f32.mrf.mxu0
      %4974 = vdwg.mxu0
      %v4983 = vcombine.high %v4786, %v4786
      %v4985 = vunpack.c.l.s4 1983009808
      %v4986 = vunpack.c.0.s8 %v4985
      %v4987 = vlaneseq
      %v4988 = vshrl.u32 %v4987, 7
      %v4989 = vsub.s32 %v4986, %v4988
      %v4990 = vrot.slane %v4786, %v4989
      %v4992 = vunpack.c.l.s4 1983009808
      %v4993 = vunpack.c.0.s8 %v4992
      %v4994 = vlaneseq
      %v4995 = vshrl.u32 %v4994, 7
      %v4996 = vsub.s32 %v4993, %v4995
      %v4997 = vrot.slane %v4983, %v4996
      %v4998 = vcombine.high %v4990, %v4990
      %v4999 = vcombine.high %v4997, %v4997
      %v5000 = vcombine.high %v4789, %v4789
      %v5002 = vunpack.c.l.s4 1983009808
      %v5003 = vunpack.c.0.s8 %v5002
      %v5004 = vlaneseq
      %v5005 = vshrl.u32 %v5004, 7
      %v5006 = vsub.s32 %v5003, %v5005
      %v5007 = vrot.slane %v4789, %v5006
      %v5009 = vunpack.c.l.s4 1983009808
      %v5010 = vunpack.c.0.s8 %v5009
      %v5011 = vlaneseq
      %v5012 = vshrl.u32 %v5011, 7
      %v5013 = vsub.s32 %v5010, %v5012
      %v5014 = vrot.slane %v5000, %v5013
      %v5015 = vcombine.high %v5007, %v5007
      %v5016 = vcombine.high %v5014, %v5014
      %v5017 = vcombine.high %v4794, %v4794
      %v5019 = vunpack.c.l.s4 1983009808
      %v5020 = vunpack.c.0.s8 %v5019
      %v5021 = vlaneseq
      %v5022 = vshrl.u32 %v5021, 7
      %v5023 = vsub.s32 %v5020, %v5022
      %v5024 = vrot.slane %v4794, %v5023
      %v5026 = vunpack.c.l.s4 1983009808
      %v5027 = vunpack.c.0.s8 %v5026
      %v5028 = vlaneseq
      %v5029 = vshrl.u32 %v5028, 7
      %v5030 = vsub.s32 %v5027, %v5029
      %v5031 = vrot.slane %v5017, %v5030
      %v5032 = vcombine.high %v5024, %v5024
      %v5033 = vcombine.high %v5031, %v5031
      %v5035 = vunpack.c.l.s4 1983009808
      %v5036 = vunpack.c.0.s8 %v5035
      %v5037 = vlaneseq
      %v5038 = vshrl.u32 %v5037, 7
      %v5039 = vsub.s32 %v5036, %v5038
      %v5040 = vrot.slane %v4797, %v5039
      %v5041 = vcombine.high %v4961, %v4961
      %v5043 = vunpack.c.l.s4 1983009808
      %v5044 = vunpack.c.0.s8 %v5043
      %v5045 = vlaneseq
      %v5046 = vshrl.u32 %v5045, 7
      %v5047 = vsub.s32 %v5044, %v5046
      %v5048 = vrot.slane %v4961, %v5047
      %v5050 = vunpack.c.l.s4 1983009808
      %v5051 = vunpack.c.0.s8 %v5050
      %v5052 = vlaneseq
      %v5053 = vshrl.u32 %v5052, 7
      %v5054 = vsub.s32 %v5051, %v5053
      %v5055 = vrot.slane %v5041, %v5054
      %v5056 = vcombine.high %v5048, %v5048
      %v5057 = vcombine.high %v5055, %v5055
      %v5058 = vcombine.high %v4964, %v4964
      %v5060 = vunpack.c.l.s4 1983009808
      %v5061 = vunpack.c.0.s8 %v5060
      %v5062 = vlaneseq
      %v5063 = vshrl.u32 %v5062, 7
      %v5064 = vsub.s32 %v5061, %v5063
      %v5065 = vrot.slane %v4964, %v5064
      %v5067 = vunpack.c.l.s4 1983009808
      %v5068 = vunpack.c.0.s8 %v5067
      %v5069 = vlaneseq
      %v5070 = vshrl.u32 %v5069, 7
      %v5071 = vsub.s32 %v5068, %v5070
      %v5072 = vrot.slane %v5058, %v5071
      %v5073 = vcombine.high %v5065, %v5065
      %v5074 = vcombine.high %v5072, %v5072
      %v5075 = vcombine.high %v4969, %v4969
      %v5077 = vunpack.c.l.s4 1983009808
      %v5078 = vunpack.c.0.s8 %v5077
      %v5079 = vlaneseq
      %v5080 = vshrl.u32 %v5079, 7
      %v5081 = vsub.s32 %v5078, %v5080
      %v5082 = vrot.slane %v4969, %v5081
      %v5084 = vunpack.c.l.s4 1983009808
      %v5085 = vunpack.c.0.s8 %v5084
      %v5086 = vlaneseq
      %v5087 = vshrl.u32 %v5086, 7
      %v5088 = vsub.s32 %v5085, %v5087
      %v5089 = vrot.slane %v5075, %v5088
      %v5090 = vcombine.high %v5082, %v5082
      %v5091 = vcombine.high %v5089, %v5089
      %v5093 = vunpack.c.l.s4 1983009808
      %v5094 = vunpack.c.0.s8 %v5093
      %v5095 = vlaneseq
      %v5096 = vshrl.u32 %v5095, 7
      %v5097 = vsub.s32 %v5094, %v5096
      %v5098 = vrot.slane %v4972, %v5097
      %v5099 = vcombine.low %v4990, %v4998
      %v5100 = vcombine.low %v4997, %v4999
      %v5102 = vunpack.c.l.s4 1983009808
      %v5103 = vunpack.c.0.s8 %v5102
      %v5104 = vlaneseq
      %v5105 = vshrl.u32 %v5104, 7
      %v5106 = vsub.s32 %v5103, %v5105
      %v5107 = vrot.slane %v5099, %v5106
      %v5109 = vunpack.c.l.s4 1983009808
      %v5110 = vunpack.c.0.s8 %v5109
      %v5111 = vlaneseq
      %v5112 = vshrl.u32 %v5111, 7
      %v5113 = vsub.s32 %v5110, %v5112
      %v5114 = vrot.slane %v5100, %v5113
      %v5115 = vcombine.low %v5107, %v5114
      %v5116 = vcombine.low %v5007, %v5015
      %v5117 = vcombine.low %v5014, %v5016
      %v5119 = vunpack.c.l.s4 1983009808
      %v5120 = vunpack.c.0.s8 %v5119
      %v5121 = vlaneseq
      %v5122 = vshrl.u32 %v5121, 7
      %v5123 = vsub.s32 %v5120, %v5122
      %v5124 = vrot.slane %v5116, %v5123
      %v5126 = vunpack.c.l.s4 1983009808
      %v5127 = vunpack.c.0.s8 %v5126
      %v5128 = vlaneseq
      %v5129 = vshrl.u32 %v5128, 7
      %v5130 = vsub.s32 %v5127, %v5129
      %v5131 = vrot.slane %v5117, %v5130
      %v5132 = vcombine.low %v5124, %v5131
      %v5133 = vcombine.low %v5024, %v5032
      %v5134 = vcombine.low %v5031, %v5033
      %v5136 = vunpack.c.l.s4 1983009808
      %v5137 = vunpack.c.0.s8 %v5136
      %v5138 = vlaneseq
      %v5139 = vshrl.u32 %v5138, 7
      %v5140 = vsub.s32 %v5137, %v5139
      %v5141 = vrot.slane %v5133, %v5140
      %v5143 = vunpack.c.l.s4 1983009808
      %v5144 = vunpack.c.0.s8 %v5143
      %v5145 = vlaneseq
      %v5146 = vshrl.u32 %v5145, 7
      %v5147 = vsub.s32 %v5144, %v5146
      %v5148 = vrot.slane %v5134, %v5147
      %v5149 = vcombine.low %v5141, %v5148
      %v5150 = vcombine.low %v5040, %v5048
      %v5151 = vcombine.low %v5056, %v5055
      %v5153 = vunpack.c.l.s4 1983009808
      %v5154 = vunpack.c.0.s8 %v5153
      %v5155 = vlaneseq
      %v5156 = vshrl.u32 %v5155, 7
      %v5157 = vsub.s32 %v5154, %v5156
      %v5158 = vrot.slane %v5150, %v5157
      %v5160 = vunpack.c.l.s4 1983009808
      %v5161 = vunpack.c.0.s8 %v5160
      %v5162 = vlaneseq
      %v5163 = vshrl.u32 %v5162, 7
      %v5164 = vsub.s32 %v5161, %v5163
      %v5165 = vrot.slane %v5151, %v5164
      %v5166 = vcombine.low %v5158, %v5165
      %v5167 = vcombine.low %v5057, %v5065
      %v5168 = vcombine.low %v5073, %v5072
      %v5170 = vunpack.c.l.s4 1983009808
      %v5171 = vunpack.c.0.s8 %v5170
      %v5172 = vlaneseq
      %v5173 = vshrl.u32 %v5172, 7
      %v5174 = vsub.s32 %v5171, %v5173
      %v5175 = vrot.slane %v5167, %v5174
      %v5177 = vunpack.c.l.s4 1983009808
      %v5178 = vunpack.c.0.s8 %v5177
      %v5179 = vlaneseq
      %v5180 = vshrl.u32 %v5179, 7
      %v5181 = vsub.s32 %v5178, %v5180
      %v5182 = vrot.slane %v5168, %v5181
      %v5183 = vcombine.low %v5175, %v5182
      %v5184 = vcombine.low %v5074, %v5082
      %v5185 = vcombine.low %v5090, %v5089
      %v5187 = vunpack.c.l.s4 1983009808
      %v5188 = vunpack.c.0.s8 %v5187
      %v5189 = vlaneseq
      %v5190 = vshrl.u32 %v5189, 7
      %v5191 = vsub.s32 %v5188, %v5190
      %v5192 = vrot.slane %v5184, %v5191
      %v5194 = vunpack.c.l.s4 1983009808
      %v5195 = vunpack.c.0.s8 %v5194
      %v5196 = vlaneseq
      %v5197 = vshrl.u32 %v5196, 7
      %v5198 = vsub.s32 %v5195, %v5197
      %v5199 = vrot.slane %v5185, %v5198
      %v5200 = vcombine.low %v5192, %v5199
      %v5201 = vcombine.low %v5091, %v5098
      %v5203 = vunpack.c.l.s4 1983009808
      %v5204 = vunpack.c.0.s8 %v5203
      %v5205 = vlaneseq
      %v5206 = vshrl.u32 %v5205, 7
      %v5207 = vsub.s32 %v5204, %v5206
      %v5208 = vrot.slane %v5201, %v5207
      %v5216 = vpack.c.bf16 %v5132, %v5115
      %v5217 = vpack.c.bf16 %v5166, %v5149
      %v5218 = vpack.c.bf16 %v5200, %v5183
      %v5219 = vpack.c.bf16 %v5208, %v5208
      %v5220 = vld [vmem:[%s5] sm:$0xff]
      %v5221 = vld [vmem:[%s5 + $0x8] sm:$0xff]
      %v5222 = vld [vmem:[%s5 + $0x10] sm:$0xff]
      %v5223 = vld [vmem:[%s5 + $0x18] sm:$0xff]
      %v5224 = vpack.c.bf16 %v5221, %v5220
      %v5225 = vpack.c.bf16 %v5223, %v5222
      %v5226 = vld [vmem:[%s6] sm:$0x1]
      %v5228 = vlaneseq
      %v5229 = vshrl.u32 %v5228, 7
      %v5230 = vsub.s32 0, %v5229
      %v5231 = vrot.slane %v5226, %v5230
      %v5234 = vsel %vm2044, %v5216, 0
      %v5237 = vsel %vm2044, %v5217, 0
      %v5240 = vsel %vm2044, %v5218, 0
      %v5243 = vsel %vm2044, %v5219, 0
      %5245 = vmatprep.subr.bf16.mxu0 0
      %5246 = vmatpush1.bf16.msra.mxu0 0
      %5247 = vmatprep.subr.bf16.mxu0 0
      %5248 = vmatpush1.bf16.msra.mxu0 0
      %5249 = vmatprep.subr.bf16.mxu0 0
      %5250 = vmatpush1.bf16.msra.mxu0 0
      %5251 = vmatprep.subr.bf16.mxu0 0
      %5252 = vmatpush1.bf16.msra.mxu0 0
      %5253 = vmatprep.subr.bf16.mxu0 0
      %5254 = vmatpush1.bf16.msra.mxu0 0
      %5255 = vmatprep.subr.bf16.mxu0 0
      %5256 = vmatpush1.bf16.msra.mxu0 0
      %5257 = vmatprep.subr.bf16.mxu0 0
      %5258 = vmatpush1.bf16.msra.mxu0 %v5225
      %5259 = vmatprep.subr.bf16.mxu0 0
      %5260 = vmatpush1.bf16.msra.mxu0 %v5224
      %5261 = vmatprep.subr.bf16.mxu0 0
      %5262 = vmatpush2.bf16.msra.mxu0 0
      %5263 = vmatprep.subr.bf16.mxu0 0
      %5264 = vmatpush2.bf16.msra.mxu0 0
      %5265 = vmatprep.subr.bf16.mxu0 0
      %5266 = vmatpush2.bf16.msra.mxu0 0
      %5267 = vmatprep.subr.bf16.mxu0 0
      %5268 = vmatpush2.bf16.msra.mxu0 0
      %5269 = vmatprep.subr.bf16.mxu0 0
      %5270 = vmatpush2.bf16.msra.mxu0 0
      %5271 = vmatprep.subr.bf16.mxu0 0
      %5272 = vmatpush2.bf16.msra.mxu0 0
      %5273 = vmatprep.subr.bf16.mxu0 0
      %5274 = vmatpush2.bf16.msra.mxu0 0
      %5275 = vmatprep.subr.bf16.mxu0 0
      %5276 = vmatpush2.bf16.msra.mxu0 0
      %5277 = vmatprep.mubr.bf16.mxu0 0
      %5278 = vmatmul.mubr.bf16.gmra.mxu0 %v5234
      %v5279 = vpop.f32.mrf.mxu0
      %v5280 = vadd.f32 %v5231, %v5279
      %v5281 = vpop.f32.mrf.mxu0
      %v5282 = vpop.f32.mrf.mxu0
      %v5283 = vadd.f32 %v5231, %v5282
      %v5284 = vpop.f32.mrf.mxu0
      %5285 = vmatprep.mubr.bf16.mxu0 0
      %5286 = vmatmul.mubr.bf16.gmra.mxu0 %v5237
      %v5287 = vpop.f32.mrf.mxu0
      %v5288 = vadd.f32 %v5231, %v5287
      %v5289 = vpop.f32.mrf.mxu0
      %v5290 = vpop.f32.mrf.mxu0
      %v5291 = vadd.f32 %v5231, %v5290
      %v5292 = vpop.f32.mrf.mxu0
      %5293 = vmatprep.mubr.bf16.mxu0 0
      %5294 = vmatmul.mubr.bf16.gmra.mxu0 %v5240
      %v5295 = vpop.f32.mrf.mxu0
      %v5296 = vadd.f32 %v5231, %v5295
      %v5297 = vpop.f32.mrf.mxu0
      %v5298 = vpop.f32.mrf.mxu0
      %v5299 = vadd.f32 %v5231, %v5298
      %v5300 = vpop.f32.mrf.mxu0
      %5301 = vmatprep.mubr.bf16.mxu0 0
      %5302 = vmatmul.mubr.bf16.gmra.mxu0 %v5243
      %v5303 = vpop.f32.mrf.mxu0
      %v5304 = vadd.f32 %v5231, %v5303
      %v5305 = vpop.f32.mrf.mxu0
      %v5306 = vpop.f32.mrf.mxu0
      %v5307 = vpop.f32.mrf.mxu0
      %5308 = vdwg.mxu0
      %v5316 = vcombine.high %v5280, %v5280
      %v5318 = vunpack.c.l.s4 1983009808
      %v5319 = vunpack.c.0.s8 %v5318
      %v5320 = vlaneseq
      %v5321 = vshrl.u32 %v5320, 7
      %v5322 = vsub.s32 %v5319, %v5321
      %v5323 = vrot.slane %v5280, %v5322
      %v5325 = vunpack.c.l.s4 1983009808
      %v5326 = vunpack.c.0.s8 %v5325
      %v5327 = vlaneseq
      %v5328 = vshrl.u32 %v5327, 7
      %v5329 = vsub.s32 %v5326, %v5328
      %v5330 = vrot.slane %v5316, %v5329
      %v5331 = vcombine.high %v5323, %v5323
      %v5332 = vcombine.high %v5330, %v5330
      %v5333 = vcombine.high %v5283, %v5283
      %v5335 = vunpack.c.l.s4 1983009808
      %v5336 = vunpack.c.0.s8 %v5335
      %v5337 = vlaneseq
      %v5338 = vshrl.u32 %v5337, 7
      %v5339 = vsub.s32 %v5336, %v5338
      %v5340 = vrot.slane %v5283, %v5339
      %v5342 = vunpack.c.l.s4 1983009808
      %v5343 = vunpack.c.0.s8 %v5342
      %v5344 = vlaneseq
      %v5345 = vshrl.u32 %v5344, 7
      %v5346 = vsub.s32 %v5343, %v5345
      %v5347 = vrot.slane %v5333, %v5346
      %v5348 = vcombine.high %v5340, %v5340
      %v5349 = vcombine.high %v5347, %v5347
      %v5350 = vcombine.high %v5288, %v5288
      %v5352 = vunpack.c.l.s4 1983009808
      %v5353 = vunpack.c.0.s8 %v5352
      %v5354 = vlaneseq
      %v5355 = vshrl.u32 %v5354, 7
      %v5356 = vsub.s32 %v5353, %v5355
      %v5357 = vrot.slane %v5288, %v5356
      %v5359 = vunpack.c.l.s4 1983009808
      %v5360 = vunpack.c.0.s8 %v5359
      %v5361 = vlaneseq
      %v5362 = vshrl.u32 %v5361, 7
      %v5363 = vsub.s32 %v5360, %v5362
      %v5364 = vrot.slane %v5350, %v5363
      %v5365 = vcombine.high %v5357, %v5357
      %v5366 = vcombine.high %v5364, %v5364
      %v5367 = vcombine.high %v5291, %v5291
      %v5369 = vunpack.c.l.s4 1983009808
      %v5370 = vunpack.c.0.s8 %v5369
      %v5371 = vlaneseq
      %v5372 = vshrl.u32 %v5371, 7
      %v5373 = vsub.s32 %v5370, %v5372
      %v5374 = vrot.slane %v5291, %v5373
      %v5376 = vunpack.c.l.s4 1983009808
      %v5377 = vunpack.c.0.s8 %v5376
      %v5378 = vlaneseq
      %v5379 = vshrl.u32 %v5378, 7
      %v5380 = vsub.s32 %v5377, %v5379
      %v5381 = vrot.slane %v5367, %v5380
      %v5382 = vcombine.high %v5374, %v5374
      %v5383 = vcombine.high %v5381, %v5381
      %v5384 = vcombine.high %v5296, %v5296
      %v5386 = vunpack.c.l.s4 1983009808
      %v5387 = vunpack.c.0.s8 %v5386
      %v5388 = vlaneseq
      %v5389 = vshrl.u32 %v5388, 7
      %v5390 = vsub.s32 %v5387, %v5389
      %v5391 = vrot.slane %v5296, %v5390
      %v5393 = vunpack.c.l.s4 1983009808
      %v5394 = vunpack.c.0.s8 %v5393
      %v5395 = vlaneseq
      %v5396 = vshrl.u32 %v5395, 7
      %v5397 = vsub.s32 %v5394, %v5396
      %v5398 = vrot.slane %v5384, %v5397
      %v5399 = vcombine.high %v5391, %v5391
      %v5400 = vcombine.high %v5398, %v5398
      %v5401 = vcombine.high %v5299, %v5299
      %v5403 = vunpack.c.l.s4 1983009808
      %v5404 = vunpack.c.0.s8 %v5403
      %v5405 = vlaneseq
      %v5406 = vshrl.u32 %v5405, 7
      %v5407 = vsub.s32 %v5404, %v5406
      %v5408 = vrot.slane %v5299, %v5407
      %v5410 = vunpack.c.l.s4 1983009808
      %v5411 = vunpack.c.0.s8 %v5410
      %v5412 = vlaneseq
      %v5413 = vshrl.u32 %v5412, 7
      %v5414 = vsub.s32 %v5411, %v5413
      %v5415 = vrot.slane %v5401, %v5414
      %v5416 = vcombine.high %v5408, %v5408
      %v5417 = vcombine.high %v5415, %v5415
      %v5419 = vunpack.c.l.s4 1983009808
      %v5420 = vunpack.c.0.s8 %v5419
      %v5421 = vlaneseq
      %v5422 = vshrl.u32 %v5421, 7
      %v5423 = vsub.s32 %v5420, %v5422
      %v5424 = vrot.slane %v5304, %v5423
      %v5425 = vcombine.high %v5424, %v5424
      %5426 = vst.msk [vmem:[%s353] sm:$0xff] %vm2044, %v4786
      %5427 = vst.msk [vmem:[%s353 + $0x8] sm:$0xff] %vm2044, %v4789
      %5428 = vst.msk [vmem:[%s353 + $0x10] sm:$0xff] %vm2044, %v4794
      %vm5429 = vcmask 254976
      %5430 = vst.msk [vmem:[%s353 + $0x18] sm:$0x3] %vm5429, %v4797
      %5431 = vst.msk [vmem:[%s353 + $0x20] sm:$0xff] %vm2044, %v4961
      %5432 = vst.msk [vmem:[%s353 + $0x28] sm:$0xff] %vm2044, %v4964
      %5433 = vst.msk [vmem:[%s353 + $0x30] sm:$0xff] %vm2044, %v4969
      %5434 = vst.msk [vmem:[%s353 + $0x38] sm:$0x3] %vm5429, %v4972
      %v5435 = vcombine.low %v5323, %v5331
      %v5436 = vcombine.low %v5330, %v5332
      %v5438 = vunpack.c.l.s4 1983009808
      %v5439 = vunpack.c.0.s8 %v5438
      %v5440 = vlaneseq
      %v5441 = vshrl.u32 %v5440, 7
      %v5442 = vsub.s32 %v5439, %v5441
      %v5443 = vrot.slane %v5435, %v5442
      %v5445 = vunpack.c.l.s4 1983009808
      %v5446 = vunpack.c.0.s8 %v5445
      %v5447 = vlaneseq
      %v5448 = vshrl.u32 %v5447, 7
      %v5449 = vsub.s32 %v5446, %v5448
      %v5450 = vrot.slane %v5436, %v5449
      %v5451 = vcombine.low %v5443, %v5450
      %v5452 = vcombine.low %v5340, %v5348
      %v5453 = vcombine.low %v5347, %v5349
      %v5455 = vunpack.c.l.s4 1983009808
      %v5456 = vunpack.c.0.s8 %v5455
      %v5457 = vlaneseq
      %v5458 = vshrl.u32 %v5457, 7
      %v5459 = vsub.s32 %v5456, %v5458
      %v5460 = vrot.slane %v5452, %v5459
      %v5462 = vunpack.c.l.s4 1983009808
      %v5463 = vunpack.c.0.s8 %v5462
      %v5464 = vlaneseq
      %v5465 = vshrl.u32 %v5464, 7
      %v5466 = vsub.s32 %v5463, %v5465
      %v5467 = vrot.slane %v5453, %v5466
      %v5468 = vcombine.low %v5460, %v5467
      %v5469 = vcombine.low %v5357, %v5365
      %v5470 = vcombine.low %v5364, %v5366
      %v5472 = vunpack.c.l.s4 1983009808
      %v5473 = vunpack.c.0.s8 %v5472
      %v5474 = vlaneseq
      %v5475 = vshrl.u32 %v5474, 7
      %v5476 = vsub.s32 %v5473, %v5475
      %v5477 = vrot.slane %v5469, %v5476
      %v5479 = vunpack.c.l.s4 1983009808
      %v5480 = vunpack.c.0.s8 %v5479
      %v5481 = vlaneseq
      %v5482 = vshrl.u32 %v5481, 7
      %v5483 = vsub.s32 %v5480, %v5482
      %v5484 = vrot.slane %v5470, %v5483
      %v5485 = vcombine.low %v5477, %v5484
      %v5487 = vunpack.c.l.s4 1983009808
      %v5488 = vunpack.c.0.s8 %v5487
      %v5489 = vlaneseq
      %v5490 = vshrl.u32 %v5489, 7
      %v5491 = vsub.s32 %v5488, %v5490
      %v5492 = vrot.slane %v5374, %v5491
      %v5493 = vcombine.low %v5382, %v5381
      %v5494 = vcombine.low %v5383, %v5391
      %v5496 = vunpack.c.l.s4 1983009808
      %v5497 = vunpack.c.0.s8 %v5496
      %v5498 = vlaneseq
      %v5499 = vshrl.u32 %v5498, 7
      %v5500 = vsub.s32 %v5497, %v5499
      %v5501 = vrot.slane %v5493, %v5500
      %v5503 = vunpack.c.l.s4 1983009808
      %v5504 = vunpack.c.0.s8 %v5503
      %v5505 = vlaneseq
      %v5506 = vshrl.u32 %v5505, 7
      %v5507 = vsub.s32 %v5504, %v5506
      %v5508 = vrot.slane %v5494, %v5507
      %v5509 = vcombine.low %v5501, %v5508
      %v5510 = vcombine.low %v5399, %v5398
      %v5511 = vcombine.low %v5400, %v5408
      %v5513 = vunpack.c.l.s4 1983009808
      %v5514 = vunpack.c.0.s8 %v5513
      %v5515 = vlaneseq
      %v5516 = vshrl.u32 %v5515, 7
      %v5517 = vsub.s32 %v5514, %v5516
      %v5518 = vrot.slane %v5510, %v5517
      %v5520 = vunpack.c.l.s4 1983009808
      %v5521 = vunpack.c.0.s8 %v5520
      %v5522 = vlaneseq
      %v5523 = vshrl.u32 %v5522, 7
      %v5524 = vsub.s32 %v5521, %v5523
      %v5525 = vrot.slane %v5511, %v5524
      %v5526 = vcombine.low %v5518, %v5525
      %v5527 = vcombine.low %v5416, %v5415
      %v5528 = vcombine.low %v5417, %v5424
      %v5530 = vunpack.c.l.s4 1983009808
      %v5531 = vunpack.c.0.s8 %v5530
      %v5532 = vlaneseq
      %v5533 = vshrl.u32 %v5532, 7
      %v5534 = vsub.s32 %v5531, %v5533
      %v5535 = vrot.slane %v5527, %v5534
      %v5537 = vunpack.c.l.s4 1983009808
      %v5538 = vunpack.c.0.s8 %v5537
      %v5539 = vlaneseq
      %v5540 = vshrl.u32 %v5539, 7
      %v5541 = vsub.s32 %v5538, %v5540
      %v5542 = vrot.slane %v5528, %v5541
      %v5543 = vcombine.low %v5535, %v5542
      %v5545 = vunpack.c.l.s4 1983009808
      %v5546 = vunpack.c.0.s8 %v5545
      %v5547 = vlaneseq
      %v5548 = vshrl.u32 %v5547, 7
      %v5549 = vsub.s32 %v5546, %v5548
      %v5550 = vrot.slane %v5425, %v5549
      %5551 = vrot.lane.b32.xlu0 %v5451, 32
      %v5552 = vpop.permute.xlu0 %5551
      %5553 = vrot.lane.b32.xlu0 %v5468, 32
      %v5554 = vpop.permute.xlu0 %5553
      %5555 = vrot.lane.b32.xlu0 %v5485, 32
      %v5556 = vpop.permute.xlu0 %5555
      %5557 = vrot.lane.b32.xlu0 %v5492, 32
      %v5558 = vpop.permute.xlu0 %5557
      %5559 = vrot.lane.b32.xlu0 %v5509, 32
      %v5560 = vpop.permute.xlu0 %5559
      %5561 = vrot.lane.b32.xlu0 %v5526, 32
      %v5562 = vpop.permute.xlu0 %5561
      %5563 = vrot.lane.b32.xlu0 %v5543, 32
      %v5564 = vpop.permute.xlu0 %5563
      %5565 = vrot.lane.b32.xlu0 %v5550, 32
      %v5566 = vpop.permute.xlu0 %5565
      %vm5575 = vcmask 392448
      %5576 = vst.msk [vmem:[%s353] sm:$0xff] %vm5575, %v5552
      %5577 = vst.msk [vmem:[%s353 + $0x8] sm:$0xff] %vm5575, %v5554
      %5578 = vst.msk [vmem:[%s353 + $0x10] sm:$0xff] %vm5575, %v5556
      %vm5579 = vcmask 386304
      %5580 = vst.msk [vmem:[%s353 + $0x18] sm:$0x3] %vm5579, %v5558
      %5581 = vst.msk [vmem:[%s353 + $0x20] sm:$0xff] %vm5575, %v5560
      %5582 = vst.msk [vmem:[%s353 + $0x28] sm:$0xff] %vm5575, %v5562
      %5583 = vst.msk [vmem:[%s353 + $0x30] sm:$0xff] %vm5575, %v5564
      %5584 = vst.msk [vmem:[%s353 + $0x38] sm:$0x3] %vm5579, %v5566
      %v5593 = vunpack.c.l.s4 269488144
      %v5594 = vunpack.c.0.s8 %v5593
      %v5595 = vlaneseq
      %v5596 = vshrl.u32 %v5595, 7
      %v5597 = vsub.s32 %v5594, %v5596
      %v5598 = vrot.slane %v4347, %v5597
      %v5600 = vunpack.c.l.s4 842150450
      %v5601 = vunpack.c.0.s8 %v5600
      %v5602 = vlaneseq
      %v5603 = vshrl.u32 %v5602, 7
      %v5604 = vsub.s32 %v5601, %v5603
      %v5605 = vrot.slane %v4347, %v5604
      %v5607 = vunpack.c.l.s4 1414812756
      %v5608 = vunpack.c.0.s8 %v5607
      %v5609 = vlaneseq
      %v5610 = vshrl.u32 %v5609, 7
      %v5611 = vsub.s32 %v5608, %v5610
      %v5612 = vrot.slane %v4347, %v5611
      %v5614 = vunpack.c.l.s4 1987475062
      %v5615 = vunpack.c.0.s8 %v5614
      %v5616 = vlaneseq
      %v5617 = vshrl.u32 %v5616, 7
      %v5618 = vsub.s32 %v5615, %v5617
      %v5619 = vrot.slane %v4347, %v5618
      %v5621 = vunpack.c.l.s4 269488144
      %v5622 = vunpack.c.0.s8 %v5621
      %v5623 = vlaneseq
      %v5624 = vshrl.u32 %v5623, 7
      %v5625 = vsub.s32 %v5622, %v5624
      %v5626 = vrot.slane %v4350, %v5625
      %v5628 = vunpack.c.l.s4 842150450
      %v5629 = vunpack.c.0.s8 %v5628
      %v5630 = vlaneseq
      %v5631 = vshrl.u32 %v5630, 7
      %v5632 = vsub.s32 %v5629, %v5631
      %v5633 = vrot.slane %v4350, %v5632
      %v5635 = vunpack.c.l.s4 1414812756
      %v5636 = vunpack.c.0.s8 %v5635
      %v5637 = vlaneseq
      %v5638 = vshrl.u32 %v5637, 7
      %v5639 = vsub.s32 %v5636, %v5638
      %v5640 = vrot.slane %v4350, %v5639
      %v5642 = vunpack.c.l.s4 1987475062
      %v5643 = vunpack.c.0.s8 %v5642
      %v5644 = vlaneseq
      %v5645 = vshrl.u32 %v5644, 7
      %v5646 = vsub.s32 %v5643, %v5645
      %v5647 = vrot.slane %v4350, %v5646
      %v5649 = vunpack.c.l.s4 269488144
      %v5650 = vunpack.c.0.s8 %v5649
      %v5651 = vlaneseq
      %v5652 = vshrl.u32 %v5651, 7
      %v5653 = vsub.s32 %v5650, %v5652
      %v5654 = vrot.slane %v4353, %v5653
      %v5656 = vunpack.c.l.s4 842150450
      %v5657 = vunpack.c.0.s8 %v5656
      %v5658 = vlaneseq
      %v5659 = vshrl.u32 %v5658, 7
      %v5660 = vsub.s32 %v5657, %v5659
      %v5661 = vrot.slane %v4353, %v5660
      %v5663 = vunpack.c.l.s4 1414812756
      %v5664 = vunpack.c.0.s8 %v5663
      %v5665 = vlaneseq
      %v5666 = vshrl.u32 %v5665, 7
      %v5667 = vsub.s32 %v5664, %v5666
      %v5668 = vrot.slane %v4353, %v5667
      %v5670 = vunpack.c.l.s4 1987475062
      %v5671 = vunpack.c.0.s8 %v5670
      %v5672 = vlaneseq
      %v5673 = vshrl.u32 %v5672, 7
      %v5674 = vsub.s32 %v5671, %v5673
      %v5675 = vrot.slane %v4353, %v5674
      %v5677 = vunpack.c.l.s4 269488144
      %v5678 = vunpack.c.0.s8 %v5677
      %v5679 = vlaneseq
      %v5680 = vshrl.u32 %v5679, 7
      %v5681 = vsub.s32 %v5678, %v5680
      %v5682 = vrot.slane %v4356, %v5681
      %v5684 = vunpack.c.l.s4 842150450
      %v5685 = vunpack.c.0.s8 %v5684
      %v5686 = vlaneseq
      %v5687 = vshrl.u32 %v5686, 7
      %v5688 = vsub.s32 %v5685, %v5687
      %v5689 = vrot.slane %v4356, %v5688
      %v5691 = vunpack.c.l.s4 1414812756
      %v5692 = vunpack.c.0.s8 %v5691
      %v5693 = vlaneseq
      %v5694 = vshrl.u32 %v5693, 7
      %v5695 = vsub.s32 %v5692, %v5694
      %v5696 = vrot.slane %v4356, %v5695
      %v5698 = vunpack.c.l.s4 1987475062
      %v5699 = vunpack.c.0.s8 %v5698
      %v5700 = vlaneseq
      %v5701 = vshrl.u32 %v5700, 7
      %v5702 = vsub.s32 %v5699, %v5701
      %v5703 = vrot.slane %v4356, %v5702
      %v5705 = vunpack.c.l.s4 269488144
      %v5706 = vunpack.c.0.s8 %v5705
      %v5707 = vlaneseq
      %v5708 = vshrl.u32 %v5707, 7
      %v5709 = vsub.s32 %v5706, %v5708
      %v5710 = vrot.slane %v4359, %v5709
      %v5712 = vunpack.c.l.s4 842150450
      %v5713 = vunpack.c.0.s8 %v5712
      %v5714 = vlaneseq
      %v5715 = vshrl.u32 %v5714, 7
      %v5716 = vsub.s32 %v5713, %v5715
      %v5717 = vrot.slane %v4359, %v5716
      %v5719 = vunpack.c.l.s4 1414812756
      %v5720 = vunpack.c.0.s8 %v5719
      %v5721 = vlaneseq
      %v5722 = vshrl.u32 %v5721, 7
      %v5723 = vsub.s32 %v5720, %v5722
      %v5724 = vrot.slane %v4359, %v5723
      %v5726 = vunpack.c.l.s4 1987475062
      %v5727 = vunpack.c.0.s8 %v5726
      %v5728 = vlaneseq
      %v5729 = vshrl.u32 %v5728, 7
      %v5730 = vsub.s32 %v5727, %v5729
      %v5731 = vrot.slane %v4359, %v5730
      %v5733 = vunpack.c.l.s4 269488144
      %v5734 = vunpack.c.0.s8 %v5733
      %v5735 = vlaneseq
      %v5736 = vshrl.u32 %v5735, 7
      %v5737 = vsub.s32 %v5734, %v5736
      %v5738 = vrot.slane %v4362, %v5737
      %v5740 = vunpack.c.l.s4 842150450
      %v5741 = vunpack.c.0.s8 %v5740
      %v5742 = vlaneseq
      %v5743 = vshrl.u32 %v5742, 7
      %v5744 = vsub.s32 %v5741, %v5743
      %v5745 = vrot.slane %v4362, %v5744
      %v5747 = vunpack.c.l.s4 1414812756
      %v5748 = vunpack.c.0.s8 %v5747
      %v5749 = vlaneseq
      %v5750 = vshrl.u32 %v5749, 7
      %v5751 = vsub.s32 %v5748, %v5750
      %v5752 = vrot.slane %v4362, %v5751
      %v5754 = vunpack.c.l.s4 1987475062
      %v5755 = vunpack.c.0.s8 %v5754
      %v5756 = vlaneseq
      %v5757 = vshrl.u32 %v5756, 7
      %v5758 = vsub.s32 %v5755, %v5757
      %v5759 = vrot.slane %v4362, %v5758
      %v5761 = vunpack.c.l.s4 269488144
      %v5762 = vunpack.c.0.s8 %v5761
      %v5763 = vlaneseq
      %v5764 = vshrl.u32 %v5763, 7
      %v5765 = vsub.s32 %v5762, %v5764
      %v5766 = vrot.slane %v4368, %v5765
      %v5768 = vunpack.c.l.s4 842150450
      %v5769 = vunpack.c.0.s8 %v5768
      %v5770 = vlaneseq
      %v5771 = vshrl.u32 %v5770, 7
      %v5772 = vsub.s32 %v5769, %v5771
      %v5773 = vrot.slane %v4368, %v5772
      %v5774 = vcombine.low %v5598, %v5605
      %v5775 = vcombine.low %v5612, %v5619
      %v5777 = vunpack.c.l.s4 1983009808
      %v5778 = vunpack.c.0.s8 %v5777
      %v5779 = vlaneseq
      %v5780 = vshrl.u32 %v5779, 7
      %v5781 = vsub.s32 %v5778, %v5780
      %v5782 = vrot.slane %v5774, %v5781
      %v5784 = vunpack.c.l.s4 1983009808
      %v5785 = vunpack.c.0.s8 %v5784
      %v5786 = vlaneseq
      %v5787 = vshrl.u32 %v5786, 7
      %v5788 = vsub.s32 %v5785, %v5787
      %v5789 = vrot.slane %v5775, %v5788
      %v5790 = vcombine.low %v5782, %v5789
      %v5791 = vcombine.low %v5626, %v5633
      %v5792 = vcombine.low %v5640, %v5647
      %v5794 = vunpack.c.l.s4 1983009808
      %v5795 = vunpack.c.0.s8 %v5794
      %v5796 = vlaneseq
      %v5797 = vshrl.u32 %v5796, 7
      %v5798 = vsub.s32 %v5795, %v5797
      %v5799 = vrot.slane %v5791, %v5798
      %v5801 = vunpack.c.l.s4 1983009808
      %v5802 = vunpack.c.0.s8 %v5801
      %v5803 = vlaneseq
      %v5804 = vshrl.u32 %v5803, 7
      %v5805 = vsub.s32 %v5802, %v5804
      %v5806 = vrot.slane %v5792, %v5805
      %v5807 = vcombine.low %v5799, %v5806
      %v5808 = vcombine.low %v5654, %v5661
      %v5809 = vcombine.low %v5668, %v5675
      %v5811 = vunpack.c.l.s4 1983009808
      %v5812 = vunpack.c.0.s8 %v5811
      %v5813 = vlaneseq
      %v5814 = vshrl.u32 %v5813, 7
      %v5815 = vsub.s32 %v5812, %v5814
      %v5816 = vrot.slane %v5808, %v5815
      %v5818 = vunpack.c.l.s4 1983009808
      %v5819 = vunpack.c.0.s8 %v5818
      %v5820 = vlaneseq
      %v5821 = vshrl.u32 %v5820, 7
      %v5822 = vsub.s32 %v5819, %v5821
      %v5823 = vrot.slane %v5809, %v5822
      %v5824 = vcombine.low %v5816, %v5823
      %v5826 = vunpack.c.l.s4 1983009808
      %v5827 = vunpack.c.0.s8 %v5826
      %v5828 = vlaneseq
      %v5829 = vshrl.u32 %v5828, 7
      %v5830 = vsub.s32 %v5827, %v5829
      %v5831 = vrot.slane %v5682, %v5830
      %v5832 = vcombine.low %v5689, %v5696
      %v5833 = vcombine.low %v5703, %v5710
      %v5835 = vunpack.c.l.s4 1983009808
      %v5836 = vunpack.c.0.s8 %v5835
      %v5837 = vlaneseq
      %v5838 = vshrl.u32 %v5837, 7
      %v5839 = vsub.s32 %v5836, %v5838
      %v5840 = vrot.slane %v5832, %v5839
      %v5842 = vunpack.c.l.s4 1983009808
      %v5843 = vunpack.c.0.s8 %v5842
      %v5844 = vlaneseq
      %v5845 = vshrl.u32 %v5844, 7
      %v5846 = vsub.s32 %v5843, %v5845
      %v5847 = vrot.slane %v5833, %v5846
      %v5848 = vcombine.low %v5840, %v5847
      %v5849 = vcombine.low %v5717, %v5724
      %v5850 = vcombine.low %v5731, %v5738
      %v5852 = vunpack.c.l.s4 1983009808
      %v5853 = vunpack.c.0.s8 %v5852
      %v5854 = vlaneseq
      %v5855 = vshrl.u32 %v5854, 7
      %v5856 = vsub.s32 %v5853, %v5855
      %v5857 = vrot.slane %v5849, %v5856
      %v5859 = vunpack.c.l.s4 1983009808
      %v5860 = vunpack.c.0.s8 %v5859
      %v5861 = vlaneseq
      %v5862 = vshrl.u32 %v5861, 7
      %v5863 = vsub.s32 %v5860, %v5862
      %v5864 = vrot.slane %v5850, %v5863
      %v5865 = vcombine.low %v5857, %v5864
      %v5866 = vcombine.low %v5745, %v5752
      %v5867 = vcombine.low %v5759, %v5766
      %v5869 = vunpack.c.l.s4 1983009808
      %v5870 = vunpack.c.0.s8 %v5869
      %v5871 = vlaneseq
      %v5872 = vshrl.u32 %v5871, 7
      %v5873 = vsub.s32 %v5870, %v5872
      %v5874 = vrot.slane %v5866, %v5873
      %v5876 = vunpack.c.l.s4 1983009808
      %v5877 = vunpack.c.0.s8 %v5876
      %v5878 = vlaneseq
      %v5879 = vshrl.u32 %v5878, 7
      %v5880 = vsub.s32 %v5877, %v5879
      %v5881 = vrot.slane %v5867, %v5880
      %v5882 = vcombine.low %v5874, %v5881
      %v5884 = vunpack.c.l.s4 1983009808
      %v5885 = vunpack.c.0.s8 %v5884
      %v5886 = vlaneseq
      %v5887 = vshrl.u32 %v5886, 7
      %v5888 = vsub.s32 %v5885, %v5887
      %v5889 = vrot.slane %v5773, %v5888
      %5890 = vrot.lane.b32.xlu0 %v5790, 48
      %v5891 = vpop.permute.xlu0 %5890
      %5892 = vrot.lane.b32.xlu0 %v5807, 48
      %v5893 = vpop.permute.xlu0 %5892
      %5894 = vrot.lane.b32.xlu0 %v5824, 48
      %v5895 = vpop.permute.xlu0 %5894
      %5896 = vrot.lane.b32.xlu0 %v5831, 48
      %v5897 = vpop.permute.xlu0 %5896
      %5898 = vrot.lane.b32.xlu0 %v5848, 48
      %v5899 = vpop.permute.xlu0 %5898
      %5900 = vrot.lane.b32.xlu0 %v5865, 48
      %v5901 = vpop.permute.xlu0 %5900
      %5902 = vrot.lane.b32.xlu0 %v5882, 48
      %v5903 = vpop.permute.xlu0 %5902
      %5904 = vrot.lane.b32.xlu0 %v5889, 48
      %v5905 = vpop.permute.xlu0 %5904
      %vm5914 = vcmask 400768
      %5915 = vst.msk [vmem:[%s353] sm:$0xff] %vm5914, %v5891
      %5916 = vst.msk [vmem:[%s353 + $0x8] sm:$0xff] %vm5914, %v5893
      %5917 = vst.msk [vmem:[%s353 + $0x10] sm:$0xff] %vm5914, %v5895
      %vm5918 = vcmask 394624
      %5919 = vst.msk [vmem:[%s353 + $0x18] sm:$0x3] %vm5918, %v5897
      %5920 = vst.msk [vmem:[%s353 + $0x20] sm:$0xff] %vm5914, %v5899
      %5921 = vst.msk [vmem:[%s353 + $0x28] sm:$0xff] %vm5914, %v5901
      %5922 = vst.msk [vmem:[%s353 + $0x30] sm:$0xff] %vm5914, %v5903
      %5923 = vst.msk [vmem:[%s353 + $0x38] sm:$0x3] %vm5918, %v5905
      %vm5924 = vcmask 1047944
      %5925 = vst.msk [vmem:[%s353] sm:$0xff] %vm5924, 0.0
      %5926 = vst.msk [vmem:[%s353 + $0x8] sm:$0xff] %vm5924, 0.0
      %5927 = vst.msk [vmem:[%s353 + $0x10] sm:$0xff] %vm5924, 0.0
      %vm5928 = vcmask 1041800
      %5929 = vst.msk [vmem:[%s353 + $0x18] sm:$0x3] %vm5928, 0.0
      %5930 = vst.msk [vmem:[%s353 + $0x20] sm:$0xff] %vm5924, 0.0
      %5931 = vst.msk [vmem:[%s353 + $0x28] sm:$0xff] %vm5924, 0.0
      %5932 = vst.msk [vmem:[%s353 + $0x30] sm:$0xff] %vm5924, 0.0
      %5933 = vst.msk [vmem:[%s353 + $0x38] sm:$0x3] %vm5928, 0.0
      %s5934 = smul.u32 2, %s20
      %p5935 = scmp.lt.s32.totalorder %s5934, 3
      %s5936 = scalar_select %p5935, %s5934, 3
      %s5937 = smul.addr %s5936, 32
      %s5938 = smul.addr %s5937, 8
      %s5939 = scalar_lea.vmem %s7, %s5938
      %s5940 = smul.u32 2, %s20
      %p5941 = scmp.lt.s32.totalorder %s5940, 3
      %s5942 = scalar_select %p5941, %s5940, 3
      %s5943 = smul.addr %s5942, 4
      %s5944 = smul.addr %s5943, 8
      %s5945 = scalar_lea.vmem %s8, %s5944
      // Predicated region
      $region49: #{abidino_forward.1} parent=47 // pred_check
        %p5946 = pneg %p195
      $region50: #{abidino_forward.1} parent=47 // pred_check_branch
        %5948 = sbr.rel (%p5946) target = $region52
      $region51: #{abidino_forward.1} parent=47 // pred_region
        %s5949 = smul.u32 2, %s20
      $region52: #{abidino_forward.1} parent=47 // pred_fallthru
        _
      // Predicated region
      $region53: #{abidino_forward.1} parent=47 // pred_check
        %p5950 = pneg %p221
      $region54: #{abidino_forward.1} parent=47 // pred_check_branch
        %5952 = sbr.rel (%p5950) target = $region56
      $region55: #{abidino_forward.1} parent=47 // pred_region
        %s5953 = smul.u32 2, %s20
      $region56: #{abidino_forward.1} parent=47 // pred_fallthru
        _
    $region48: #{abidino_forward.1} parent=5 // pred_fallthru
      _
    %p5954 = scmp.le.s32.totalorder 2, %s15
    // Predicated region
    $region57: #{abidino_forward.1} parent=5 // pred_check
      %p5955 = pneg %p5954
    $region58: #{abidino_forward.1} parent=5 // pred_check_branch
      %5957 = sbr.rel (%p5955) target = $region60
    $region59: #{abidino_forward.1} parent=5 // pred_region
      %s5958 = ssub.s32 %s15, 2
      // Predicated region
      $region61: #{abidino_forward.1} parent=59 // pred_check
        %p5959 = pneg %p201
      $region62: #{abidino_forward.1} parent=59 // pred_check_branch
        %5961 = sbr.rel (%p5959) target = $region64
      $region63: #{abidino_forward.1} parent=59 // pred_region
        %s5962 = smul.u32 2, %s21
        %p5963 = scmp.lt.s32.totalorder %s5962, 3
        %s5964 = scalar_select %p5963, %s5962, 3
        %s5965 = smul.addr %s5964, 32
        %s5966 = smul.addr %s5965, 8
        %s5967 = scalar_lea.vmem %s7, %s5966
      $region64: #{abidino_forward.1} parent=59 // pred_fallthru
        _
      // Predicated region
      $region65: #{abidino_forward.1} parent=59 // pred_check
        %p5968 = pneg %p227
      $region66: #{abidino_forward.1} parent=59 // pred_check_branch
        %5970 = sbr.rel (%p5968) target = $region68
      $region67: #{abidino_forward.1} parent=59 // pred_region
        %s5971 = smul.u32 2, %s21
        %p5972 = scmp.lt.s32.totalorder %s5971, 3
        %s5973 = scalar_select %p5972, %s5971, 3
        %s5974 = smul.addr %s5973, 4
        %s5975 = smul.addr %s5974, 8
        %s5976 = scalar_lea.vmem %s8, %s5975
      $region68: #{abidino_forward.1} parent=59 // pred_fallthru
        _
    $region60: #{abidino_forward.1} parent=5 // pred_fallthru
      _
  $region6: #{abidino_forward.1} parent=0 // loop_footer
    %s19 = sadd.s32 1, %s15
  $region7: #{abidino_forward.1} parent=0 // loop_footer_branch
    %14 = sbr.rel target = $region3
  $region8: #{abidino_forward.1} parent=0 // loop_exit
    _

</llo_original>
